<compile_context>
chip_gen: v7x
topology: tpu7x:2x2x1
jax: 0.10.0
libtpu: 0.0.40
codegen_flags: <defaults>
</compile_context>

<pallas_src>
import math
from functools import partial

import numpy as np
import jax
import jax.numpy as jnp
from jax.experimental import pallas as pl
from jax.experimental.pallas import tpu as pltpu


# --------------------- Pallas GEMM (+bias, optional ReLU) --------------------
def _linear_kernel(x_ref, w_ref, b_ref, o_ref, *, apply_relu):
    # bf16 x bf16 -> f32 accumulation on the MXU; epilogue in f32.
    acc = jnp.dot(x_ref[...], w_ref[...], preferred_element_type=jnp.float32)
    acc = acc + b_ref[...]
    if apply_relu:
        acc = jnp.maximum(acc, 0.0)
    o_ref[...] = acc.astype(o_ref.dtype)


def _round_up(x, m):
    return ((x + m - 1) // m) * m


def pallas_linear(x, w, b, *, apply_relu=False, out_dtype=jnp.float32, max_tm=256):
    """y = x @ w + b (optionally ReLU).  x:(M,K) bf16, w:(K,N) bf16, b:(N,) f32."""
    M, K = x.shape
    Kw, N = w.shape
    assert K == Kw
    # Per-call row tile: single un-padded step for small-M layers, 256-row tiles
    # for the big conv1/conv2 GEMMs (good on v6e/v7x 256-wide MXU, harmless on v5e).
    tm = min(max_tm, _round_up(M, 8))
    grid_m = pl.cdiv(M, tm)  # partial tail block handled by Pallas (no jnp.pad copy)
    return pl.pallas_call(
        partial(_linear_kernel, apply_relu=apply_relu),
        out_shape=jax.ShapeDtypeStruct((M, N), out_dtype),
        grid=(grid_m,),
        in_specs=[
            pl.BlockSpec((tm, K), lambda i: (i, 0)),   # row tile of x
            pl.BlockSpec((K, N), lambda i: (0, 0)),    # full weight, resident
            pl.BlockSpec((1, N), lambda i: (0, 0)),    # f32 bias row
        ],
        out_specs=pl.BlockSpec((tm, N), lambda i: (i, 0)),
        compiler_params=pltpu.CompilerParams(dimension_semantics=("parallel",)),
    )(x, w, b.reshape(1, N))


# --------------------------- conv via im2col + GEMM ---------------------------
def _extract_patches(x, kh=4, kw=4, stride=2):
    """x: (B,H,W,C) NHWC bf16 -> (B,OH,OW,kh*kw*C) patches (glue, slices/stack)."""
    B, H, W, C = x.shape
    OH = (H - kh) // stride + 1
    OW = (W - kw) // stride + 1
    cols = []
    for i in range(kh):
        for j in range(kw):
            cols.append(x[:, i:i + stride * OH:stride, j:j + stride * OW:stride, :])
    patches = jnp.stack(cols, axis=-2)                 # (B,OH,OW,kh*kw,C)
    return patches.reshape(B, OH, OW, kh * kw * C), OH, OW


def conv4x4_s2_relu(x, w2, b):
    """x:(B,H,W,Cin) NHWC bf16, w2:(4*4*Cin,Cout) bf16, b:(Cout,) f32 -> bf16 NHWC out."""
    B = x.shape[0]
    cout = w2.shape[-1]
    patches, OH, OW = _extract_patches(x)
    p2 = patches.reshape(B * OH * OW, -1)
    y = pallas_linear(p2, w2, b, apply_relu=True, out_dtype=jnp.bfloat16)
    return y.reshape(B, OH, OW, cout)


# ------------------------------- Encoder model --------------------------------
IMG_CHANNELS = 6  # 2 * 3, as in the PyTorch module default


def init_params(key, latent_size):
    """PyTorch-convention params: conv weights HWIO f32; FC weights expect NCHW flatten."""
    ks = jax.random.split(key, 8)
    def conv_w(k, cin, cout):
        fan_in = 4 * 4 * cin
        return jax.random.normal(k, (4, 4, cin, cout), jnp.float32) * math.sqrt(2.0 / fan_in)
    def lin_w(k, cin, cout):
        return jax.random.normal(k, (cin, cout), jnp.float32) * math.sqrt(1.0 / cin)
    return {
        "conv1_w": conv_w(ks[0], IMG_CHANNELS, 32), "conv1_b": jnp.zeros((32,), jnp.float32),
        "conv2_w": conv_w(ks[1], 32, 64),           "conv2_b": jnp.zeros((64,), jnp.float32),
        "conv3_w": conv_w(ks[2], 64, 128),          "conv3_b": jnp.zeros((128,), jnp.float32),
        "conv4_w": conv_w(ks[3], 128, 256),         "conv4_b": jnp.zeros((256,), jnp.float32),
        "fc_mu_w": lin_w(ks[4], 2 * 2 * 256, latent_size),
        "fc_mu_b": jax.random.normal(ks[5], (latent_size,), jnp.float32) * 0.01,
        "fc_ls_w": lin_w(ks[6], 2 * 2 * 256, latent_size),
        "fc_ls_b": jax.random.normal(ks[7], (latent_size,), jnp.float32) * 0.01,
    }


def prepare_params(params, latent_size):
    """One-time prep: bf16 casts, 2-D conv weights, FC-row permutation to NHWC order,
    and fusion of fc_mu/fc_logsigma into a single (1024, 2*latent) weight."""
    p = {}
    for i in (1, 2, 3, 4):
        w = params[f"conv{i}_w"]                        # (4,4,Cin,Cout) HWIO
        p[f"conv{i}_w"] = w.reshape(-1, w.shape[-1]).astype(jnp.bfloat16)
        p[f"conv{i}_b"] = params[f"conv{i}_b"].astype(jnp.float32)

    def permute_rows(w):  # NCHW-flatten rows (C*H*W, L) -> NHWC-flatten rows (H*W*C, L)
        C, H, W = 256, 2, 2
        return w.reshape(C, H, W, -1).transpose(1, 2, 0, 3).reshape(H * W * C, -1)

    w_mu = permute_rows(params["fc_mu_w"])
    w_ls = permute_rows(params["fc_ls_w"])
    p["fc_w"] = jnp.concatenate([w_mu, w_ls], axis=1).astype(jnp.bfloat16)   # (1024, 2L)
    p["fc_b"] = jnp.concatenate([params["fc_mu_b"], params["fc_ls_b"]]).astype(jnp.float32)
    return p


def encoder_forward(x, prepared, latent_size, deterministic=False):
    """x: (*bs, C, H, W) NCHW f32 -> (mu, logsigma), each (*bs, latent_size) f32."""
    *bs, c, h, w = x.shape
    B = int(np.prod(bs)) if bs else 1
    x = x.reshape(B, c, h, w).astype(jnp.bfloat16)       # cast before the transpose
    x = jnp.transpose(x, (0, 2, 3, 1))                   # NCHW -> NHWC
    for i in (1, 2, 3, 4):
        x = conv4x4_s2_relu(x, prepared[f"conv{i}_w"], prepared[f"conv{i}_b"])
    feat = x.reshape(B, -1)                              # NHWC flatten; FC rows pre-permuted
    out = pallas_linear(feat, prepared["fc_w"], prepared["fc_b"],
                        apply_relu=False, out_dtype=jnp.float32)   # fused mu|logsigma GEMM
    mu = out[:, :latent_size].reshape(*bs, latent_size)
    logsigma = out[:, latent_size:].reshape(*bs, latent_size)
    if deterministic:
        return mu, jnp.log(jnp.full_like(mu, 1e-8))
    return mu, logsigma


# ------------------------- pure-JAX reference (check) -------------------------
def encoder_reference(x, params, latent_size):
    """f32 reference with PyTorch semantics (NCHW-flatten before the FC layers)."""
    *bs, c, h, w = x.shape
    B = int(np.prod(bs)) if bs else 1
    x = jnp.transpose(x.reshape(B, c, h, w), (0, 2, 3, 1))
    for i in (1, 2, 3, 4):
        w_ = params[f"conv{i}_w"]
        dn = jax.lax.conv_dimension_numbers(x.shape, w_.shape, ("NHWC", "HWIO", "NHWC"))
        x = jax.lax.conv_general_dilated(x, w_, (2, 2), "VALID", dimension_numbers=dn)
        x = jnp.maximum(x + params[f"conv{i}_b"], 0.0)
    feat = jnp.transpose(x, (0, 3, 1, 2)).reshape(B, -1)
    mu = feat @ params["fc_mu_w"] + params["fc_mu_b"]
    logsigma = feat @ params["fc_ls_w"] + params["fc_ls_b"]
    return mu.reshape(*bs, latent_size), logsigma.reshape(*bs, latent_size)


# ------------------------------------ main ------------------------------------
if __name__ == "__main__":
    latent_size = 32
    key = jax.random.PRNGKey(0)
    k_x, k_p = jax.random.split(key)
    # 64x64 input is required so that the conv stack produces 2*2*256 features.
    x = jax.random.normal(k_x, (2, IMG_CHANNELS, 64, 64), jnp.float32)
    params = init_params(k_p, latent_size)
    prepared = prepare_params(params, latent_size)

    fwd = jax.jit(encoder_forward, static_argnames=("latent_size", "deterministic"))
    mu, logsigma = fwd(x, prepared, latent_size=latent_size)
    (mu, logsigma) = jax.block_until_ready((mu, logsigma))

    assert mu.shape == (2, latent_size) and logsigma.shape == (2, latent_size)
    ref_mu, ref_ls = encoder_reference(x, params, latent_size)
    # bf16 operands with f32 accumulation: loosen atol slightly vs. the f32 reference.
    np.testing.assert_allclose(np.asarray(mu), np.asarray(ref_mu), rtol=2e-2, atol=5e-2)
    np.testing.assert_allclose(np.asarray(logsigma), np.asarray(ref_ls), rtol=2e-2, atol=5e-2)
    assert np.all(np.isfinite(np.asarray(mu))) and np.all(np.isfinite(np.asarray(logsigma)))
    print("KERNEL_OK")
</pallas_src>

<mosaic_0001>
module attributes {stable_mosaic.version = 11 : i64} {
  func.func @_linear_kernel(%arg0: i32, %arg1: memref<256x96xbf16, #tpu.memory_space<vmem>>, %arg2: memref<96x32xbf16, #tpu.memory_space<vmem>>, %arg3: memref<1x32xf32, #tpu.memory_space<vmem>>, %arg4: memref<256x32xbf16, #tpu.memory_space<vmem>>) attributes {dimension_semantics = [#tpu.dimension_semantics<parallel>], iteration_bounds = array<i64: 8>, scalar_prefetch = 0 : i64, scratch_operands = 0 : i64, tpu.core_type = #tpu.core_type<tc>, window_params = [{transform_indices = @transform_0, window_bounds = array<i64: 256, 96>}, {pipeline_mode = #tpu.pipeline_mode<synchronous>, transform_indices = @transform_1, window_bounds = array<i64: 96, 32>}, {pipeline_mode = #tpu.pipeline_mode<synchronous>, transform_indices = @transform_2, window_bounds = array<i64: 1, 32>}, {transform_indices = @transform_3, window_bounds = array<i64: 256, 32>}]} {
    %c0 = arith.constant 0 : index
    %c0_0 = arith.constant 0 : index
    %0 = vector.load %arg1[%c0, %c0_0] : memref<256x96xbf16, #tpu.memory_space<vmem>>, vector<256x96xbf16>
    %c0_1 = arith.constant 0 : index
    %c0_2 = arith.constant 0 : index
    %1 = vector.load %arg2[%c0_1, %c0_2] : memref<96x32xbf16, #tpu.memory_space<vmem>>, vector<96x32xbf16>
    %cst = arith.constant dense<0.000000e+00> : vector<256x32xf32>
    %2 = tpu.matmul %0, %1, %cst {dimension_numbers = #tpu.dot_dimension_numbers<[1], [0], [0], [1], [0, 0, 1, 1], [], []>} : vector<256x96xbf16>, vector<96x32xbf16>, vector<256x32xf32> -> vector<256x32xf32>
    %c0_3 = arith.constant 0 : index
    %c0_4 = arith.constant 0 : index
    %3 = vector.load %arg3[%c0_3, %c0_4] : memref<1x32xf32, #tpu.memory_space<vmem>>, vector<1x32xf32>
    %4 = vector.broadcast %3 : vector<1x32xf32> to vector<256x32xf32>
    %5 = arith.addf %2, %4 : vector<256x32xf32>
    %cst_5 = arith.constant 0.000000e+00 : f32
    %6 = vector.broadcast %cst_5 : f32 to vector<256x32xf32>
    %7 = arith.maximumf %5, %6 : vector<256x32xf32>
    %8 = arith.truncf %7 : vector<256x32xf32> to vector<256x32xbf16>
    %c0_6 = arith.constant 0 : index
    %c0_7 = arith.constant 0 : index
    %9 = vector.load %arg4[%c0_6, %c0_7] : memref<256x32xbf16, #tpu.memory_space<vmem>>, vector<256x32xbf16>
    tpu.vector_store %arg4[%c0_6, %c0_7], %8 {strides = array<i32>} : memref<256x32xbf16, #tpu.memory_space<vmem>>, vector<256x32xbf16>,
    return
  }
  func.func @transform_0(%arg0: i32) -> (i32, i32) {
    %c0_i32 = arith.constant 0 : i32
    %c0_i32_0 = arith.constant 0 : i32
    return %arg0, %c0_i32 : i32, i32
  }
  func.func @transform_1(%arg0: i32) -> (i32, i32) {
    %c0_i32 = arith.constant 0 : i32
    %c0_i32_0 = arith.constant 0 : i32
    %c0_i32_1 = arith.constant 0 : i32
    return %c0_i32, %c0_i32_0 : i32, i32
  }
  func.func @transform_2(%arg0: i32) -> (i32, i32) {
    %c0_i32 = arith.constant 0 : i32
    %c0_i32_0 = arith.constant 0 : i32
    %c0_i32_1 = arith.constant 0 : i32
    return %c0_i32, %c0_i32_0 : i32, i32
  }
  func.func @transform_3(%arg0: i32) -> (i32, i32) {
    %c0_i32 = arith.constant 0 : i32
    %c0_i32_0 = arith.constant 0 : i32
    return %arg0, %c0_i32 : i32, i32
  }
}

module attributes {stable_mosaic.version = 11 : i64} {
  func.func @_linear_kernel(%arg0: i32, %arg1: memref<256x512xbf16, #tpu.memory_space<vmem>>, %arg2: memref<512x64xbf16, #tpu.memory_space<vmem>>, %arg3: memref<1x64xf32, #tpu.memory_space<vmem>>, %arg4: memref<256x64xbf16, #tpu.memory_space<vmem>>) attributes {dimension_semantics = [#tpu.dimension_semantics<parallel>], iteration_bounds = array<i64: 2>, scalar_prefetch = 0 : i64, scratch_operands = 0 : i64, tpu.core_type = #tpu.core_type<tc>, window_params = [{transform_indices = @transform_0, window_bounds = array<i64: 256, 512>}, {pipeline_mode = #tpu.pipeline_mode<synchronous>, transform_indices = @transform_1, window_bounds = array<i64: 512, 64>}, {pipeline_mode = #tpu.pipeline_mode<synchronous>, transform_indices = @transform_2, window_bounds = array<i64: 1, 64>}, {transform_indices = @transform_3, window_bounds = array<i64: 256, 64>}]} {
    %c0 = arith.constant 0 : index
    %c0_0 = arith.constant 0 : index
    %0 = vector.load %arg1[%c0, %c0_0] : memref<256x512xbf16, #tpu.memory_space<vmem>>, vector<256x512xbf16>
    %c0_1 = arith.constant 0 : index
    %c0_2 = arith.constant 0 : index
    %1 = vector.load %arg2[%c0_1, %c0_2] : memref<512x64xbf16, #tpu.memory_space<vmem>>, vector<512x64xbf16>
    %cst = arith.constant dense<0.000000e+00> : vector<256x64xf32>
    %2 = tpu.matmul %0, %1, %cst {dimension_numbers = #tpu.dot_dimension_numbers<[1], [0], [0], [1], [0, 0, 1, 1], [], []>} : vector<256x512xbf16>, vector<512x64xbf16>, vector<256x64xf32> -> vector<256x64xf32>
    %c0_3 = arith.constant 0 : index
    %c0_4 = arith.constant 0 : index
    %3 = vector.load %arg3[%c0_3, %c0_4] : memref<1x64xf32, #tpu.memory_space<vmem>>, vector<1x64xf32>
    %4 = vector.broadcast %3 : vector<1x64xf32> to vector<256x64xf32>
    %5 = arith.addf %2, %4 : vector<256x64xf32>
    %cst_5 = arith.constant 0.000000e+00 : f32
    %6 = vector.broadcast %cst_5 : f32 to vector<256x64xf32>
    %7 = arith.maximumf %5, %6 : vector<256x64xf32>
    %8 = arith.truncf %7 : vector<256x64xf32> to vector<256x64xbf16>
    %c0_6 = arith.constant 0 : index
    %c0_7 = arith.constant 0 : index
    %9 = vector.load %arg4[%c0_6, %c0_7] : memref<256x64xbf16, #tpu.memory_space<vmem>>, vector<256x64xbf16>
    tpu.vector_store %arg4[%c0_6, %c0_7], %8 {strides = array<i32>} : memref<256x64xbf16, #tpu.memory_space<vmem>>, vector<256x64xbf16>,
    return
  }
  func.func @transform_0(%arg0: i32) -> (i32, i32) {
    %c0_i32 = arith.constant 0 : i32
    %c0_i32_0 = arith.constant 0 : i32
    return %arg0, %c0_i32 : i32, i32
  }
  func.func @transform_1(%arg0: i32) -> (i32, i32) {
    %c0_i32 = arith.constant 0 : i32
    %c0_i32_0 = arith.constant 0 : i32
    %c0_i32_1 = arith.constant 0 : i32
    return %c0_i32, %c0_i32_0 : i32, i32
  }
  func.func @transform_2(%arg0: i32) -> (i32, i32) {
    %c0_i32 = arith.constant 0 : i32
    %c0_i32_0 = arith.constant 0 : i32
    %c0_i32_1 = arith.constant 0 : i32
    return %c0_i32, %c0_i32_0 : i32, i32
  }
  func.func @transform_3(%arg0: i32) -> (i32, i32) {
    %c0_i32 = arith.constant 0 : i32
    %c0_i32_0 = arith.constant 0 : i32
    return %arg0, %c0_i32 : i32, i32
  }
}

module attributes {stable_mosaic.version = 11 : i64} {
  func.func @_linear_kernel(%arg0: i32, %arg1: memref<72x1024xbf16, #tpu.memory_space<vmem>>, %arg2: memref<1024x128xbf16, #tpu.memory_space<vmem>>, %arg3: memref<1x128xf32, #tpu.memory_space<vmem>>, %arg4: memref<72x128xbf16, #tpu.memory_space<vmem>>) attributes {dimension_semantics = [#tpu.dimension_semantics<parallel>], iteration_bounds = array<i64: 1>, scalar_prefetch = 0 : i64, scratch_operands = 0 : i64, tpu.core_type = #tpu.core_type<tc>, window_params = [{transform_indices = @transform_0, window_bounds = array<i64: 72, 1024>}, {pipeline_mode = #tpu.pipeline_mode<synchronous>, transform_indices = @transform_1, window_bounds = array<i64: 1024, 128>}, {pipeline_mode = #tpu.pipeline_mode<synchronous>, transform_indices = @transform_2, window_bounds = array<i64: 1, 128>}, {transform_indices = @transform_3, window_bounds = array<i64: 72, 128>}]} {
    %c0 = arith.constant 0 : index
    %c0_0 = arith.constant 0 : index
    %0 = vector.load %arg1[%c0, %c0_0] : memref<72x1024xbf16, #tpu.memory_space<vmem>>, vector<72x1024xbf16>
    %c0_1 = arith.constant 0 : index
    %c0_2 = arith.constant 0 : index
    %1 = vector.load %arg2[%c0_1, %c0_2] : memref<1024x128xbf16, #tpu.memory_space<vmem>>, vector<1024x128xbf16>
    %cst = arith.constant dense<0.000000e+00> : vector<72x128xf32>
    %2 = tpu.matmul %0, %1, %cst {dimension_numbers = #tpu.dot_dimension_numbers<[1], [0], [0], [1], [0, 0, 1, 1], [], []>} : vector<72x1024xbf16>, vector<1024x128xbf16>, vector<72x128xf32> -> vector<72x128xf32>
    %c0_3 = arith.constant 0 : index
    %c0_4 = arith.constant 0 : index
    %3 = vector.load %arg3[%c0_3, %c0_4] : memref<1x128xf32, #tpu.memory_space<vmem>>, vector<1x128xf32>
    %4 = vector.broadcast %3 : vector<1x128xf32> to vector<72x128xf32>
    %5 = arith.addf %2, %4 : vector<72x128xf32>
    %cst_5 = arith.constant 0.000000e+00 : f32
    %6 = vector.broadcast %cst_5 : f32 to vector<72x128xf32>
    %7 = arith.maximumf %5, %6 : vector<72x128xf32>
    %8 = arith.truncf %7 : vector<72x128xf32> to vector<72x128xbf16>
    %c0_6 = arith.constant 0 : index
    %c0_7 = arith.constant 0 : index
    %9 = vector.load %arg4[%c0_6, %c0_7] : memref<72x128xbf16, #tpu.memory_space<vmem>>, vector<72x128xbf16>
    tpu.vector_store %arg4[%c0_6, %c0_7], %8 {strides = array<i32>} : memref<72x128xbf16, #tpu.memory_space<vmem>>, vector<72x128xbf16>,
    return
  }
  func.func @transform_0(%arg0: i32) -> (i32, i32) {
    %c0_i32 = arith.constant 0 : i32
    %c0_i32_0 = arith.constant 0 : i32
    return %arg0, %c0_i32 : i32, i32
  }
  func.func @transform_1(%arg0: i32) -> (i32, i32) {
    %c0_i32 = arith.constant 0 : i32
    %c0_i32_0 = arith.constant 0 : i32
    %c0_i32_1 = arith.constant 0 : i32
    return %c0_i32, %c0_i32_0 : i32, i32
  }
  func.func @transform_2(%arg0: i32) -> (i32, i32) {
    %c0_i32 = arith.constant 0 : i32
    %c0_i32_0 = arith.constant 0 : i32
    %c0_i32_1 = arith.constant 0 : i32
    return %c0_i32, %c0_i32_0 : i32, i32
  }
  func.func @transform_3(%arg0: i32) -> (i32, i32) {
    %c0_i32 = arith.constant 0 : i32
    %c0_i32_0 = arith.constant 0 : i32
    return %arg0, %c0_i32 : i32, i32
  }
}

module attributes {stable_mosaic.version = 11 : i64} {
  func.func @_linear_kernel(%arg0: i32, %arg1: memref<8x2048xbf16, #tpu.memory_space<vmem>>, %arg2: memref<2048x256xbf16, #tpu.memory_space<vmem>>, %arg3: memref<1x256xf32, #tpu.memory_space<vmem>>, %arg4: memref<8x256xbf16, #tpu.memory_space<vmem>>) attributes {dimension_semantics = [#tpu.dimension_semantics<parallel>], iteration_bounds = array<i64: 1>, scalar_prefetch = 0 : i64, scratch_operands = 0 : i64, tpu.core_type = #tpu.core_type<tc>, window_params = [{transform_indices = @transform_0, window_bounds = array<i64: 8, 2048>}, {pipeline_mode = #tpu.pipeline_mode<synchronous>, transform_indices = @transform_1, window_bounds = array<i64: 2048, 256>}, {pipeline_mode = #tpu.pipeline_mode<synchronous>, transform_indices = @transform_2, window_bounds = array<i64: 1, 256>}, {transform_indices = @transform_3, window_bounds = array<i64: 8, 256>}]} {
    %c0 = arith.constant 0 : index
    %c0_0 = arith.constant 0 : index
    %0 = vector.load %arg1[%c0, %c0_0] : memref<8x2048xbf16, #tpu.memory_space<vmem>>, vector<8x2048xbf16>
    %c0_1 = arith.constant 0 : index
    %c0_2 = arith.constant 0 : index
    %1 = vector.load %arg2[%c0_1, %c0_2] : memref<2048x256xbf16, #tpu.memory_space<vmem>>, vector<2048x256xbf16>
    %cst = arith.constant dense<0.000000e+00> : vector<8x256xf32>
    %2 = tpu.matmul %0, %1, %cst {dimension_numbers = #tpu.dot_dimension_numbers<[1], [0], [0], [1], [0, 0, 1, 1], [], []>} : vector<8x2048xbf16>, vector<2048x256xbf16>, vector<8x256xf32> -> vector<8x256xf32>
    %c0_3 = arith.constant 0 : index
    %c0_4 = arith.constant 0 : index
    %3 = vector.load %arg3[%c0_3, %c0_4] : memref<1x256xf32, #tpu.memory_space<vmem>>, vector<1x256xf32>
    %4 = vector.broadcast %3 : vector<1x256xf32> to vector<8x256xf32>
    %5 = arith.addf %2, %4 : vector<8x256xf32>
    %cst_5 = arith.constant 0.000000e+00 : f32
    %6 = vector.broadcast %cst_5 : f32 to vector<8x256xf32>
    %7 = arith.maximumf %5, %6 : vector<8x256xf32>
    %8 = arith.truncf %7 : vector<8x256xf32> to vector<8x256xbf16>
    %c0_6 = arith.constant 0 : index
    %c0_7 = arith.constant 0 : index
    %9 = vector.load %arg4[%c0_6, %c0_7] : memref<8x256xbf16, #tpu.memory_space<vmem>>, vector<8x256xbf16>
    tpu.vector_store %arg4[%c0_6, %c0_7], %8 {strides = array<i32>} : memref<8x256xbf16, #tpu.memory_space<vmem>>, vector<8x256xbf16>,
    return
  }
  func.func @transform_0(%arg0: i32) -> (i32, i32) {
    %c0_i32 = arith.constant 0 : i32
    %c0_i32_0 = arith.constant 0 : i32
    return %arg0, %c0_i32 : i32, i32
  }
  func.func @transform_1(%arg0: i32) -> (i32, i32) {
    %c0_i32 = arith.constant 0 : i32
    %c0_i32_0 = arith.constant 0 : i32
    %c0_i32_1 = arith.constant 0 : i32
    return %c0_i32, %c0_i32_0 : i32, i32
  }
  func.func @transform_2(%arg0: i32) -> (i32, i32) {
    %c0_i32 = arith.constant 0 : i32
    %c0_i32_0 = arith.constant 0 : i32
    %c0_i32_1 = arith.constant 0 : i32
    return %c0_i32, %c0_i32_0 : i32, i32
  }
  func.func @transform_3(%arg0: i32) -> (i32, i32) {
    %c0_i32 = arith.constant 0 : i32
    %c0_i32_0 = arith.constant 0 : i32
    return %arg0, %c0_i32 : i32, i32
  }
}

module attributes {stable_mosaic.version = 11 : i64} {
  func.func @_linear_kernel(%arg0: i32, %arg1: memref<8x1024xbf16, #tpu.memory_space<vmem>>, %arg2: memref<1024x64xbf16, #tpu.memory_space<vmem>>, %arg3: memref<1x64xf32, #tpu.memory_space<vmem>>, %arg4: memref<8x64xf32, #tpu.memory_space<vmem>>) attributes {dimension_semantics = [#tpu.dimension_semantics<parallel>], iteration_bounds = array<i64: 1>, scalar_prefetch = 0 : i64, scratch_operands = 0 : i64, tpu.core_type = #tpu.core_type<tc>, window_params = [{transform_indices = @transform_0, window_bounds = array<i64: 8, 1024>}, {pipeline_mode = #tpu.pipeline_mode<synchronous>, transform_indices = @transform_1, window_bounds = array<i64: 1024, 64>}, {pipeline_mode = #tpu.pipeline_mode<synchronous>, transform_indices = @transform_2, window_bounds = array<i64: 1, 64>}, {transform_indices = @transform_3, window_bounds = array<i64: 8, 64>}]} {
    %c0 = arith.constant 0 : index
    %c0_0 = arith.constant 0 : index
    %0 = vector.load %arg1[%c0, %c0_0] : memref<8x1024xbf16, #tpu.memory_space<vmem>>, vector<8x1024xbf16>
    %c0_1 = arith.constant 0 : index
    %c0_2 = arith.constant 0 : index
    %1 = vector.load %arg2[%c0_1, %c0_2] : memref<1024x64xbf16, #tpu.memory_space<vmem>>, vector<1024x64xbf16>
    %cst = arith.constant dense<0.000000e+00> : vector<8x64xf32>
    %2 = tpu.matmul %0, %1, %cst {dimension_numbers = #tpu.dot_dimension_numbers<[1], [0], [0], [1], [0, 0, 1, 1], [], []>} : vector<8x1024xbf16>, vector<1024x64xbf16>, vector<8x64xf32> -> vector<8x64xf32>
    %c0_3 = arith.constant 0 : index
    %c0_4 = arith.constant 0 : index
    %3 = vector.load %arg3[%c0_3, %c0_4] : memref<1x64xf32, #tpu.memory_space<vmem>>, vector<1x64xf32>
    %4 = vector.broadcast %3 : vector<1x64xf32> to vector<8x64xf32>
    %5 = arith.addf %2, %4 : vector<8x64xf32>
    %c0_5 = arith.constant 0 : index
    %c0_6 = arith.constant 0 : index
    %6 = vector.load %arg4[%c0_5, %c0_6] : memref<8x64xf32, #tpu.memory_space<vmem>>, vector<8x64xf32>
    tpu.vector_store %arg4[%c0_5, %c0_6], %5 {strides = array<i32>} : memref<8x64xf32, #tpu.memory_space<vmem>>, vector<8x64xf32>,
    return
  }
  func.func @transform_0(%arg0: i32) -> (i32, i32) {
    %c0_i32 = arith.constant 0 : i32
    %c0_i32_0 = arith.constant 0 : i32
    return %arg0, %c0_i32 : i32, i32
  }
  func.func @transform_1(%arg0: i32) -> (i32, i32) {
    %c0_i32 = arith.constant 0 : i32
    %c0_i32_0 = arith.constant 0 : i32
    %c0_i32_1 = arith.constant 0 : i32
    return %c0_i32, %c0_i32_0 : i32, i32
  }
  func.func @transform_2(%arg0: i32) -> (i32, i32) {
    %c0_i32 = arith.constant 0 : i32
    %c0_i32_0 = arith.constant 0 : i32
    %c0_i32_1 = arith.constant 0 : i32
    return %c0_i32, %c0_i32_0 : i32, i32
  }
  func.func @transform_3(%arg0: i32) -> (i32, i32) {
    %c0_i32 = arith.constant 0 : i32
    %c0_i32_0 = arith.constant 0 : i32
    return %arg0, %c0_i32 : i32, i32
  }
}

</mosaic_0001>

<llo_original>
// kernel: encoder_forward.5
$region0: #{encoder_forward.5}
  #allocation0 [shape = 'u32[]', space=smem, size = 0x4, offset = 0x4, fixed_abs, tag = 'smem constant byte address 0x4 - core index']
  #allocation1 [shape = 'u32[144,128]{1,0:T(1,128)}', space=vmem, size = 0x12000, scoped, tag = 'internal scratch']
  %s0 = inlined_call_operand.vmem [shape: bf16[1922,96], index: 0, kind: input, shape index: {}]
  %s1 = inlined_call_operand.vmem [shape: bf16[96,32], index: 1, kind: input, shape index: {}]
  %s2 = inlined_call_operand.vmem [shape: f32[1,32], index: 2, kind: input, shape index: {}]
  %s3 = inlined_call_operand.vmem [shape: bf16[1922,32], index: 3, kind: output, shape index: {}]
  %s4 = sld [smem:[#allocation0]]
  $region89: #{encoder_forward.5} parent=0
    _
  %s6 = ssub.s32 1, %s4
  %s7 = scalar_select 0, %s6, %s4
  $region1: #{encoder_forward.5} parent=0
    #allocation2 [shape = 'u8[131072]{0}', space=vmem, size = 0x20000, scoped, tag = 'output window, operand 0']
    loop: start=0, step=1, limit=10
    $region2: #{encoder_forward.5} parent=1 // loop_pre_header
      _
    $region3: #{encoder_forward.5} parent=1 // loop_header
      %s9 = sphi 0, %s13
      %p10 = scmp.ge.s32.totalorder %s9, 10
      %s19 = sphi 0, %s21
      %s22 = sphi 0, %s19
      %s23 = sphi 0, %s22
      %s39 = sphi 0, %s23
      %s43 = sphi 0, %s43
      %s45 = sphi 0, %s43
      %s46 = sphi 0, %s45
      %s60 = sphi 0, %s46
      %s64 = sphi 0, %s64
      %s66 = sphi 0, %s64
      %s67 = sphi 0, %s66
      %s81 = sphi 0, %s67
      %s87 = sphi 0, %s89
      %s90 = sphi 0, %s87
      %s91 = sphi 0, %s90
      %s107 = sphi 0, %s91
    $region4: #{encoder_forward.5} parent=1 // loop_header_branch
      %12 = sbr.rel (%p10) target = $region8
    $region5: #{encoder_forward.5} parent=1 // loop_body
      %s14 = ssub.s32 %s9, 1
      %s15 = ssub.s32 %s9, 2
      %s16 = sadd.s32 %s9, 1
      %s17 = ssub.s32 %s9, %s16
      %p18 = scmp.eq.s32.totalorder %s17, 0
      %s20 = sadd.s32 %s19, 1
      %s21 = scalar_select %p18, %s19, %s20
      %p24 = pneg %p18
      %p25 = scmp.eq.s32.totalorder %s9, 7
      %p26 = por %p24, %p25
      %p27 = scmp.ne.s32.totalorder %s19, %s22
      %p28 = scmp.eq.s32.totalorder %s9, 0
      %p29 = por %p27, %p28
      %p30 = scmp.ne.s32.totalorder %s19, %s22
      %p31 = scmp.eq.s32.totalorder %s14, 7
      %p32 = por %p30, %p31
      %p33 = scmp.ne.s32.totalorder %s22, %s23
      %p34 = scmp.eq.s32.totalorder %s14, 0
      %p35 = por %p33, %p34
      %p36 = scmp.ne.s32.totalorder %s22, %s23
      %p37 = scmp.eq.s32.totalorder %s15, 7
      %p38 = por %p36, %p37
      %p40 = scmp.ne.s32.totalorder %s23, %s39
      %p41 = scmp.eq.s32.totalorder %s15, 0
      %p42 = por %p40, %p41
      %s44 = sadd.s32 %s43, 1
      %p47 = scmp.eq.s32.totalorder %s9, 7
      %p48 = scmp.ne.s32.totalorder %s43, %s45
      %p49 = scmp.eq.s32.totalorder %s9, 0
      %p50 = por %p48, %p49
      %p51 = scmp.ne.s32.totalorder %s43, %s45
      %p52 = scmp.eq.s32.totalorder %s14, 7
      %p53 = por %p51, %p52
      %p54 = scmp.ne.s32.totalorder %s45, %s46
      %p55 = scmp.eq.s32.totalorder %s14, 0
      %p56 = por %p54, %p55
      %p57 = scmp.ne.s32.totalorder %s45, %s46
      %p58 = scmp.eq.s32.totalorder %s15, 7
      %p59 = por %p57, %p58
      %p61 = scmp.ne.s32.totalorder %s46, %s60
      %p62 = scmp.eq.s32.totalorder %s15, 0
      %p63 = por %p61, %p62
      %s65 = sadd.s32 %s64, 1
      %p68 = scmp.eq.s32.totalorder %s9, 7
      %p69 = scmp.ne.s32.totalorder %s64, %s66
      %p70 = scmp.eq.s32.totalorder %s9, 0
      %p71 = por %p69, %p70
      %p72 = scmp.ne.s32.totalorder %s64, %s66
      %p73 = scmp.eq.s32.totalorder %s14, 7
      %p74 = por %p72, %p73
      %p75 = scmp.ne.s32.totalorder %s66, %s67
      %p76 = scmp.eq.s32.totalorder %s14, 0
      %p77 = por %p75, %p76
      %p78 = scmp.ne.s32.totalorder %s66, %s67
      %p79 = scmp.eq.s32.totalorder %s15, 7
      %p80 = por %p78, %p79
      %p82 = scmp.ne.s32.totalorder %s67, %s81
      %p83 = scmp.eq.s32.totalorder %s15, 0
      %p84 = por %p82, %p83
      %s85 = ssub.s32 %s9, %s16
      %p86 = scmp.eq.s32.totalorder %s85, 0
      %s88 = sadd.s32 %s87, 1
      %s89 = scalar_select %p86, %s87, %s88
      %p92 = pneg %p86
      %p93 = scmp.eq.s32.totalorder %s9, 7
      %p94 = por %p92, %p93
      %p95 = scmp.ne.s32.totalorder %s87, %s90
      %p96 = scmp.eq.s32.totalorder %s9, 0
      %p97 = por %p95, %p96
      %p98 = scmp.ne.s32.totalorder %s87, %s90
      %p99 = scmp.eq.s32.totalorder %s14, 7
      %p100 = por %p98, %p99
      %p101 = scmp.ne.s32.totalorder %s90, %s91
      %p102 = scmp.eq.s32.totalorder %s14, 0
      %p103 = por %p101, %p102
      %p104 = scmp.ne.s32.totalorder %s90, %s91
      %p105 = scmp.eq.s32.totalorder %s15, 7
      %p106 = por %p104, %p105
      %p108 = scmp.ne.s32.totalorder %s91, %s107
      %p109 = scmp.eq.s32.totalorder %s15, 0
      %p110 = por %p108, %p109
      %p111 = scmp.le.s32.totalorder 1, %s9
      %p112 = scmp.lt.s32.totalorder %s9, 9
      %p113 = pnand %p111, %p112
      %p114 = pneg %p113
      // Predicated region
      $region9: #{encoder_forward.5} parent=5 // pred_check
        _
      $region10: #{encoder_forward.5} parent=5 // pred_check_branch
        %116 = sbr.rel (%p113) target = $region12
      $region11: #{encoder_forward.5} parent=5 // pred_region
        %s117 = ssub.s32 %s9, 1
        // Predicated region
        $region13: #{encoder_forward.5} parent=11 // pred_check
          %p118 = pneg %p56
        $region14: #{encoder_forward.5} parent=11 // pred_check_branch
          %120 = sbr.rel (%p118) target = $region16
        $region15: #{encoder_forward.5} parent=11 // pred_region
          _
        $region16: #{encoder_forward.5} parent=11 // pred_fallthru
          _
        // Predicated region
        $region17: #{encoder_forward.5} parent=11 // pred_check
          %p121 = pneg %p77
        $region18: #{encoder_forward.5} parent=11 // pred_check_branch
          %123 = sbr.rel (%p121) target = $region20
        $region19: #{encoder_forward.5} parent=11 // pred_region
          _
        $region20: #{encoder_forward.5} parent=11 // pred_fallthru
          _
      $region12: #{encoder_forward.5} parent=5 // pred_fallthru
        _
      %p124 = scmp.lt.s32.totalorder %s9, 8
      // Predicated region
      $region21: #{encoder_forward.5} parent=5 // pred_check
        %p125 = pneg %p124
      $region22: #{encoder_forward.5} parent=5 // pred_check_branch
        %127 = sbr.rel (%p125) target = $region24
      $region23: #{encoder_forward.5} parent=5 // pred_region
        // Predicated region
        $region25: #{encoder_forward.5} parent=23 // pred_check
          %p128 = pneg %p29
        $region26: #{encoder_forward.5} parent=23 // pred_check_branch
          %130 = sbr.rel (%p128) target = $region28
        $region27: #{encoder_forward.5} parent=23 // pred_region
          %s131 = smul.u32 32, %s9
          %s132 = ssub.s32 241, %s131
          %p133 = scmp.lt.s32.totalorder %s132, 32
          %s134 = scalar_select %p133, %s132, 32
          %s135 = smul.u32 64, %s134
          %p136 = scmp.lt.s32.totalorder %s131, 240
          %s137 = scalar_select %p136, %s131, 240
          %s138 = smul.addr %s137, 4
          %s139 = scalar_lea.vmem %s0, %s138
          %s140 = smul.u32 32, %s9
          %s141 = ssub.s32 241, %s140
          %p142 = scmp.lt.s32.totalorder %s141, 32
          %s143 = scalar_select %p142, %s141, 32
          %s144 = smul.u32 64, %s143
        $region28: #{encoder_forward.5} parent=23 // pred_fallthru
          _
      $region24: #{encoder_forward.5} parent=5 // pred_fallthru
        _
      %p145 = scmp.le.s32.totalorder 1, %s9
      %p146 = scmp.lt.s32.totalorder %s9, 9
      %p147 = pnand %p145, %p146
      %p148 = pneg %p147
      // Predicated region
      $region29: #{encoder_forward.5} parent=5 // pred_check
        _
      $region30: #{encoder_forward.5} parent=5 // pred_check_branch
        %150 = sbr.rel (%p147) target = $region32
      $region31: #{encoder_forward.5} parent=5 // pred_region
        %s151 = ssub.s32 %s9, 1
        %s152 = smul.u32 32, %s14
        %s153 = ssub.s32 241, %s152
        %p154 = scmp.lt.s32.totalorder %s153, 32
        %s155 = scalar_select %p154, %s153, 32
        %s156 = smul.u32 64, %s155
        %p157 = scmp.lt.s32.totalorder %s152, 240
        %s158 = scalar_select %p157, %s152, 240
        %s159 = smul.addr %s158, 4
        %s160 = scalar_lea.vmem %s0, %s159
        %p161 = pneg %p35
        %p162 = pneg %p32
        %p163 = pneg %p56
        %p164 = pneg %p53
        %p165 = pneg %p77
        %p166 = pneg %p74
        %p167 = pneg %p103
        %p168 = pneg %p100
        %s169 = sand.u32 %s90, 1
        %s170 = sand.u32 %s90, 1
        %s171 = smul.addr %s170, 128
        %s172 = scalar_lea.vmem [#allocation2], %s171
        %s173 = smul.u32 32, %s14
        %s174 = ssub.s32 241, %s173
        %p175 = scmp.lt.s32.totalorder %s174, 32
        %s176 = scalar_select %p175, %s174, 32
        %s177 = smul.u32 64, %s176
        %p178 = scmp.lt.s32.totalorder %s173, 240
        %s179 = scalar_select %p178, %s173, 240
        %s180 = smul.addr %s179, 4
        %s181 = scalar_lea.vmem %s0, %s180
        %s182 = smul.u32 32, %s14
        %s183 = ssub.s32 241, %s182
        %p184 = scmp.lt.s32.totalorder %s183, 32
        %s185 = scalar_select %p184, %s183, 32
        %s186 = smul.u32 64, %s185
        %s187 = smul.u32 32, %s14
        %s188 = ssub.s32 241, %s187
        %p189 = scmp.lt.s32.totalorder %s188, 32
        %s190 = scalar_select %p189, %s188, 32
        %s191 = smul.u32 64, %s190
        %v193 = vld [vmem:[%s181] sm:$0xf]
        %v194 = vld [vmem:[%s181 + $0x4] sm:$0xf]
        %v195 = vld [vmem:[%s181 + $0x8] sm:$0xf]
        %v196 = vld [vmem:[%s181 + $0xc] sm:$0xf]
        %v197 = vld [vmem:[%s181 + $0x10] sm:$0xf]
        %v198 = vld [vmem:[%s181 + $0x14] sm:$0xf]
        %v199 = vld [vmem:[%s181 + $0x18] sm:$0xf]
        %v200 = vld [vmem:[%s181 + $0x1c] sm:$0xf]
        %v201 = vld [vmem:[%s181 + $0x20] sm:$0xf]
        %v202 = vld [vmem:[%s181 + $0x24] sm:$0xf]
        %v203 = vld [vmem:[%s181 + $0x28] sm:$0xf]
        %v204 = vld [vmem:[%s181 + $0x2c] sm:$0xf]
        %v205 = vld [vmem:[%s181 + $0x30] sm:$0xf]
        %v206 = vld [vmem:[%s181 + $0x34] sm:$0xf]
        %v207 = vld [vmem:[%s181 + $0x38] sm:$0xf]
        %v208 = vld [vmem:[%s181 + $0x3c] sm:$0xf]
        %v209 = vld [vmem:[%s181 + $0x40] sm:$0xf]
        %v210 = vld [vmem:[%s181 + $0x44] sm:$0xf]
        %v211 = vld [vmem:[%s181 + $0x48] sm:$0xf]
        %v212 = vld [vmem:[%s181 + $0x4c] sm:$0xf]
        %v213 = vld [vmem:[%s181 + $0x50] sm:$0xf]
        %v214 = vld [vmem:[%s181 + $0x54] sm:$0xf]
        %v215 = vld [vmem:[%s181 + $0x58] sm:$0xf]
        %v216 = vld [vmem:[%s181 + $0x5c] sm:$0xf]
        %v217 = vld [vmem:[%s181 + $0x60] sm:$0xf]
        %v218 = vld [vmem:[%s181 + $0x64] sm:$0xf]
        %v219 = vld [vmem:[%s181 + $0x68] sm:$0xf]
        %v220 = vld [vmem:[%s181 + $0x6c] sm:$0xf]
        %v221 = vld [vmem:[%s181 + $0x70] sm:$0xf]
        %v222 = vld [vmem:[%s181 + $0x74] sm:$0xf]
        %v223 = vld [vmem:[%s181 + $0x78] sm:$0xf]
        %v224 = vld [vmem:[%s181 + $0x7c] sm:$0xf]
        %v225 = vld [vmem:[%s1] sm:$0xf]
        %v226 = vld [vmem:[%s1 + $0x4] sm:$0xf]
        %v227 = vld [vmem:[%s1 + $0x8] sm:$0xf]
        %v228 = vld [vmem:[%s1 + $0xc] sm:$0xf]
        %v229 = vld [vmem:[%s1 + $0x10] sm:$0xf]
        %v230 = vld [vmem:[%s1 + $0x14] sm:$0xf]
        %v231 = vld [vmem:[%s1 + $0x18] sm:$0xf]
        %v232 = vld [vmem:[%s1 + $0x1c] sm:$0xf]
        %v233 = vld [vmem:[%s1 + $0x20] sm:$0xf]
        %v234 = vld [vmem:[%s1 + $0x24] sm:$0xf]
        %v235 = vld [vmem:[%s1 + $0x28] sm:$0xf]
        %v236 = vld [vmem:[%s1 + $0x2c] sm:$0xf]
        %v237 = vld [vmem:[%s2] sm:$0x1]
        %v239 = vlaneseq
        %v240 = vshrl.u32 %v239, 7
        %v241 = vsub.s32 0, %v240
        %v242 = vrot.slane %v237, %v241
        %v276 = vunpack.c.l.b16 %v193
        %v277 = vunpack.c.l.b16 %v194
        %v278 = vunpack.c.l.b16 %v195
        %v279 = vunpack.c.l.b16 %v196
        %v280 = vunpack.c.l.b16 %v197
        %v281 = vunpack.c.l.b16 %v198
        %v282 = vunpack.c.l.b16 %v199
        %v283 = vunpack.c.l.b16 %v200
        %v284 = vunpack.c.l.b16 %v201
        %v285 = vunpack.c.l.b16 %v202
        %v286 = vunpack.c.l.b16 %v203
        %v287 = vunpack.c.l.b16 %v204
        %v288 = vunpack.c.l.b16 %v205
        %v289 = vunpack.c.l.b16 %v206
        %v290 = vunpack.c.l.b16 %v207
        %v291 = vunpack.c.l.b16 %v208
        %v292 = vunpack.c.l.b16 %v209
        %v293 = vunpack.c.l.b16 %v210
        %v294 = vunpack.c.l.b16 %v211
        %v295 = vunpack.c.l.b16 %v212
        %v296 = vunpack.c.l.b16 %v213
        %v297 = vunpack.c.l.b16 %v214
        %v298 = vunpack.c.l.b16 %v215
        %v299 = vunpack.c.l.b16 %v216
        %v300 = vunpack.c.l.b16 %v217
        %v301 = vunpack.c.l.b16 %v218
        %v302 = vunpack.c.l.b16 %v219
        %v303 = vunpack.c.l.b16 %v220
        %v304 = vunpack.c.l.b16 %v221
        %v305 = vunpack.c.l.b16 %v222
        %v306 = vunpack.c.l.b16 %v223
        %v307 = vunpack.c.l.b16 %v224
        %v308 = vpack.c.b16 %v277, %v276
        %v309 = vpack.c.b16 %v279, %v278
        %v310 = vpack.c.b16 %v281, %v280
        %v311 = vpack.c.b16 %v283, %v282
        %v312 = vpack.c.b16 %v285, %v284
        %v313 = vpack.c.b16 %v287, %v286
        %v314 = vpack.c.b16 %v289, %v288
        %v315 = vpack.c.b16 %v291, %v290
        %v316 = vpack.c.b16 %v293, %v292
        %v317 = vpack.c.b16 %v295, %v294
        %v318 = vpack.c.b16 %v297, %v296
        %v319 = vpack.c.b16 %v299, %v298
        %v320 = vpack.c.b16 %v301, %v300
        %v321 = vpack.c.b16 %v303, %v302
        %v322 = vpack.c.b16 %v305, %v304
        %v323 = vpack.c.b16 %v307, %v306
        %v336 = vunpack.c.l.b16 %v225
        %v337 = vunpack.c.l.b16 %v226
        %v338 = vunpack.c.l.b16 %v227
        %v339 = vunpack.c.l.b16 %v228
        %v340 = vunpack.c.l.b16 %v229
        %v341 = vunpack.c.l.b16 %v230
        %v342 = vunpack.c.l.b16 %v231
        %v343 = vunpack.c.l.b16 %v232
        %v344 = vunpack.c.l.b16 %v233
        %v345 = vunpack.c.l.b16 %v234
        %v346 = vunpack.c.l.b16 %v235
        %v347 = vunpack.c.l.b16 %v236
        %v348 = vpack.c.b16 %v337, %v336
        %v349 = vpack.c.b16 %v339, %v338
        %v350 = vpack.c.b16 %v341, %v340
        %v351 = vpack.c.b16 %v343, %v342
        %v352 = vpack.c.b16 %v345, %v344
        %v353 = vpack.c.b16 %v347, %v346
        %vm360 = vcmask 785408
        %v362 = vsel %vm360, %v308, 0
        %v365 = vsel %vm360, %v309, 0
        %v368 = vsel %vm360, %v310, 0
        %v371 = vsel %vm360, %v311, 0
        %v374 = vsel %vm360, %v312, 0
        %v377 = vsel %vm360, %v313, 0
        %v380 = vsel %vm360, %v314, 0
        %v383 = vsel %vm360, %v315, 0
        %v386 = vsel %vm360, %v316, 0
        %v389 = vsel %vm360, %v317, 0
        %v392 = vsel %vm360, %v318, 0
        %v395 = vsel %vm360, %v319, 0
        %v398 = vsel %vm360, %v320, 0
        %v401 = vsel %vm360, %v321, 0
        %v404 = vsel %vm360, %v322, 0
        %v407 = vsel %vm360, %v323, 0
        %409 = vmatprep.subr.bf16.mxu0 0
        %410 = vmatpush1.bf16.msra.mxu0 %v348
        %411 = vmatprep.subr.bf16.mxu0 0
        %412 = vmatpush1.bf16.msra.mxu0 %v349
        %413 = vmatprep.subr.bf16.mxu0 0
        %414 = vmatpush1.bf16.msra.mxu0 %v350
        %415 = vmatprep.subr.bf16.mxu0 0
        %416 = vmatpush1.bf16.msra.mxu0 %v351
        %417 = vmatprep.subr.bf16.mxu0 0
        %418 = vmatpush1.bf16.msra.mxu0 %v352
        %419 = vmatprep.subr.bf16.mxu0 0
        %420 = vmatpush1.bf16.msra.mxu0 %v353
        %421 = vmatprep.subr.bf16.mxu0 0
        %422 = vmatpush1.bf16.msra.mxu0 0
        %423 = vmatprep.subr.bf16.mxu0 0
        %424 = vmatpush1.bf16.msra.mxu0 0
        %425 = vmatprep.subr.bf16.mxu0 0
        %426 = vmatpush1.bf16.msra.mxu0 0
        %427 = vmatprep.subr.bf16.mxu0 0
        %428 = vmatpush1.bf16.msra.mxu0 0
        %429 = vmatprep.subr.bf16.mxu0 0
        %430 = vmatpush1.bf16.msra.mxu0 0
        %431 = vmatprep.subr.bf16.mxu0 0
        %432 = vmatpush1.bf16.msra.mxu0 0
        %433 = vmatprep.subr.bf16.mxu0 0
        %434 = vmatpush1.bf16.msra.mxu0 0
        %435 = vmatprep.subr.bf16.mxu0 0
        %436 = vmatpush1.bf16.msra.mxu0 0
        %437 = vmatprep.subr.bf16.mxu0 0
        %438 = vmatpush1.bf16.msra.mxu0 0
        %439 = vmatprep.subr.bf16.mxu0 0
        %440 = vmatpush1.bf16.msra.mxu0 0
        %441 = vmatprep.mubr.bf16.mxu0 0
        %442 = vmatmul.mubr.bf16.gmra.mrb[0].mxu0 %v362
        %v443 = vpop.f32.mrb[0].mxu0
        %v444 = vadd.f32 %v242, %v443
        %v445 = vpop.f32.mrb[0].mxu0
        %v446 = vpop.f32.mrb[0].mxu0
        %v447 = vadd.f32 %v242, %v446
        %v448 = vpop.f32.mrb[0].mxu0
        %449 = vmatprep.mubr.bf16.mxu0 0
        %450 = vmatmul.mubr.bf16.gmra.mrb[0].mxu0 %v365
        %v451 = vpop.f32.mrb[0].mxu0
        %v452 = vadd.f32 %v242, %v451
        %v453 = vpop.f32.mrb[0].mxu0
        %v454 = vpop.f32.mrb[0].mxu0
        %v455 = vadd.f32 %v242, %v454
        %v456 = vpop.f32.mrb[0].mxu0
        %457 = vmatprep.mubr.bf16.mxu0 0
        %458 = vmatmul.mubr.bf16.gmra.mrb[0].mxu0 %v368
        %v459 = vpop.f32.mrb[0].mxu0
        %v460 = vadd.f32 %v242, %v459
        %v461 = vpop.f32.mrb[0].mxu0
        %v462 = vpop.f32.mrb[0].mxu0
        %v463 = vadd.f32 %v242, %v462
        %v464 = vpop.f32.mrb[0].mxu0
        %465 = vmatprep.mubr.bf16.mxu0 0
        %466 = vmatmul.mubr.bf16.gmra.mrb[0].mxu0 %v371
        %v467 = vpop.f32.mrb[0].mxu0
        %v468 = vadd.f32 %v242, %v467
        %v469 = vpop.f32.mrb[0].mxu0
        %v470 = vpop.f32.mrb[0].mxu0
        %v471 = vadd.f32 %v242, %v470
        %v472 = vpop.f32.mrb[0].mxu0
        %473 = vmatprep.mubr.bf16.mxu0 0
        %474 = vmatmul.mubr.bf16.gmra.mrb[0].mxu0 %v374
        %v475 = vpop.f32.mrb[0].mxu0
        %v476 = vadd.f32 %v242, %v475
        %v477 = vpop.f32.mrb[0].mxu0
        %v478 = vpop.f32.mrb[0].mxu0
        %v479 = vadd.f32 %v242, %v478
        %v480 = vpop.f32.mrb[0].mxu0
        %481 = vmatprep.mubr.bf16.mxu0 0
        %482 = vmatmul.mubr.bf16.gmra.mrb[0].mxu0 %v377
        %v483 = vpop.f32.mrb[0].mxu0
        %v484 = vadd.f32 %v242, %v483
        %v485 = vpop.f32.mrb[0].mxu0
        %v486 = vpop.f32.mrb[0].mxu0
        %v487 = vadd.f32 %v242, %v486
        %v488 = vpop.f32.mrb[0].mxu0
        %489 = vmatprep.mubr.bf16.mxu0 0
        %490 = vmatmul.mubr.bf16.gmra.mrb[0].mxu0 %v380
        %v491 = vpop.f32.mrb[0].mxu0
        %v492 = vadd.f32 %v242, %v491
        %v493 = vpop.f32.mrb[0].mxu0
        %v494 = vpop.f32.mrb[0].mxu0
        %v495 = vadd.f32 %v242, %v494
        %v496 = vpop.f32.mrb[0].mxu0
        %497 = vmatprep.mubr.bf16.mxu0 0
        %498 = vmatmul.mubr.bf16.gmra.mrb[0].mxu0 %v383
        %v499 = vpop.f32.mrb[0].mxu0
        %v500 = vadd.f32 %v242, %v499
        %v501 = vpop.f32.mrb[0].mxu0
        %v502 = vpop.f32.mrb[0].mxu0
        %v503 = vadd.f32 %v242, %v502
        %v504 = vpop.f32.mrb[0].mxu0
        %505 = vmatprep.mubr.bf16.mxu0 0
        %506 = vmatmul.mubr.bf16.gmra.mrb[0].mxu0 %v386
        %v507 = vpop.f32.mrb[0].mxu0
        %v508 = vadd.f32 %v242, %v507
        %v509 = vpop.f32.mrb[0].mxu0
        %v510 = vpop.f32.mrb[0].mxu0
        %v511 = vadd.f32 %v242, %v510
        %v512 = vpop.f32.mrb[0].mxu0
        %513 = vmatprep.mubr.bf16.mxu0 0
        %514 = vmatmul.mubr.bf16.gmra.mrb[0].mxu0 %v389
        %v515 = vpop.f32.mrb[0].mxu0
        %v516 = vadd.f32 %v242, %v515
        %v517 = vpop.f32.mrb[0].mxu0
        %v518 = vpop.f32.mrb[0].mxu0
        %v519 = vadd.f32 %v242, %v518
        %v520 = vpop.f32.mrb[0].mxu0
        %521 = vmatprep.mubr.bf16.mxu0 0
        %522 = vmatmul.mubr.bf16.gmra.mrb[0].mxu0 %v392
        %v523 = vpop.f32.mrb[0].mxu0
        %v524 = vadd.f32 %v242, %v523
        %v525 = vpop.f32.mrb[0].mxu0
        %v526 = vpop.f32.mrb[0].mxu0
        %v527 = vadd.f32 %v242, %v526
        %v528 = vpop.f32.mrb[0].mxu0
        %529 = vmatprep.mubr.bf16.mxu0 0
        %530 = vmatmul.mubr.bf16.gmra.mrb[0].mxu0 %v395
        %v531 = vpop.f32.mrb[0].mxu0
        %v532 = vadd.f32 %v242, %v531
        %v533 = vpop.f32.mrb[0].mxu0
        %v534 = vpop.f32.mrb[0].mxu0
        %v535 = vadd.f32 %v242, %v534
        %v536 = vpop.f32.mrb[0].mxu0
        %537 = vmatprep.mubr.bf16.mxu0 0
        %538 = vmatmul.mubr.bf16.gmra.mrb[0].mxu0 %v398
        %v539 = vpop.f32.mrb[0].mxu0
        %v540 = vadd.f32 %v242, %v539
        %v541 = vpop.f32.mrb[0].mxu0
        %v542 = vpop.f32.mrb[0].mxu0
        %v543 = vadd.f32 %v242, %v542
        %v544 = vpop.f32.mrb[0].mxu0
        %545 = vmatprep.mubr.bf16.mxu0 0
        %546 = vmatmul.mubr.bf16.gmra.mrb[0].mxu0 %v401
        %v547 = vpop.f32.mrb[0].mxu0
        %v548 = vadd.f32 %v242, %v547
        %v549 = vpop.f32.mrb[0].mxu0
        %v550 = vpop.f32.mrb[0].mxu0
        %v551 = vadd.f32 %v242, %v550
        %v552 = vpop.f32.mrb[0].mxu0
        %553 = vmatprep.mubr.bf16.mxu0 0
        %554 = vmatmul.mubr.bf16.gmra.mrb[0].mxu0 %v404
        %v555 = vpop.f32.mrb[0].mxu0
        %v556 = vadd.f32 %v242, %v555
        %v557 = vpop.f32.mrb[0].mxu0
        %v558 = vpop.f32.mrb[0].mxu0
        %v559 = vadd.f32 %v242, %v558
        %v560 = vpop.f32.mrb[0].mxu0
        %561 = vmatprep.mubr.bf16.mxu0 0
        %562 = vmatmul.mubr.bf16.gmra.mrb[0].mxu0 %v407
        %v563 = vpop.f32.mrb[0].mxu0
        %v564 = vadd.f32 %v242, %v563
        %v565 = vpop.f32.mrb[0].mxu0
        %v566 = vpop.f32.mrb[0].mxu0
        %v567 = vadd.f32 %v242, %v566
        %v568 = vpop.f32.mrb[0].mxu0
        %569 = vdwg.mxu0
        %v570 = vmax.f32 %v444, 0.0
        %v571 = vmax.f32 %v447, 0.0
        %v572 = vmax.f32 %v452, 0.0
        %v573 = vmax.f32 %v455, 0.0
        %v574 = vmax.f32 %v460, 0.0
        %v575 = vmax.f32 %v463, 0.0
        %v576 = vmax.f32 %v468, 0.0
        %v577 = vmax.f32 %v471, 0.0
        %v578 = vmax.f32 %v476, 0.0
        %v579 = vmax.f32 %v479, 0.0
        %v580 = vmax.f32 %v484, 0.0
        %v581 = vmax.f32 %v487, 0.0
        %v582 = vmax.f32 %v492, 0.0
        %v583 = vmax.f32 %v495, 0.0
        %v584 = vmax.f32 %v500, 0.0
        %v585 = vmax.f32 %v503, 0.0
        %v586 = vmax.f32 %v508, 0.0
        %v587 = vmax.f32 %v511, 0.0
        %v588 = vmax.f32 %v516, 0.0
        %v589 = vmax.f32 %v519, 0.0
        %v590 = vmax.f32 %v524, 0.0
        %v591 = vmax.f32 %v527, 0.0
        %v592 = vmax.f32 %v532, 0.0
        %v593 = vmax.f32 %v535, 0.0
        %v594 = vmax.f32 %v540, 0.0
        %v595 = vmax.f32 %v543, 0.0
        %v596 = vmax.f32 %v548, 0.0
        %v597 = vmax.f32 %v551, 0.0
        %v598 = vmax.f32 %v556, 0.0
        %v599 = vmax.f32 %v559, 0.0
        %v600 = vmax.f32 %v564, 0.0
        %v601 = vmax.f32 %v567, 0.0
        %v602 = vpack.c.bf16 %v571, %v570
        %v603 = vpack.c.bf16 %v573, %v572
        %v604 = vpack.c.bf16 %v575, %v574
        %v605 = vpack.c.bf16 %v577, %v576
        %v606 = vpack.c.bf16 %v579, %v578
        %v607 = vpack.c.bf16 %v581, %v580
        %v608 = vpack.c.bf16 %v583, %v582
        %v609 = vpack.c.bf16 %v585, %v584
        %v610 = vpack.c.bf16 %v587, %v586
        %v611 = vpack.c.bf16 %v589, %v588
        %v612 = vpack.c.bf16 %v591, %v590
        %v613 = vpack.c.bf16 %v593, %v592
        %v614 = vpack.c.bf16 %v595, %v594
        %v615 = vpack.c.bf16 %v597, %v596
        %v616 = vpack.c.bf16 %v599, %v598
        %v617 = vpack.c.bf16 %v601, %v600
        %v634 = vunpack.c.l.b16 %v602
        %v635 = vunpack.c.h.b16 %v602
        %v636 = vunpack.c.l.b16 %v603
        %v637 = vunpack.c.h.b16 %v603
        %v638 = vunpack.c.l.b16 %v604
        %v639 = vunpack.c.h.b16 %v604
        %v640 = vunpack.c.l.b16 %v605
        %v641 = vunpack.c.h.b16 %v605
        %v642 = vunpack.c.l.b16 %v606
        %v643 = vunpack.c.h.b16 %v606
        %v644 = vunpack.c.l.b16 %v607
        %v645 = vunpack.c.h.b16 %v607
        %v646 = vunpack.c.l.b16 %v608
        %v647 = vunpack.c.h.b16 %v608
        %v648 = vunpack.c.l.b16 %v609
        %v649 = vunpack.c.h.b16 %v609
        %v650 = vunpack.c.l.b16 %v610
        %v651 = vunpack.c.h.b16 %v610
        %v652 = vunpack.c.l.b16 %v611
        %v653 = vunpack.c.h.b16 %v611
        %v654 = vunpack.c.l.b16 %v612
        %v655 = vunpack.c.h.b16 %v612
        %v656 = vunpack.c.l.b16 %v613
        %v657 = vunpack.c.h.b16 %v613
        %v658 = vunpack.c.l.b16 %v614
        %v659 = vunpack.c.h.b16 %v614
        %v660 = vunpack.c.l.b16 %v615
        %v661 = vunpack.c.h.b16 %v615
        %v662 = vunpack.c.l.b16 %v616
        %v663 = vunpack.c.h.b16 %v616
        %v664 = vunpack.c.l.b16 %v617
        %v665 = vunpack.c.h.b16 %v617
        %v666 = vpack.c.b16 %v634, %v634
        %v667 = vpack.c.b16 %v635, %v635
        %v668 = vpack.c.b16 %v636, %v636
        %v669 = vpack.c.b16 %v637, %v637
        %v670 = vpack.c.b16 %v638, %v638
        %v671 = vpack.c.b16 %v639, %v639
        %v672 = vpack.c.b16 %v640, %v640
        %v673 = vpack.c.b16 %v641, %v641
        %v674 = vpack.c.b16 %v642, %v642
        %v675 = vpack.c.b16 %v643, %v643
        %v676 = vpack.c.b16 %v644, %v644
        %v677 = vpack.c.b16 %v645, %v645
        %v678 = vpack.c.b16 %v646, %v646
        %v679 = vpack.c.b16 %v647, %v647
        %v680 = vpack.c.b16 %v648, %v648
        %v681 = vpack.c.b16 %v649, %v649
        %v682 = vpack.c.b16 %v650, %v650
        %v683 = vpack.c.b16 %v651, %v651
        %v684 = vpack.c.b16 %v652, %v652
        %v685 = vpack.c.b16 %v653, %v653
        %v686 = vpack.c.b16 %v654, %v654
        %v687 = vpack.c.b16 %v655, %v655
        %v688 = vpack.c.b16 %v656, %v656
        %v689 = vpack.c.b16 %v657, %v657
        %v690 = vpack.c.b16 %v658, %v658
        %v691 = vpack.c.b16 %v659, %v659
        %v692 = vpack.c.b16 %v660, %v660
        %v693 = vpack.c.b16 %v661, %v661
        %v694 = vpack.c.b16 %v662, %v662
        %v695 = vpack.c.b16 %v663, %v663
        %v696 = vpack.c.b16 %v664, %v664
        %v697 = vpack.c.b16 %v665, %v665
        %vm730 = vcmask 257024
        %731 = vst.msk [vmem:[%s172] sm:$0xf] %vm730, %v666
        %732 = vst.msk [vmem:[%s172 + $0x4] sm:$0xf] %vm730, %v667
        %733 = vst.msk [vmem:[%s172 + $0x8] sm:$0xf] %vm730, %v668
        %734 = vst.msk [vmem:[%s172 + $0xc] sm:$0xf] %vm730, %v669
        %735 = vst.msk [vmem:[%s172 + $0x10] sm:$0xf] %vm730, %v670
        %736 = vst.msk [vmem:[%s172 + $0x14] sm:$0xf] %vm730, %v671
        %737 = vst.msk [vmem:[%s172 + $0x18] sm:$0xf] %vm730, %v672
        %738 = vst.msk [vmem:[%s172 + $0x1c] sm:$0xf] %vm730, %v673
        %739 = vst.msk [vmem:[%s172 + $0x20] sm:$0xf] %vm730, %v674
        %740 = vst.msk [vmem:[%s172 + $0x24] sm:$0xf] %vm730, %v675
        %741 = vst.msk [vmem:[%s172 + $0x28] sm:$0xf] %vm730, %v676
        %742 = vst.msk [vmem:[%s172 + $0x2c] sm:$0xf] %vm730, %v677
        %743 = vst.msk [vmem:[%s172 + $0x30] sm:$0xf] %vm730, %v678
        %744 = vst.msk [vmem:[%s172 + $0x34] sm:$0xf] %vm730, %v679
        %745 = vst.msk [vmem:[%s172 + $0x38] sm:$0xf] %vm730, %v680
        %746 = vst.msk [vmem:[%s172 + $0x3c] sm:$0xf] %vm730, %v681
        %747 = vst.msk [vmem:[%s172 + $0x40] sm:$0xf] %vm730, %v682
        %748 = vst.msk [vmem:[%s172 + $0x44] sm:$0xf] %vm730, %v683
        %749 = vst.msk [vmem:[%s172 + $0x48] sm:$0xf] %vm730, %v684
        %750 = vst.msk [vmem:[%s172 + $0x4c] sm:$0xf] %vm730, %v685
        %751 = vst.msk [vmem:[%s172 + $0x50] sm:$0xf] %vm730, %v686
        %752 = vst.msk [vmem:[%s172 + $0x54] sm:$0xf] %vm730, %v687
        %753 = vst.msk [vmem:[%s172 + $0x58] sm:$0xf] %vm730, %v688
        %754 = vst.msk [vmem:[%s172 + $0x5c] sm:$0xf] %vm730, %v689
        %755 = vst.msk [vmem:[%s172 + $0x60] sm:$0xf] %vm730, %v690
        %756 = vst.msk [vmem:[%s172 + $0x64] sm:$0xf] %vm730, %v691
        %757 = vst.msk [vmem:[%s172 + $0x68] sm:$0xf] %vm730, %v692
        %758 = vst.msk [vmem:[%s172 + $0x6c] sm:$0xf] %vm730, %v693
        %759 = vst.msk [vmem:[%s172 + $0x70] sm:$0xf] %vm730, %v694
        %760 = vst.msk [vmem:[%s172 + $0x74] sm:$0xf] %vm730, %v695
        %761 = vst.msk [vmem:[%s172 + $0x78] sm:$0xf] %vm730, %v696
        %762 = vst.msk [vmem:[%s172 + $0x7c] sm:$0xf] %vm730, %v697
        %s763 = sand.u32 %s90, 1
        %s764 = sand.u32 %s90, 1
        %s765 = smul.addr %s764, 128
        %s766 = scalar_lea.vmem [#allocation2], %s765
        // Predicated region
        $region33: #{encoder_forward.5} parent=31 // pred_check
          %p767 = pneg %p100
        $region34: #{encoder_forward.5} parent=31 // pred_check_branch
          %769 = sbr.rel (%p767) target = $region36
        $region35: #{encoder_forward.5} parent=31 // pred_region
          %s770 = smul.u32 32, %s14
          %s771 = ssub.s32 241, %s770
          %p772 = scmp.lt.s32.totalorder %s771, 32
          %s773 = scalar_select %p772, %s771, 32
          %s774 = smul.u32 64, %s773
          %p775 = scmp.ne.s32.totalorder 0, %s774
          %s776 = smul.addr %s770, 4
          %s777 = scalar_lea.vmem %s3, %s776
          // Predicated region
          $region37: #{encoder_forward.5} parent=35 // pred_check
            %p778 = pneg %p775
          $region38: #{encoder_forward.5} parent=35 // pred_check_branch
            %780 = sbr.rel (%p778) target = $region40
          $region39: #{encoder_forward.5} parent=35 // pred_region
            // Predicated region
            $region41: #{encoder_forward.5} parent=39 // pred_check
              _
            $region42: #{encoder_forward.5} parent=39 // pred_check_branch
              %782 = sbr.rel target = $region44
            $region43: #{encoder_forward.5} parent=39 // pred_region
              // Predicated region
              $region63: #{encoder_forward.5} parent=43 // pred_check
                _
              $region64: #{encoder_forward.5} parent=43 // pred_check_branch
                %893 = sbr.rel (0) target = $region66
              $region65: #{encoder_forward.5} parent=43 // pred_region
                %s895 = sshrl.u32 %s773, 5
                // While loop
                $region67: #{encoder_forward.5} parent=65 // loop_pre_header
                  _
                $region68: #{encoder_forward.5} parent=65 // loop_header
                  %s897 = sphi 0, %s899
                  %p898 = scmp.ge.s32.totalorder %s897, %s895
                  %s902 = sphi 0, %s971
                  %s903 = sphi %s766, %s974
                  %s904 = sphi %s777, %s975
                $region69: #{encoder_forward.5} parent=65 // loop_header_branch
                  %901 = sbr.rel (%p898) target = $region73
                $region70: #{encoder_forward.5} parent=65 // loop_body
                  %v905 = vld [vmem:[%s903] sm:$0xf]
                  %906 = vst [vmem:[%s904] sm:$0xf] %v905
                  %v907 = vld [vmem:[%s903 + $0x4] sm:$0xf]
                  %908 = vst [vmem:[%s904 + $0x4] sm:$0xf] %v907
                  %v909 = vld [vmem:[%s903 + $0x8] sm:$0xf]
                  %910 = vst [vmem:[%s904 + $0x8] sm:$0xf] %v909
                  %v911 = vld [vmem:[%s903 + $0xc] sm:$0xf]
                  %912 = vst [vmem:[%s904 + $0xc] sm:$0xf] %v911
                  %v913 = vld [vmem:[%s903 + $0x10] sm:$0xf]
                  %914 = vst [vmem:[%s904 + $0x10] sm:$0xf] %v913
                  %v915 = vld [vmem:[%s903 + $0x14] sm:$0xf]
                  %916 = vst [vmem:[%s904 + $0x14] sm:$0xf] %v915
                  %v917 = vld [vmem:[%s903 + $0x18] sm:$0xf]
                  %918 = vst [vmem:[%s904 + $0x18] sm:$0xf] %v917
                  %v919 = vld [vmem:[%s903 + $0x1c] sm:$0xf]
                  %920 = vst [vmem:[%s904 + $0x1c] sm:$0xf] %v919
                  %v921 = vld [vmem:[%s903 + $0x20] sm:$0xf]
                  %922 = vst [vmem:[%s904 + $0x20] sm:$0xf] %v921
                  %v923 = vld [vmem:[%s903 + $0x24] sm:$0xf]
                  %924 = vst [vmem:[%s904 + $0x24] sm:$0xf] %v923
                  %v925 = vld [vmem:[%s903 + $0x28] sm:$0xf]
                  %926 = vst [vmem:[%s904 + $0x28] sm:$0xf] %v925
                  %v927 = vld [vmem:[%s903 + $0x2c] sm:$0xf]
                  %928 = vst [vmem:[%s904 + $0x2c] sm:$0xf] %v927
                  %v929 = vld [vmem:[%s903 + $0x30] sm:$0xf]
                  %930 = vst [vmem:[%s904 + $0x30] sm:$0xf] %v929
                  %v931 = vld [vmem:[%s903 + $0x34] sm:$0xf]
                  %932 = vst [vmem:[%s904 + $0x34] sm:$0xf] %v931
                  %v933 = vld [vmem:[%s903 + $0x38] sm:$0xf]
                  %934 = vst [vmem:[%s904 + $0x38] sm:$0xf] %v933
                  %v935 = vld [vmem:[%s903 + $0x3c] sm:$0xf]
                  %936 = vst [vmem:[%s904 + $0x3c] sm:$0xf] %v935
                  %v937 = vld [vmem:[%s903 + $0x40] sm:$0xf]
                  %938 = vst [vmem:[%s904 + $0x40] sm:$0xf] %v937
                  %v939 = vld [vmem:[%s903 + $0x44] sm:$0xf]
                  %940 = vst [vmem:[%s904 + $0x44] sm:$0xf] %v939
                  %v941 = vld [vmem:[%s903 + $0x48] sm:$0xf]
                  %942 = vst [vmem:[%s904 + $0x48] sm:$0xf] %v941
                  %v943 = vld [vmem:[%s903 + $0x4c] sm:$0xf]
                  %944 = vst [vmem:[%s904 + $0x4c] sm:$0xf] %v943
                  %v945 = vld [vmem:[%s903 + $0x50] sm:$0xf]
                  %946 = vst [vmem:[%s904 + $0x50] sm:$0xf] %v945
                  %v947 = vld [vmem:[%s903 + $0x54] sm:$0xf]
                  %948 = vst [vmem:[%s904 + $0x54] sm:$0xf] %v947
                  %v949 = vld [vmem:[%s903 + $0x58] sm:$0xf]
                  %950 = vst [vmem:[%s904 + $0x58] sm:$0xf] %v949
                  %v951 = vld [vmem:[%s903 + $0x5c] sm:$0xf]
                  %952 = vst [vmem:[%s904 + $0x5c] sm:$0xf] %v951
                  %v953 = vld [vmem:[%s903 + $0x60] sm:$0xf]
                  %954 = vst [vmem:[%s904 + $0x60] sm:$0xf] %v953
                  %v955 = vld [vmem:[%s903 + $0x64] sm:$0xf]
                  %956 = vst [vmem:[%s904 + $0x64] sm:$0xf] %v955
                  %v957 = vld [vmem:[%s903 + $0x68] sm:$0xf]
                  %958 = vst [vmem:[%s904 + $0x68] sm:$0xf] %v957
                  %v959 = vld [vmem:[%s903 + $0x6c] sm:$0xf]
                  %960 = vst [vmem:[%s904 + $0x6c] sm:$0xf] %v959
                  %v961 = vld [vmem:[%s903 + $0x70] sm:$0xf]
                  %962 = vst [vmem:[%s904 + $0x70] sm:$0xf] %v961
                  %v963 = vld [vmem:[%s903 + $0x74] sm:$0xf]
                  %964 = vst [vmem:[%s904 + $0x74] sm:$0xf] %v963
                  %v965 = vld [vmem:[%s903 + $0x78] sm:$0xf]
                  %966 = vst [vmem:[%s904 + $0x78] sm:$0xf] %v965
                  %v967 = vld [vmem:[%s903 + $0x7c] sm:$0xf]
                  %968 = vst [vmem:[%s904 + $0x7c] sm:$0xf] %v967
                  %s969 = sadd.s32 1, %s902
                  %p970 = scmp.ge.s32.totalorder %s969, %s895
                  %s971 = scalar_select %p970, 0, %s969
                  %s972 = smul.u32 %s971, 128
                  %s973 = smul.u32 %s971, 128
                  %s974 = scalar_lea.vmem %s766, %s972 [#allocation2]
                  %s975 = scalar_lea.vmem %s777, %s973
                $region71: #{encoder_forward.5} parent=65 // loop_footer
                  %s899 = sadd.s32 %s897, 1
                $region72: #{encoder_forward.5} parent=65 // loop_footer_branch
                  %896 = sbr.rel target = $region68
                $region73: #{encoder_forward.5} parent=65 // loop_exit
                  _
                %s976 = sshrl.u32 %s773, 5
                %s977 = sand.u32 %s773, 31
                %s978 = smul.u32 %s976, 32
                %s979 = smul.u32 4, %s978
                %s980 = scalar_lea.vmem %s766, %s979 [#allocation2]
                %s981 = smul.u32 4, %s978
                %s982 = scalar_lea.vmem %s777, %s981
                // While loop
                $region74: #{encoder_forward.5} parent=65 // loop_pre_header
                  _
                $region75: #{encoder_forward.5} parent=65 // loop_header
                  %s984 = sphi 0, %s986
                  %p985 = scmp.ge.s32.totalorder %s984, %s977
                  %s989 = sphi 0, %s996
                  %s990 = sphi %s980, %s999
                  %s991 = sphi %s982, %s1000
                $region76: #{encoder_forward.5} parent=65 // loop_header_branch
                  %988 = sbr.rel (%p985) target = $region80
                $region77: #{encoder_forward.5} parent=65 // loop_body
                  %v992 = vld [vmem:[%s990] sm:$0xf]
                  %993 = vst [vmem:[%s991] sm:$0xf] %v992
                  %s994 = sadd.s32 1, %s989
                  %p995 = scmp.ge.s32.totalorder %s994, %s977
                  %s996 = scalar_select %p995, 0, %s994
                  %s997 = smul.u32 %s996, 4
                  %s998 = smul.u32 %s996, 4
                  %s999 = scalar_lea.vmem %s980, %s997 [#allocation2]
                  %s1000 = scalar_lea.vmem %s982, %s998
                $region78: #{encoder_forward.5} parent=65 // loop_footer
                  %s986 = sadd.s32 %s984, 1
                $region79: #{encoder_forward.5} parent=65 // loop_footer_branch
                  %983 = sbr.rel target = $region75
                $region80: #{encoder_forward.5} parent=65 // loop_exit
                  _
              $region66: #{encoder_forward.5} parent=43 // pred_fallthru
                _
            $region44: #{encoder_forward.5} parent=39 // pred_fallthru
              _
            // Predicated region
            $region45: #{encoder_forward.5} parent=39 // pred_check
              _
            $region46: #{encoder_forward.5} parent=39 // pred_check_branch
              %784 = sbr.rel (0) target = $region48
            $region47: #{encoder_forward.5} parent=39 // pred_region
              %s786 = sshrl.u32 %s773, 5
              // While loop
              $region49: #{encoder_forward.5} parent=47 // loop_pre_header
                _
              $region50: #{encoder_forward.5} parent=47 // loop_header
                %s788 = sphi 0, %s790
                %p789 = scmp.ge.s32.totalorder %s788, %s786
                %s793 = sphi 0, %s862
                %s794 = sphi %s766, %s865
                %s795 = sphi %s777, %s866
              $region51: #{encoder_forward.5} parent=47 // loop_header_branch
                %792 = sbr.rel (%p789) target = $region55
              $region52: #{encoder_forward.5} parent=47 // loop_body
                %v796 = vld [vmem:[%s794] sm:$0xf]
                %797 = vst [vmem:[%s795] sm:$0xf] %v796
                %v798 = vld [vmem:[%s794 + $0x4] sm:$0xf]
                %799 = vst [vmem:[%s795 + $0x4] sm:$0xf] %v798
                %v800 = vld [vmem:[%s794 + $0x8] sm:$0xf]
                %801 = vst [vmem:[%s795 + $0x8] sm:$0xf] %v800
                %v802 = vld [vmem:[%s794 + $0xc] sm:$0xf]
                %803 = vst [vmem:[%s795 + $0xc] sm:$0xf] %v802
                %v804 = vld [vmem:[%s794 + $0x10] sm:$0xf]
                %805 = vst [vmem:[%s795 + $0x10] sm:$0xf] %v804
                %v806 = vld [vmem:[%s794 + $0x14] sm:$0xf]
                %807 = vst [vmem:[%s795 + $0x14] sm:$0xf] %v806
                %v808 = vld [vmem:[%s794 + $0x18] sm:$0xf]
                %809 = vst [vmem:[%s795 + $0x18] sm:$0xf] %v808
                %v810 = vld [vmem:[%s794 + $0x1c] sm:$0xf]
                %811 = vst [vmem:[%s795 + $0x1c] sm:$0xf] %v810
                %v812 = vld [vmem:[%s794 + $0x20] sm:$0xf]
                %813 = vst [vmem:[%s795 + $0x20] sm:$0xf] %v812
                %v814 = vld [vmem:[%s794 + $0x24] sm:$0xf]
                %815 = vst [vmem:[%s795 + $0x24] sm:$0xf] %v814
                %v816 = vld [vmem:[%s794 + $0x28] sm:$0xf]
                %817 = vst [vmem:[%s795 + $0x28] sm:$0xf] %v816
                %v818 = vld [vmem:[%s794 + $0x2c] sm:$0xf]
                %819 = vst [vmem:[%s795 + $0x2c] sm:$0xf] %v818
                %v820 = vld [vmem:[%s794 + $0x30] sm:$0xf]
                %821 = vst [vmem:[%s795 + $0x30] sm:$0xf] %v820
                %v822 = vld [vmem:[%s794 + $0x34] sm:$0xf]
                %823 = vst [vmem:[%s795 + $0x34] sm:$0xf] %v822
                %v824 = vld [vmem:[%s794 + $0x38] sm:$0xf]
                %825 = vst [vmem:[%s795 + $0x38] sm:$0xf] %v824
                %v826 = vld [vmem:[%s794 + $0x3c] sm:$0xf]
                %827 = vst [vmem:[%s795 + $0x3c] sm:$0xf] %v826
                %v828 = vld [vmem:[%s794 + $0x40] sm:$0xf]
                %829 = vst [vmem:[%s795 + $0x40] sm:$0xf] %v828
                %v830 = vld [vmem:[%s794 + $0x44] sm:$0xf]
                %831 = vst [vmem:[%s795 + $0x44] sm:$0xf] %v830
                %v832 = vld [vmem:[%s794 + $0x48] sm:$0xf]
                %833 = vst [vmem:[%s795 + $0x48] sm:$0xf] %v832
                %v834 = vld [vmem:[%s794 + $0x4c] sm:$0xf]
                %835 = vst [vmem:[%s795 + $0x4c] sm:$0xf] %v834
                %v836 = vld [vmem:[%s794 + $0x50] sm:$0xf]
                %837 = vst [vmem:[%s795 + $0x50] sm:$0xf] %v836
                %v838 = vld [vmem:[%s794 + $0x54] sm:$0xf]
                %839 = vst [vmem:[%s795 + $0x54] sm:$0xf] %v838
                %v840 = vld [vmem:[%s794 + $0x58] sm:$0xf]
                %841 = vst [vmem:[%s795 + $0x58] sm:$0xf] %v840
                %v842 = vld [vmem:[%s794 + $0x5c] sm:$0xf]
                %843 = vst [vmem:[%s795 + $0x5c] sm:$0xf] %v842
                %v844 = vld [vmem:[%s794 + $0x60] sm:$0xf]
                %845 = vst [vmem:[%s795 + $0x60] sm:$0xf] %v844
                %v846 = vld [vmem:[%s794 + $0x64] sm:$0xf]
                %847 = vst [vmem:[%s795 + $0x64] sm:$0xf] %v846
                %v848 = vld [vmem:[%s794 + $0x68] sm:$0xf]
                %849 = vst [vmem:[%s795 + $0x68] sm:$0xf] %v848
                %v850 = vld [vmem:[%s794 + $0x6c] sm:$0xf]
                %851 = vst [vmem:[%s795 + $0x6c] sm:$0xf] %v850
                %v852 = vld [vmem:[%s794 + $0x70] sm:$0xf]
                %853 = vst [vmem:[%s795 + $0x70] sm:$0xf] %v852
                %v854 = vld [vmem:[%s794 + $0x74] sm:$0xf]
                %855 = vst [vmem:[%s795 + $0x74] sm:$0xf] %v854
                %v856 = vld [vmem:[%s794 + $0x78] sm:$0xf]
                %857 = vst [vmem:[%s795 + $0x78] sm:$0xf] %v856
                %v858 = vld [vmem:[%s794 + $0x7c] sm:$0xf]
                %859 = vst [vmem:[%s795 + $0x7c] sm:$0xf] %v858
                %s860 = sadd.s32 1, %s793
                %p861 = scmp.ge.s32.totalorder %s860, %s786
                %s862 = scalar_select %p861, 0, %s860
                %s863 = smul.u32 %s862, 128
                %s864 = smul.u32 %s862, 128
                %s865 = scalar_lea.vmem %s766, %s863 [#allocation2]
                %s866 = scalar_lea.vmem %s777, %s864
              $region53: #{encoder_forward.5} parent=47 // loop_footer
                %s790 = sadd.s32 %s788, 1
              $region54: #{encoder_forward.5} parent=47 // loop_footer_branch
                %787 = sbr.rel target = $region50
              $region55: #{encoder_forward.5} parent=47 // loop_exit
                _
              %s867 = sshrl.u32 %s773, 5
              %s868 = sand.u32 %s773, 31
              %s869 = smul.u32 %s867, 32
              %s870 = smul.u32 4, %s869
              %s871 = scalar_lea.vmem %s766, %s870 [#allocation2]
              %s872 = smul.u32 4, %s869
              %s873 = scalar_lea.vmem %s777, %s872
              // While loop
              $region56: #{encoder_forward.5} parent=47 // loop_pre_header
                _
              $region57: #{encoder_forward.5} parent=47 // loop_header
                %s875 = sphi 0, %s877
                %p876 = scmp.ge.s32.totalorder %s875, %s868
                %s880 = sphi 0, %s887
                %s881 = sphi %s871, %s890
                %s882 = sphi %s873, %s891
              $region58: #{encoder_forward.5} parent=47 // loop_header_branch
                %879 = sbr.rel (%p876) target = $region62
              $region59: #{encoder_forward.5} parent=47 // loop_body
                %v883 = vld [vmem:[%s881] sm:$0xf]
                %884 = vst [vmem:[%s882] sm:$0xf] %v883
                %s885 = sadd.s32 1, %s880
                %p886 = scmp.ge.s32.totalorder %s885, %s868
                %s887 = scalar_select %p886, 0, %s885
                %s888 = smul.u32 %s887, 4
                %s889 = smul.u32 %s887, 4
                %s890 = scalar_lea.vmem %s871, %s888 [#allocation2]
                %s891 = scalar_lea.vmem %s873, %s889
              $region60: #{encoder_forward.5} parent=47 // loop_footer
                %s877 = sadd.s32 %s875, 1
              $region61: #{encoder_forward.5} parent=47 // loop_footer_branch
                %874 = sbr.rel target = $region57
              $region62: #{encoder_forward.5} parent=47 // loop_exit
                _
            $region48: #{encoder_forward.5} parent=39 // pred_fallthru
              _
          $region40: #{encoder_forward.5} parent=35 // pred_fallthru
            _
          %1001 = vnop
        $region36: #{encoder_forward.5} parent=31 // pred_fallthru
          _
      $region32: #{encoder_forward.5} parent=5 // pred_fallthru
        _
      %p1002 = scmp.le.s32.totalorder 2, %s9
      // Predicated region
      $region81: #{encoder_forward.5} parent=5 // pred_check
        %p1003 = pneg %p1002
      $region82: #{encoder_forward.5} parent=5 // pred_check_branch
        %1005 = sbr.rel (%p1003) target = $region84
      $region83: #{encoder_forward.5} parent=5 // pred_region
        %s1006 = ssub.s32 %s9, 2
        // Predicated region
        $region85: #{encoder_forward.5} parent=83 // pred_check
          %p1007 = pneg %p106
        $region86: #{encoder_forward.5} parent=83 // pred_check_branch
          %1009 = sbr.rel (%p1007) target = $region88
        $region87: #{encoder_forward.5} parent=83 // pred_region
          %s1010 = sand.u32 %s91, 1
          %s1011 = sand.u32 %s91, 1
          %s1012 = smul.addr %s1011, 128
          %s1013 = scalar_lea.vmem [#allocation2], %s1012
        $region88: #{encoder_forward.5} parent=83 // pred_fallthru
          _
      $region84: #{encoder_forward.5} parent=5 // pred_fallthru
        _
    $region6: #{encoder_forward.5} parent=1 // loop_footer
      %s13 = sadd.s32 1, %s9
    $region7: #{encoder_forward.5} parent=1 // loop_footer_branch
      %8 = sbr.rel target = $region3
    $region8: #{encoder_forward.5} parent=1 // loop_exit
      _

// kernel: encoder_forward.6
$region0: #{encoder_forward.6}
  #allocation0 [shape = 'u32[]', space=smem, size = 0x4, offset = 0x4, fixed_abs, tag = 'smem constant byte address 0x4 - core index']
  #allocation1 [shape = 'u32[144,128]{1,0:T(1,128)}', space=vmem, size = 0x12000, scoped, tag = 'internal scratch']
  %s0 = inlined_call_operand.vmem [shape: bf16[392,512], index: 0, kind: input, shape index: {}]
  %s1 = inlined_call_operand.vmem [shape: bf16[512,64], index: 1, kind: input, shape index: {}]
  %s2 = inlined_call_operand.vmem [shape: f32[1,64], index: 2, kind: input, shape index: {}]
  %s3 = inlined_call_operand.vmem [shape: bf16[392,64], index: 3, kind: output, shape index: {}]
  %s4 = sld [smem:[#allocation0]]
  $region89: #{encoder_forward.6} parent=0
    _
  %s6 = ssub.s32 1, %s4
  %s7 = scalar_select 0, %s6, %s4
  $region1: #{encoder_forward.6} parent=0
    #allocation2 [shape = 'u8[131072]{0}', space=vmem, size = 0x20000, scoped, tag = 'output window, operand 0']
    loop: start=0, step=1, limit=4
    $region2: #{encoder_forward.6} parent=1 // loop_pre_header
      _
    $region3: #{encoder_forward.6} parent=1 // loop_header
      %s9 = sphi 0, %s13
      %p10 = scmp.ge.s32.totalorder %s9, 4
      %s19 = sphi 0, %s21
      %s22 = sphi 0, %s19
      %s23 = sphi 0, %s22
      %s39 = sphi 0, %s23
      %s43 = sphi 0, %s43
      %s45 = sphi 0, %s43
      %s46 = sphi 0, %s45
      %s60 = sphi 0, %s46
      %s64 = sphi 0, %s64
      %s66 = sphi 0, %s64
      %s67 = sphi 0, %s66
      %s81 = sphi 0, %s67
      %s87 = sphi 0, %s89
      %s90 = sphi 0, %s87
      %s91 = sphi 0, %s90
      %s107 = sphi 0, %s91
    $region4: #{encoder_forward.6} parent=1 // loop_header_branch
      %12 = sbr.rel (%p10) target = $region8
    $region5: #{encoder_forward.6} parent=1 // loop_body
      %s14 = ssub.s32 %s9, 1
      %s15 = ssub.s32 %s9, 2
      %s16 = sadd.s32 %s9, 1
      %s17 = ssub.s32 %s9, %s16
      %p18 = scmp.eq.s32.totalorder %s17, 0
      %s20 = sadd.s32 %s19, 1
      %s21 = scalar_select %p18, %s19, %s20
      %p24 = pneg %p18
      %p25 = scmp.eq.s32.totalorder %s9, 1
      %p26 = por %p24, %p25
      %p27 = scmp.ne.s32.totalorder %s19, %s22
      %p28 = scmp.eq.s32.totalorder %s9, 0
      %p29 = por %p27, %p28
      %p30 = scmp.ne.s32.totalorder %s19, %s22
      %p31 = scmp.eq.s32.totalorder %s14, 1
      %p32 = por %p30, %p31
      %p33 = scmp.ne.s32.totalorder %s22, %s23
      %p34 = scmp.eq.s32.totalorder %s14, 0
      %p35 = por %p33, %p34
      %p36 = scmp.ne.s32.totalorder %s22, %s23
      %p37 = scmp.eq.s32.totalorder %s15, 1
      %p38 = por %p36, %p37
      %p40 = scmp.ne.s32.totalorder %s23, %s39
      %p41 = scmp.eq.s32.totalorder %s15, 0
      %p42 = por %p40, %p41
      %s44 = sadd.s32 %s43, 1
      %p47 = scmp.eq.s32.totalorder %s9, 1
      %p48 = scmp.ne.s32.totalorder %s43, %s45
      %p49 = scmp.eq.s32.totalorder %s9, 0
      %p50 = por %p48, %p49
      %p51 = scmp.ne.s32.totalorder %s43, %s45
      %p52 = scmp.eq.s32.totalorder %s14, 1
      %p53 = por %p51, %p52
      %p54 = scmp.ne.s32.totalorder %s45, %s46
      %p55 = scmp.eq.s32.totalorder %s14, 0
      %p56 = por %p54, %p55
      %p57 = scmp.ne.s32.totalorder %s45, %s46
      %p58 = scmp.eq.s32.totalorder %s15, 1
      %p59 = por %p57, %p58
      %p61 = scmp.ne.s32.totalorder %s46, %s60
      %p62 = scmp.eq.s32.totalorder %s15, 0
      %p63 = por %p61, %p62
      %s65 = sadd.s32 %s64, 1
      %p68 = scmp.eq.s32.totalorder %s9, 1
      %p69 = scmp.ne.s32.totalorder %s64, %s66
      %p70 = scmp.eq.s32.totalorder %s9, 0
      %p71 = por %p69, %p70
      %p72 = scmp.ne.s32.totalorder %s64, %s66
      %p73 = scmp.eq.s32.totalorder %s14, 1
      %p74 = por %p72, %p73
      %p75 = scmp.ne.s32.totalorder %s66, %s67
      %p76 = scmp.eq.s32.totalorder %s14, 0
      %p77 = por %p75, %p76
      %p78 = scmp.ne.s32.totalorder %s66, %s67
      %p79 = scmp.eq.s32.totalorder %s15, 1
      %p80 = por %p78, %p79
      %p82 = scmp.ne.s32.totalorder %s67, %s81
      %p83 = scmp.eq.s32.totalorder %s15, 0
      %p84 = por %p82, %p83
      %s85 = ssub.s32 %s9, %s16
      %p86 = scmp.eq.s32.totalorder %s85, 0
      %s88 = sadd.s32 %s87, 1
      %s89 = scalar_select %p86, %s87, %s88
      %p92 = pneg %p86
      %p93 = scmp.eq.s32.totalorder %s9, 1
      %p94 = por %p92, %p93
      %p95 = scmp.ne.s32.totalorder %s87, %s90
      %p96 = scmp.eq.s32.totalorder %s9, 0
      %p97 = por %p95, %p96
      %p98 = scmp.ne.s32.totalorder %s87, %s90
      %p99 = scmp.eq.s32.totalorder %s14, 1
      %p100 = por %p98, %p99
      %p101 = scmp.ne.s32.totalorder %s90, %s91
      %p102 = scmp.eq.s32.totalorder %s14, 0
      %p103 = por %p101, %p102
      %p104 = scmp.ne.s32.totalorder %s90, %s91
      %p105 = scmp.eq.s32.totalorder %s15, 1
      %p106 = por %p104, %p105
      %p108 = scmp.ne.s32.totalorder %s91, %s107
      %p109 = scmp.eq.s32.totalorder %s15, 0
      %p110 = por %p108, %p109
      %p111 = scmp.le.s32.totalorder 1, %s9
      %p112 = scmp.lt.s32.totalorder %s9, 3
      %p113 = pnand %p111, %p112
      %p114 = pneg %p113
      // Predicated region
      $region9: #{encoder_forward.6} parent=5 // pred_check
        _
      $region10: #{encoder_forward.6} parent=5 // pred_check_branch
        %116 = sbr.rel (%p113) target = $region12
      $region11: #{encoder_forward.6} parent=5 // pred_region
        %s117 = ssub.s32 %s9, 1
        // Predicated region
        $region13: #{encoder_forward.6} parent=11 // pred_check
          %p118 = pneg %p56
        $region14: #{encoder_forward.6} parent=11 // pred_check_branch
          %120 = sbr.rel (%p118) target = $region16
        $region15: #{encoder_forward.6} parent=11 // pred_region
          _
        $region16: #{encoder_forward.6} parent=11 // pred_fallthru
          _
        // Predicated region
        $region17: #{encoder_forward.6} parent=11 // pred_check
          %p121 = pneg %p77
        $region18: #{encoder_forward.6} parent=11 // pred_check_branch
          %123 = sbr.rel (%p121) target = $region20
        $region19: #{encoder_forward.6} parent=11 // pred_region
          _
        $region20: #{encoder_forward.6} parent=11 // pred_fallthru
          _
      $region12: #{encoder_forward.6} parent=5 // pred_fallthru
        _
      %p124 = scmp.lt.s32.totalorder %s9, 2
      // Predicated region
      $region21: #{encoder_forward.6} parent=5 // pred_check
        %p125 = pneg %p124
      $region22: #{encoder_forward.6} parent=5 // pred_check_branch
        %127 = sbr.rel (%p125) target = $region24
      $region23: #{encoder_forward.6} parent=5 // pred_region
        // Predicated region
        $region25: #{encoder_forward.6} parent=23 // pred_check
          %p128 = pneg %p29
        $region26: #{encoder_forward.6} parent=23 // pred_check_branch
          %130 = sbr.rel (%p128) target = $region28
        $region27: #{encoder_forward.6} parent=23 // pred_region
          %s131 = smul.u32 32, %s9
          %s132 = ssub.s32 49, %s131
          %p133 = scmp.lt.s32.totalorder %s132, 32
          %s134 = scalar_select %p133, %s132, 32
          %s135 = smul.u32 64, %s134
          %s136 = smul.u32 %s135, 4
          %p137 = scmp.lt.s32.totalorder %s131, 48
          %s138 = scalar_select %p137, %s131, 48
          %s139 = smul.addr %s138, 4
          %s140 = smul.addr %s139, 4
          %s141 = scalar_lea.vmem %s0, %s140
          %s142 = smul.u32 32, %s9
          %s143 = ssub.s32 49, %s142
          %p144 = scmp.lt.s32.totalorder %s143, 32
          %s145 = scalar_select %p144, %s143, 32
          %s146 = smul.u32 64, %s145
          %s147 = smul.u32 %s146, 4
        $region28: #{encoder_forward.6} parent=23 // pred_fallthru
          _
      $region24: #{encoder_forward.6} parent=5 // pred_fallthru
        _
      %p148 = scmp.le.s32.totalorder 1, %s9
      %p149 = scmp.lt.s32.totalorder %s9, 3
      %p150 = pnand %p148, %p149
      %p151 = pneg %p150
      // Predicated region
      $region29: #{encoder_forward.6} parent=5 // pred_check
        _
      $region30: #{encoder_forward.6} parent=5 // pred_check_branch
        %153 = sbr.rel (%p150) target = $region32
      $region31: #{encoder_forward.6} parent=5 // pred_region
        %s154 = ssub.s32 %s9, 1
        %s155 = smul.u32 32, %s14
        %s156 = ssub.s32 49, %s155
        %p157 = scmp.lt.s32.totalorder %s156, 32
        %s158 = scalar_select %p157, %s156, 32
        %s159 = smul.u32 64, %s158
        %s160 = smul.u32 %s159, 4
        %p161 = scmp.lt.s32.totalorder %s155, 48
        %s162 = scalar_select %p161, %s155, 48
        %s163 = smul.addr %s162, 4
        %s164 = smul.addr %s163, 4
        %s165 = scalar_lea.vmem %s0, %s164
        %p166 = pneg %p35
        %p167 = pneg %p32
        %p168 = pneg %p56
        %p169 = pneg %p53
        %p170 = pneg %p77
        %p171 = pneg %p74
        %p172 = pneg %p103
        %p173 = pneg %p100
        %s174 = sand.u32 %s90, 1
        %s175 = sand.u32 %s90, 1
        %s176 = smul.addr %s175, 128
        %s177 = scalar_lea.vmem [#allocation2], %s176
        %s178 = smul.u32 32, %s14
        %s179 = ssub.s32 49, %s178
        %p180 = scmp.lt.s32.totalorder %s179, 32
        %s181 = scalar_select %p180, %s179, 32
        %s182 = smul.u32 64, %s181
        %s183 = smul.u32 %s182, 4
        %p184 = scmp.lt.s32.totalorder %s178, 48
        %s185 = scalar_select %p184, %s178, 48
        %s186 = smul.addr %s185, 4
        %s187 = smul.addr %s186, 4
        %s188 = scalar_lea.vmem %s0, %s187
        %s189 = smul.u32 32, %s14
        %s190 = ssub.s32 49, %s189
        %p191 = scmp.lt.s32.totalorder %s190, 32
        %s192 = scalar_select %p191, %s190, 32
        %s193 = smul.u32 64, %s192
        %s194 = smul.u32 %s193, 4
        %s195 = smul.u32 32, %s14
        %s196 = ssub.s32 49, %s195
        %p197 = scmp.lt.s32.totalorder %s196, 32
        %s198 = scalar_select %p197, %s196, 32
        %s199 = smul.u32 64, %s198
        %v201 = vld [vmem:[%s188] sm:$0xff]
        %v202 = vld [vmem:[%s188 + $0x8] sm:$0xff]
        %v203 = vld [vmem:[%s188 + $0x10] sm:$0xff]
        %v204 = vld [vmem:[%s188 + $0x18] sm:$0xff]
        %v205 = vld [vmem:[%s188 + $0x20] sm:$0xff]
        %v206 = vld [vmem:[%s188 + $0x28] sm:$0xff]
        %v207 = vld [vmem:[%s188 + $0x30] sm:$0xff]
        %v208 = vld [vmem:[%s188 + $0x38] sm:$0xff]
        %v209 = vld [vmem:[%s188 + $0x40] sm:$0xff]
        %v210 = vld [vmem:[%s188 + $0x48] sm:$0xff]
        %v211 = vld [vmem:[%s188 + $0x50] sm:$0xff]
        %v212 = vld [vmem:[%s188 + $0x58] sm:$0xff]
        %v213 = vld [vmem:[%s188 + $0x60] sm:$0xff]
        %v214 = vld [vmem:[%s188 + $0x68] sm:$0xff]
        %v215 = vld [vmem:[%s188 + $0x70] sm:$0xff]
        %v216 = vld [vmem:[%s188 + $0x78] sm:$0xff]
        %v217 = vld [vmem:[%s188 + $0x80] sm:$0xff]
        %v218 = vld [vmem:[%s188 + $0x88] sm:$0xff]
        %v219 = vld [vmem:[%s188 + $0x90] sm:$0xff]
        %v220 = vld [vmem:[%s188 + $0x98] sm:$0xff]
        %v221 = vld [vmem:[%s188 + $0xa0] sm:$0xff]
        %v222 = vld [vmem:[%s188 + $0xa8] sm:$0xff]
        %v223 = vld [vmem:[%s188 + $0xb0] sm:$0xff]
        %v224 = vld [vmem:[%s188 + $0xb8] sm:$0xff]
        %v225 = vld [vmem:[%s188 + $0xc0] sm:$0xff]
        %v226 = vld [vmem:[%s188 + $0xc8] sm:$0xff]
        %v227 = vld [vmem:[%s188 + $0xd0] sm:$0xff]
        %v228 = vld [vmem:[%s188 + $0xd8] sm:$0xff]
        %v229 = vld [vmem:[%s188 + $0xe0] sm:$0xff]
        %v230 = vld [vmem:[%s188 + $0xe8] sm:$0xff]
        %v231 = vld [vmem:[%s188 + $0xf0] sm:$0xff]
        %v232 = vld [vmem:[%s188 + $0xf8] sm:$0xff]
        %v233 = vld [vmem:[%s188 + $0x100] sm:$0xff]
        %v234 = vld [vmem:[%s188 + $0x108] sm:$0xff]
        %v235 = vld [vmem:[%s188 + $0x110] sm:$0xff]
        %v236 = vld [vmem:[%s188 + $0x118] sm:$0xff]
        %v237 = vld [vmem:[%s188 + $0x120] sm:$0xff]
        %v238 = vld [vmem:[%s188 + $0x128] sm:$0xff]
        %v239 = vld [vmem:[%s188 + $0x130] sm:$0xff]
        %v240 = vld [vmem:[%s188 + $0x138] sm:$0xff]
        %v241 = vld [vmem:[%s188 + $0x140] sm:$0xff]
        %v242 = vld [vmem:[%s188 + $0x148] sm:$0xff]
        %v243 = vld [vmem:[%s188 + $0x150] sm:$0xff]
        %v244 = vld [vmem:[%s188 + $0x158] sm:$0xff]
        %v245 = vld [vmem:[%s188 + $0x160] sm:$0xff]
        %v246 = vld [vmem:[%s188 + $0x168] sm:$0xff]
        %v247 = vld [vmem:[%s188 + $0x170] sm:$0xff]
        %v248 = vld [vmem:[%s188 + $0x178] sm:$0xff]
        %v249 = vld [vmem:[%s188 + $0x180] sm:$0xff]
        %v250 = vld [vmem:[%s188 + $0x188] sm:$0xff]
        %v251 = vld [vmem:[%s188 + $0x190] sm:$0xff]
        %v252 = vld [vmem:[%s188 + $0x198] sm:$0xff]
        %v253 = vld [vmem:[%s188 + $0x1a0] sm:$0xff]
        %v254 = vld [vmem:[%s188 + $0x1a8] sm:$0xff]
        %v255 = vld [vmem:[%s188 + $0x1b0] sm:$0xff]
        %v256 = vld [vmem:[%s188 + $0x1b8] sm:$0xff]
        %v257 = vld [vmem:[%s188 + $0x1c0] sm:$0xff]
        %v258 = vld [vmem:[%s188 + $0x1c8] sm:$0xff]
        %v259 = vld [vmem:[%s188 + $0x1d0] sm:$0xff]
        %v260 = vld [vmem:[%s188 + $0x1d8] sm:$0xff]
        %v261 = vld [vmem:[%s188 + $0x1e0] sm:$0xff]
        %v262 = vld [vmem:[%s188 + $0x1e8] sm:$0xff]
        %v263 = vld [vmem:[%s188 + $0x1f0] sm:$0xff]
        %v264 = vld [vmem:[%s188 + $0x1f8] sm:$0xff]
        %v265 = vld [vmem:[%s1] sm:$0xf]
        %v266 = vld [vmem:[%s1 + $0x4] sm:$0xf]
        %v267 = vld [vmem:[%s1 + $0x8] sm:$0xf]
        %v268 = vld [vmem:[%s1 + $0xc] sm:$0xf]
        %v269 = vld [vmem:[%s1 + $0x10] sm:$0xf]
        %v270 = vld [vmem:[%s1 + $0x14] sm:$0xf]
        %v271 = vld [vmem:[%s1 + $0x18] sm:$0xf]
        %v272 = vld [vmem:[%s1 + $0x1c] sm:$0xf]
        %v273 = vld [vmem:[%s1 + $0x20] sm:$0xf]
        %v274 = vld [vmem:[%s1 + $0x24] sm:$0xf]
        %v275 = vld [vmem:[%s1 + $0x28] sm:$0xf]
        %v276 = vld [vmem:[%s1 + $0x2c] sm:$0xf]
        %v277 = vld [vmem:[%s1 + $0x30] sm:$0xf]
        %v278 = vld [vmem:[%s1 + $0x34] sm:$0xf]
        %v279 = vld [vmem:[%s1 + $0x38] sm:$0xf]
        %v280 = vld [vmem:[%s1 + $0x3c] sm:$0xf]
        %v281 = vld [vmem:[%s1 + $0x40] sm:$0xf]
        %v282 = vld [vmem:[%s1 + $0x44] sm:$0xf]
        %v283 = vld [vmem:[%s1 + $0x48] sm:$0xf]
        %v284 = vld [vmem:[%s1 + $0x4c] sm:$0xf]
        %v285 = vld [vmem:[%s1 + $0x50] sm:$0xf]
        %v286 = vld [vmem:[%s1 + $0x54] sm:$0xf]
        %v287 = vld [vmem:[%s1 + $0x58] sm:$0xf]
        %v288 = vld [vmem:[%s1 + $0x5c] sm:$0xf]
        %v289 = vld [vmem:[%s1 + $0x60] sm:$0xf]
        %v290 = vld [vmem:[%s1 + $0x64] sm:$0xf]
        %v291 = vld [vmem:[%s1 + $0x68] sm:$0xf]
        %v292 = vld [vmem:[%s1 + $0x6c] sm:$0xf]
        %v293 = vld [vmem:[%s1 + $0x70] sm:$0xf]
        %v294 = vld [vmem:[%s1 + $0x74] sm:$0xf]
        %v295 = vld [vmem:[%s1 + $0x78] sm:$0xf]
        %v296 = vld [vmem:[%s1 + $0x7c] sm:$0xf]
        %v297 = vld [vmem:[%s1 + $0x80] sm:$0xf]
        %v298 = vld [vmem:[%s1 + $0x84] sm:$0xf]
        %v299 = vld [vmem:[%s1 + $0x88] sm:$0xf]
        %v300 = vld [vmem:[%s1 + $0x8c] sm:$0xf]
        %v301 = vld [vmem:[%s1 + $0x90] sm:$0xf]
        %v302 = vld [vmem:[%s1 + $0x94] sm:$0xf]
        %v303 = vld [vmem:[%s1 + $0x98] sm:$0xf]
        %v304 = vld [vmem:[%s1 + $0x9c] sm:$0xf]
        %v305 = vld [vmem:[%s1 + $0xa0] sm:$0xf]
        %v306 = vld [vmem:[%s1 + $0xa4] sm:$0xf]
        %v307 = vld [vmem:[%s1 + $0xa8] sm:$0xf]
        %v308 = vld [vmem:[%s1 + $0xac] sm:$0xf]
        %v309 = vld [vmem:[%s1 + $0xb0] sm:$0xf]
        %v310 = vld [vmem:[%s1 + $0xb4] sm:$0xf]
        %v311 = vld [vmem:[%s1 + $0xb8] sm:$0xf]
        %v312 = vld [vmem:[%s1 + $0xbc] sm:$0xf]
        %v313 = vld [vmem:[%s1 + $0xc0] sm:$0xf]
        %v314 = vld [vmem:[%s1 + $0xc4] sm:$0xf]
        %v315 = vld [vmem:[%s1 + $0xc8] sm:$0xf]
        %v316 = vld [vmem:[%s1 + $0xcc] sm:$0xf]
        %v317 = vld [vmem:[%s1 + $0xd0] sm:$0xf]
        %v318 = vld [vmem:[%s1 + $0xd4] sm:$0xf]
        %v319 = vld [vmem:[%s1 + $0xd8] sm:$0xf]
        %v320 = vld [vmem:[%s1 + $0xdc] sm:$0xf]
        %v321 = vld [vmem:[%s1 + $0xe0] sm:$0xf]
        %v322 = vld [vmem:[%s1 + $0xe4] sm:$0xf]
        %v323 = vld [vmem:[%s1 + $0xe8] sm:$0xf]
        %v324 = vld [vmem:[%s1 + $0xec] sm:$0xf]
        %v325 = vld [vmem:[%s1 + $0xf0] sm:$0xf]
        %v326 = vld [vmem:[%s1 + $0xf4] sm:$0xf]
        %v327 = vld [vmem:[%s1 + $0xf8] sm:$0xf]
        %v328 = vld [vmem:[%s1 + $0xfc] sm:$0xf]
        %v329 = vld [vmem:[%s2] sm:$0x1]
        %v331 = vlaneseq
        %v332 = vshrl.u32 %v331, 7
        %v333 = vsub.s32 0, %v332
        %v334 = vrot.slane %v329, %v333
        %v400 = vunpack.c.l.b16 %v201
        %v401 = vunpack.c.h.b16 %v201
        %v402 = vunpack.c.l.b16 %v202
        %v403 = vunpack.c.h.b16 %v202
        %v404 = vunpack.c.l.b16 %v203
        %v405 = vunpack.c.h.b16 %v203
        %v406 = vunpack.c.l.b16 %v204
        %v407 = vunpack.c.h.b16 %v204
        %v408 = vunpack.c.l.b16 %v205
        %v409 = vunpack.c.h.b16 %v205
        %v410 = vunpack.c.l.b16 %v206
        %v411 = vunpack.c.h.b16 %v206
        %v412 = vunpack.c.l.b16 %v207
        %v413 = vunpack.c.h.b16 %v207
        %v414 = vunpack.c.l.b16 %v208
        %v415 = vunpack.c.h.b16 %v208
        %v416 = vunpack.c.l.b16 %v209
        %v417 = vunpack.c.h.b16 %v209
        %v418 = vunpack.c.l.b16 %v210
        %v419 = vunpack.c.h.b16 %v210
        %v420 = vunpack.c.l.b16 %v211
        %v421 = vunpack.c.h.b16 %v211
        %v422 = vunpack.c.l.b16 %v212
        %v423 = vunpack.c.h.b16 %v212
        %v424 = vunpack.c.l.b16 %v213
        %v425 = vunpack.c.h.b16 %v213
        %v426 = vunpack.c.l.b16 %v214
        %v427 = vunpack.c.h.b16 %v214
        %v428 = vunpack.c.l.b16 %v215
        %v429 = vunpack.c.h.b16 %v215
        %v430 = vunpack.c.l.b16 %v216
        %v431 = vunpack.c.h.b16 %v216
        %v432 = vunpack.c.l.b16 %v217
        %v433 = vunpack.c.h.b16 %v217
        %v434 = vunpack.c.l.b16 %v218
        %v435 = vunpack.c.h.b16 %v218
        %v436 = vunpack.c.l.b16 %v219
        %v437 = vunpack.c.h.b16 %v219
        %v438 = vunpack.c.l.b16 %v220
        %v439 = vunpack.c.h.b16 %v220
        %v440 = vunpack.c.l.b16 %v221
        %v441 = vunpack.c.h.b16 %v221
        %v442 = vunpack.c.l.b16 %v222
        %v443 = vunpack.c.h.b16 %v222
        %v444 = vunpack.c.l.b16 %v223
        %v445 = vunpack.c.h.b16 %v223
        %v446 = vunpack.c.l.b16 %v224
        %v447 = vunpack.c.h.b16 %v224
        %v448 = vunpack.c.l.b16 %v225
        %v449 = vunpack.c.h.b16 %v225
        %v450 = vunpack.c.l.b16 %v226
        %v451 = vunpack.c.h.b16 %v226
        %v452 = vunpack.c.l.b16 %v227
        %v453 = vunpack.c.h.b16 %v227
        %v454 = vunpack.c.l.b16 %v228
        %v455 = vunpack.c.h.b16 %v228
        %v456 = vunpack.c.l.b16 %v229
        %v457 = vunpack.c.h.b16 %v229
        %v458 = vunpack.c.l.b16 %v230
        %v459 = vunpack.c.h.b16 %v230
        %v460 = vunpack.c.l.b16 %v231
        %v461 = vunpack.c.h.b16 %v231
        %v462 = vunpack.c.l.b16 %v232
        %v463 = vunpack.c.h.b16 %v232
        %v464 = vunpack.c.l.b16 %v233
        %v465 = vunpack.c.h.b16 %v233
        %v466 = vunpack.c.l.b16 %v234
        %v467 = vunpack.c.h.b16 %v234
        %v468 = vunpack.c.l.b16 %v235
        %v469 = vunpack.c.h.b16 %v235
        %v470 = vunpack.c.l.b16 %v236
        %v471 = vunpack.c.h.b16 %v236
        %v472 = vunpack.c.l.b16 %v237
        %v473 = vunpack.c.h.b16 %v237
        %v474 = vunpack.c.l.b16 %v238
        %v475 = vunpack.c.h.b16 %v238
        %v476 = vunpack.c.l.b16 %v239
        %v477 = vunpack.c.h.b16 %v239
        %v478 = vunpack.c.l.b16 %v240
        %v479 = vunpack.c.h.b16 %v240
        %v480 = vunpack.c.l.b16 %v241
        %v481 = vunpack.c.h.b16 %v241
        %v482 = vunpack.c.l.b16 %v242
        %v483 = vunpack.c.h.b16 %v242
        %v484 = vunpack.c.l.b16 %v243
        %v485 = vunpack.c.h.b16 %v243
        %v486 = vunpack.c.l.b16 %v244
        %v487 = vunpack.c.h.b16 %v244
        %v488 = vunpack.c.l.b16 %v245
        %v489 = vunpack.c.h.b16 %v245
        %v490 = vunpack.c.l.b16 %v246
        %v491 = vunpack.c.h.b16 %v246
        %v492 = vunpack.c.l.b16 %v247
        %v493 = vunpack.c.h.b16 %v247
        %v494 = vunpack.c.l.b16 %v248
        %v495 = vunpack.c.h.b16 %v248
        %v496 = vunpack.c.l.b16 %v249
        %v497 = vunpack.c.h.b16 %v249
        %v498 = vunpack.c.l.b16 %v250
        %v499 = vunpack.c.h.b16 %v250
        %v500 = vunpack.c.l.b16 %v251
        %v501 = vunpack.c.h.b16 %v251
        %v502 = vunpack.c.l.b16 %v252
        %v503 = vunpack.c.h.b16 %v252
        %v504 = vunpack.c.l.b16 %v253
        %v505 = vunpack.c.h.b16 %v253
        %v506 = vunpack.c.l.b16 %v254
        %v507 = vunpack.c.h.b16 %v254
        %v508 = vunpack.c.l.b16 %v255
        %v509 = vunpack.c.h.b16 %v255
        %v510 = vunpack.c.l.b16 %v256
        %v511 = vunpack.c.h.b16 %v256
        %v512 = vunpack.c.l.b16 %v257
        %v513 = vunpack.c.h.b16 %v257
        %v514 = vunpack.c.l.b16 %v258
        %v515 = vunpack.c.h.b16 %v258
        %v516 = vunpack.c.l.b16 %v259
        %v517 = vunpack.c.h.b16 %v259
        %v518 = vunpack.c.l.b16 %v260
        %v519 = vunpack.c.h.b16 %v260
        %v520 = vunpack.c.l.b16 %v261
        %v521 = vunpack.c.h.b16 %v261
        %v522 = vunpack.c.l.b16 %v262
        %v523 = vunpack.c.h.b16 %v262
        %v524 = vunpack.c.l.b16 %v263
        %v525 = vunpack.c.h.b16 %v263
        %v526 = vunpack.c.l.b16 %v264
        %v527 = vunpack.c.h.b16 %v264
        %v528 = vpack.c.b16 %v404, %v400
        %v529 = vpack.c.b16 %v405, %v401
        %v530 = vpack.c.b16 %v406, %v402
        %v531 = vpack.c.b16 %v407, %v403
        %v532 = vpack.c.b16 %v412, %v408
        %v533 = vpack.c.b16 %v413, %v409
        %v534 = vpack.c.b16 %v414, %v410
        %v535 = vpack.c.b16 %v415, %v411
        %v536 = vpack.c.b16 %v420, %v416
        %v537 = vpack.c.b16 %v421, %v417
        %v538 = vpack.c.b16 %v422, %v418
        %v539 = vpack.c.b16 %v423, %v419
        %v540 = vpack.c.b16 %v428, %v424
        %v541 = vpack.c.b16 %v429, %v425
        %v542 = vpack.c.b16 %v430, %v426
        %v543 = vpack.c.b16 %v431, %v427
        %v544 = vpack.c.b16 %v436, %v432
        %v545 = vpack.c.b16 %v437, %v433
        %v546 = vpack.c.b16 %v438, %v434
        %v547 = vpack.c.b16 %v439, %v435
        %v548 = vpack.c.b16 %v444, %v440
        %v549 = vpack.c.b16 %v445, %v441
        %v550 = vpack.c.b16 %v446, %v442
        %v551 = vpack.c.b16 %v447, %v443
        %v552 = vpack.c.b16 %v452, %v448
        %v553 = vpack.c.b16 %v453, %v449
        %v554 = vpack.c.b16 %v454, %v450
        %v555 = vpack.c.b16 %v455, %v451
        %v556 = vpack.c.b16 %v460, %v456
        %v557 = vpack.c.b16 %v461, %v457
        %v558 = vpack.c.b16 %v462, %v458
        %v559 = vpack.c.b16 %v463, %v459
        %v560 = vpack.c.b16 %v468, %v464
        %v561 = vpack.c.b16 %v469, %v465
        %v562 = vpack.c.b16 %v470, %v466
        %v563 = vpack.c.b16 %v471, %v467
        %v564 = vpack.c.b16 %v476, %v472
        %v565 = vpack.c.b16 %v477, %v473
        %v566 = vpack.c.b16 %v478, %v474
        %v567 = vpack.c.b16 %v479, %v475
        %v568 = vpack.c.b16 %v484, %v480
        %v569 = vpack.c.b16 %v485, %v481
        %v570 = vpack.c.b16 %v486, %v482
        %v571 = vpack.c.b16 %v487, %v483
        %v572 = vpack.c.b16 %v492, %v488
        %v573 = vpack.c.b16 %v493, %v489
        %v574 = vpack.c.b16 %v494, %v490
        %v575 = vpack.c.b16 %v495, %v491
        %v576 = vpack.c.b16 %v500, %v496
        %v577 = vpack.c.b16 %v501, %v497
        %v578 = vpack.c.b16 %v502, %v498
        %v579 = vpack.c.b16 %v503, %v499
        %v580 = vpack.c.b16 %v508, %v504
        %v581 = vpack.c.b16 %v509, %v505
        %v582 = vpack.c.b16 %v510, %v506
        %v583 = vpack.c.b16 %v511, %v507
        %v584 = vpack.c.b16 %v516, %v512
        %v585 = vpack.c.b16 %v517, %v513
        %v586 = vpack.c.b16 %v518, %v514
        %v587 = vpack.c.b16 %v519, %v515
        %v588 = vpack.c.b16 %v524, %v520
        %v589 = vpack.c.b16 %v525, %v521
        %v590 = vpack.c.b16 %v526, %v522
        %v591 = vpack.c.b16 %v527, %v523
        %v720 = vunpack.c.l.b16 %v265
        %v721 = vunpack.c.l.b16 %v266
        %v722 = vunpack.c.l.b16 %v267
        %v723 = vunpack.c.l.b16 %v268
        %v724 = vunpack.c.l.b16 %v269
        %v725 = vunpack.c.l.b16 %v270
        %v726 = vunpack.c.l.b16 %v271
        %v727 = vunpack.c.l.b16 %v272
        %v728 = vunpack.c.l.b16 %v273
        %v729 = vunpack.c.l.b16 %v274
        %v730 = vunpack.c.l.b16 %v275
        %v731 = vunpack.c.l.b16 %v276
        %v732 = vunpack.c.l.b16 %v277
        %v733 = vunpack.c.l.b16 %v278
        %v734 = vunpack.c.l.b16 %v279
        %v735 = vunpack.c.l.b16 %v280
        %v736 = vunpack.c.l.b16 %v281
        %v737 = vunpack.c.l.b16 %v282
        %v738 = vunpack.c.l.b16 %v283
        %v739 = vunpack.c.l.b16 %v284
        %v740 = vunpack.c.l.b16 %v285
        %v741 = vunpack.c.l.b16 %v286
        %v742 = vunpack.c.l.b16 %v287
        %v743 = vunpack.c.l.b16 %v288
        %v744 = vunpack.c.l.b16 %v289
        %v745 = vunpack.c.l.b16 %v290
        %v746 = vunpack.c.l.b16 %v291
        %v747 = vunpack.c.l.b16 %v292
        %v748 = vunpack.c.l.b16 %v293
        %v749 = vunpack.c.l.b16 %v294
        %v750 = vunpack.c.l.b16 %v295
        %v751 = vunpack.c.l.b16 %v296
        %v752 = vunpack.c.l.b16 %v297
        %v753 = vunpack.c.l.b16 %v298
        %v754 = vunpack.c.l.b16 %v299
        %v755 = vunpack.c.l.b16 %v300
        %v756 = vunpack.c.l.b16 %v301
        %v757 = vunpack.c.l.b16 %v302
        %v758 = vunpack.c.l.b16 %v303
        %v759 = vunpack.c.l.b16 %v304
        %v760 = vunpack.c.l.b16 %v305
        %v761 = vunpack.c.l.b16 %v306
        %v762 = vunpack.c.l.b16 %v307
        %v763 = vunpack.c.l.b16 %v308
        %v764 = vunpack.c.l.b16 %v309
        %v765 = vunpack.c.l.b16 %v310
        %v766 = vunpack.c.l.b16 %v311
        %v767 = vunpack.c.l.b16 %v312
        %v768 = vunpack.c.l.b16 %v313
        %v769 = vunpack.c.l.b16 %v314
        %v770 = vunpack.c.l.b16 %v315
        %v771 = vunpack.c.l.b16 %v316
        %v772 = vunpack.c.l.b16 %v317
        %v773 = vunpack.c.l.b16 %v318
        %v774 = vunpack.c.l.b16 %v319
        %v775 = vunpack.c.l.b16 %v320
        %v776 = vunpack.c.l.b16 %v321
        %v777 = vunpack.c.l.b16 %v322
        %v778 = vunpack.c.l.b16 %v323
        %v779 = vunpack.c.l.b16 %v324
        %v780 = vunpack.c.l.b16 %v325
        %v781 = vunpack.c.l.b16 %v326
        %v782 = vunpack.c.l.b16 %v327
        %v783 = vunpack.c.l.b16 %v328
        %v784 = vpack.c.b16 %v721, %v720
        %v785 = vpack.c.b16 %v723, %v722
        %v786 = vpack.c.b16 %v725, %v724
        %v787 = vpack.c.b16 %v727, %v726
        %v788 = vpack.c.b16 %v729, %v728
        %v789 = vpack.c.b16 %v731, %v730
        %v790 = vpack.c.b16 %v733, %v732
        %v791 = vpack.c.b16 %v735, %v734
        %v792 = vpack.c.b16 %v737, %v736
        %v793 = vpack.c.b16 %v739, %v738
        %v794 = vpack.c.b16 %v741, %v740
        %v795 = vpack.c.b16 %v743, %v742
        %v796 = vpack.c.b16 %v745, %v744
        %v797 = vpack.c.b16 %v747, %v746
        %v798 = vpack.c.b16 %v749, %v748
        %v799 = vpack.c.b16 %v751, %v750
        %v800 = vpack.c.b16 %v753, %v752
        %v801 = vpack.c.b16 %v755, %v754
        %v802 = vpack.c.b16 %v757, %v756
        %v803 = vpack.c.b16 %v759, %v758
        %v804 = vpack.c.b16 %v761, %v760
        %v805 = vpack.c.b16 %v763, %v762
        %v806 = vpack.c.b16 %v765, %v764
        %v807 = vpack.c.b16 %v767, %v766
        %v808 = vpack.c.b16 %v769, %v768
        %v809 = vpack.c.b16 %v771, %v770
        %v810 = vpack.c.b16 %v773, %v772
        %v811 = vpack.c.b16 %v775, %v774
        %v812 = vpack.c.b16 %v777, %v776
        %v813 = vpack.c.b16 %v779, %v778
        %v814 = vpack.c.b16 %v781, %v780
        %v815 = vpack.c.b16 %v783, %v782
        %848 = vmatprep.subr.bf16.mxu0 0
        %849 = vmatpush1.bf16.msra.mxu0 %v784
        %850 = vmatprep.subr.bf16.mxu0 0
        %851 = vmatpush1.bf16.msra.mxu0 %v785
        %852 = vmatprep.subr.bf16.mxu0 0
        %853 = vmatpush1.bf16.msra.mxu0 %v786
        %854 = vmatprep.subr.bf16.mxu0 0
        %855 = vmatpush1.bf16.msra.mxu0 %v787
        %856 = vmatprep.subr.bf16.mxu0 0
        %857 = vmatpush1.bf16.msra.mxu0 %v788
        %858 = vmatprep.subr.bf16.mxu0 0
        %859 = vmatpush1.bf16.msra.mxu0 %v789
        %860 = vmatprep.subr.bf16.mxu0 0
        %861 = vmatpush1.bf16.msra.mxu0 %v790
        %862 = vmatprep.subr.bf16.mxu0 0
        %863 = vmatpush1.bf16.msra.mxu0 %v791
        %864 = vmatprep.subr.bf16.mxu0 0
        %865 = vmatpush1.bf16.msra.mxu0 %v792
        %866 = vmatprep.subr.bf16.mxu0 0
        %867 = vmatpush1.bf16.msra.mxu0 %v793
        %868 = vmatprep.subr.bf16.mxu0 0
        %869 = vmatpush1.bf16.msra.mxu0 %v794
        %870 = vmatprep.subr.bf16.mxu0 0
        %871 = vmatpush1.bf16.msra.mxu0 %v795
        %872 = vmatprep.subr.bf16.mxu0 0
        %873 = vmatpush1.bf16.msra.mxu0 %v796
        %874 = vmatprep.subr.bf16.mxu0 0
        %875 = vmatpush1.bf16.msra.mxu0 %v797
        %876 = vmatprep.subr.bf16.mxu0 0
        %877 = vmatpush1.bf16.msra.mxu0 %v798
        %878 = vmatprep.subr.bf16.mxu0 0
        %879 = vmatpush1.bf16.msra.mxu0 %v799
        %880 = vmatprep.mubr.bf16.mxu0 %v529
        %881 = vmatmul.mubr.bf16.gmra.mrb[0].mxu0 %v528
        %v882 = vpop.f32.mrb[0].mxu0
        %v883 = vadd.f32 %v334, %v882
        %v884 = vpop.f32.mrb[0].mxu0
        %v885 = vpop.f32.mrb[0].mxu0
        %v886 = vadd.f32 %v334, %v885
        %v887 = vpop.f32.mrb[0].mxu0
        %888 = vmatprep.mubr.bf16.mxu0 %v533
        %889 = vmatmul.mubr.bf16.gmra.mrb[0].mxu0 %v532
        %v890 = vpop.f32.mrb[0].mxu0
        %v891 = vadd.f32 %v334, %v890
        %v892 = vpop.f32.mrb[0].mxu0
        %v893 = vpop.f32.mrb[0].mxu0
        %v894 = vadd.f32 %v334, %v893
        %v895 = vpop.f32.mrb[0].mxu0
        %896 = vmatprep.mubr.bf16.mxu0 %v537
        %897 = vmatmul.mubr.bf16.gmra.mrb[0].mxu0 %v536
        %v898 = vpop.f32.mrb[0].mxu0
        %v899 = vadd.f32 %v334, %v898
        %v900 = vpop.f32.mrb[0].mxu0
        %v901 = vpop.f32.mrb[0].mxu0
        %v902 = vadd.f32 %v334, %v901
        %v903 = vpop.f32.mrb[0].mxu0
        %904 = vmatprep.mubr.bf16.mxu0 %v541
        %905 = vmatmul.mubr.bf16.gmra.mrb[0].mxu0 %v540
        %v906 = vpop.f32.mrb[0].mxu0
        %v907 = vadd.f32 %v334, %v906
        %v908 = vpop.f32.mrb[0].mxu0
        %v909 = vpop.f32.mrb[0].mxu0
        %v910 = vadd.f32 %v334, %v909
        %v911 = vpop.f32.mrb[0].mxu0
        %912 = vmatprep.mubr.bf16.mxu0 %v545
        %913 = vmatmul.mubr.bf16.gmra.mrb[0].mxu0 %v544
        %v914 = vpop.f32.mrb[0].mxu0
        %v915 = vadd.f32 %v334, %v914
        %v916 = vpop.f32.mrb[0].mxu0
        %v917 = vpop.f32.mrb[0].mxu0
        %v918 = vadd.f32 %v334, %v917
        %v919 = vpop.f32.mrb[0].mxu0
        %920 = vmatprep.mubr.bf16.mxu0 %v549
        %921 = vmatmul.mubr.bf16.gmra.mrb[0].mxu0 %v548
        %v922 = vpop.f32.mrb[0].mxu0
        %v923 = vadd.f32 %v334, %v922
        %v924 = vpop.f32.mrb[0].mxu0
        %v925 = vpop.f32.mrb[0].mxu0
        %v926 = vadd.f32 %v334, %v925
        %v927 = vpop.f32.mrb[0].mxu0
        %928 = vmatprep.mubr.bf16.mxu0 %v553
        %929 = vmatmul.mubr.bf16.gmra.mrb[0].mxu0 %v552
        %v930 = vpop.f32.mrb[0].mxu0
        %v931 = vadd.f32 %v334, %v930
        %v932 = vpop.f32.mrb[0].mxu0
        %v933 = vpop.f32.mrb[0].mxu0
        %v934 = vadd.f32 %v334, %v933
        %v935 = vpop.f32.mrb[0].mxu0
        %936 = vmatprep.mubr.bf16.mxu0 %v557
        %937 = vmatmul.mubr.bf16.gmra.mrb[0].mxu0 %v556
        %v938 = vpop.f32.mrb[0].mxu0
        %v939 = vadd.f32 %v334, %v938
        %v940 = vpop.f32.mrb[0].mxu0
        %v941 = vpop.f32.mrb[0].mxu0
        %v942 = vadd.f32 %v334, %v941
        %v943 = vpop.f32.mrb[0].mxu0
        %944 = vmatprep.mubr.bf16.mxu0 %v561
        %945 = vmatmul.mubr.bf16.gmra.mrb[0].mxu0 %v560
        %v946 = vpop.f32.mrb[0].mxu0
        %v947 = vadd.f32 %v334, %v946
        %v948 = vpop.f32.mrb[0].mxu0
        %v949 = vpop.f32.mrb[0].mxu0
        %v950 = vadd.f32 %v334, %v949
        %v951 = vpop.f32.mrb[0].mxu0
        %952 = vmatprep.mubr.bf16.mxu0 %v565
        %953 = vmatmul.mubr.bf16.gmra.mrb[0].mxu0 %v564
        %v954 = vpop.f32.mrb[0].mxu0
        %v955 = vadd.f32 %v334, %v954
        %v956 = vpop.f32.mrb[0].mxu0
        %v957 = vpop.f32.mrb[0].mxu0
        %v958 = vadd.f32 %v334, %v957
        %v959 = vpop.f32.mrb[0].mxu0
        %960 = vmatprep.mubr.bf16.mxu0 %v569
        %961 = vmatmul.mubr.bf16.gmra.mrb[0].mxu0 %v568
        %v962 = vpop.f32.mrb[0].mxu0
        %v963 = vadd.f32 %v334, %v962
        %v964 = vpop.f32.mrb[0].mxu0
        %v965 = vpop.f32.mrb[0].mxu0
        %v966 = vadd.f32 %v334, %v965
        %v967 = vpop.f32.mrb[0].mxu0
        %968 = vmatprep.mubr.bf16.mxu0 %v573
        %969 = vmatmul.mubr.bf16.gmra.mrb[0].mxu0 %v572
        %v970 = vpop.f32.mrb[0].mxu0
        %v971 = vadd.f32 %v334, %v970
        %v972 = vpop.f32.mrb[0].mxu0
        %v973 = vpop.f32.mrb[0].mxu0
        %v974 = vadd.f32 %v334, %v973
        %v975 = vpop.f32.mrb[0].mxu0
        %976 = vmatprep.mubr.bf16.mxu0 %v577
        %977 = vmatmul.mubr.bf16.gmra.mrb[0].mxu0 %v576
        %v978 = vpop.f32.mrb[0].mxu0
        %v979 = vadd.f32 %v334, %v978
        %v980 = vpop.f32.mrb[0].mxu0
        %v981 = vpop.f32.mrb[0].mxu0
        %v982 = vadd.f32 %v334, %v981
        %v983 = vpop.f32.mrb[0].mxu0
        %984 = vmatprep.mubr.bf16.mxu0 %v581
        %985 = vmatmul.mubr.bf16.gmra.mrb[0].mxu0 %v580
        %v986 = vpop.f32.mrb[0].mxu0
        %v987 = vadd.f32 %v334, %v986
        %v988 = vpop.f32.mrb[0].mxu0
        %v989 = vpop.f32.mrb[0].mxu0
        %v990 = vadd.f32 %v334, %v989
        %v991 = vpop.f32.mrb[0].mxu0
        %992 = vmatprep.mubr.bf16.mxu0 %v585
        %993 = vmatmul.mubr.bf16.gmra.mrb[0].mxu0 %v584
        %v994 = vpop.f32.mrb[0].mxu0
        %v995 = vadd.f32 %v334, %v994
        %v996 = vpop.f32.mrb[0].mxu0
        %v997 = vpop.f32.mrb[0].mxu0
        %v998 = vadd.f32 %v334, %v997
        %v999 = vpop.f32.mrb[0].mxu0
        %1000 = vmatprep.mubr.bf16.mxu0 %v589
        %1001 = vmatmul.mubr.bf16.gmra.mrb[0].mxu0 %v588
        %v1002 = vpop.f32.mrb[0].mxu0
        %v1003 = vadd.f32 %v334, %v1002
        %v1004 = vpop.f32.mrb[0].mxu0
        %v1005 = vpop.f32.mrb[0].mxu0
        %v1006 = vadd.f32 %v334, %v1005
        %v1007 = vpop.f32.mrb[0].mxu0
        %1008 = vdwg.mxu0
        %1009 = vmatprep.subr.bf16.mxu0 0
        %1010 = vmatpush1.bf16.msra.mxu0 %v800
        %1011 = vmatprep.subr.bf16.mxu0 0
        %1012 = vmatpush1.bf16.msra.mxu0 %v801
        %1013 = vmatprep.subr.bf16.mxu0 0
        %1014 = vmatpush1.bf16.msra.mxu0 %v802
        %1015 = vmatprep.subr.bf16.mxu0 0
        %1016 = vmatpush1.bf16.msra.mxu0 %v803
        %1017 = vmatprep.subr.bf16.mxu0 0
        %1018 = vmatpush1.bf16.msra.mxu0 %v804
        %1019 = vmatprep.subr.bf16.mxu0 0
        %1020 = vmatpush1.bf16.msra.mxu0 %v805
        %1021 = vmatprep.subr.bf16.mxu0 0
        %1022 = vmatpush1.bf16.msra.mxu0 %v806
        %1023 = vmatprep.subr.bf16.mxu0 0
        %1024 = vmatpush1.bf16.msra.mxu0 %v807
        %1025 = vmatprep.subr.bf16.mxu0 0
        %1026 = vmatpush1.bf16.msra.mxu0 %v808
        %1027 = vmatprep.subr.bf16.mxu0 0
        %1028 = vmatpush1.bf16.msra.mxu0 %v809
        %1029 = vmatprep.subr.bf16.mxu0 0
        %1030 = vmatpush1.bf16.msra.mxu0 %v810
        %1031 = vmatprep.subr.bf16.mxu0 0
        %1032 = vmatpush1.bf16.msra.mxu0 %v811
        %1033 = vmatprep.subr.bf16.mxu0 0
        %1034 = vmatpush1.bf16.msra.mxu0 %v812
        %1035 = vmatprep.subr.bf16.mxu0 0
        %1036 = vmatpush1.bf16.msra.mxu0 %v813
        %1037 = vmatprep.subr.bf16.mxu0 0
        %1038 = vmatpush1.bf16.msra.mxu0 %v814
        %1039 = vmatprep.subr.bf16.mxu0 0
        %1040 = vmatpush1.bf16.msra.mxu0 %v815
        %1041 = vmatprep.mubr.bf16.mxu0 %v531
        %1042 = vmatmul.mubr.bf16.gmra.mrb[0].mxu0 %v530
        %v1043 = vpop.f32.mrb[0].mxu0
        %v1044 = vadd.f32 %v883, %v1043
        %v1045 = vpop.f32.mrb[0].mxu0
        %v1046 = vpop.f32.mrb[0].mxu0
        %v1047 = vadd.f32 %v886, %v1046
        %v1048 = vpop.f32.mrb[0].mxu0
        %1049 = vmatprep.mubr.bf16.mxu0 %v535
        %1050 = vmatmul.mubr.bf16.gmra.mrb[0].mxu0 %v534
        %v1051 = vpop.f32.mrb[0].mxu0
        %v1052 = vadd.f32 %v891, %v1051
        %v1053 = vpop.f32.mrb[0].mxu0
        %v1054 = vpop.f32.mrb[0].mxu0
        %v1055 = vadd.f32 %v894, %v1054
        %v1056 = vpop.f32.mrb[0].mxu0
        %1057 = vmatprep.mubr.bf16.mxu0 %v539
        %1058 = vmatmul.mubr.bf16.gmra.mrb[0].mxu0 %v538
        %v1059 = vpop.f32.mrb[0].mxu0
        %v1060 = vadd.f32 %v899, %v1059
        %v1061 = vpop.f32.mrb[0].mxu0
        %v1062 = vpop.f32.mrb[0].mxu0
        %v1063 = vadd.f32 %v902, %v1062
        %v1064 = vpop.f32.mrb[0].mxu0
        %1065 = vmatprep.mubr.bf16.mxu0 %v543
        %1066 = vmatmul.mubr.bf16.gmra.mrb[0].mxu0 %v542
        %v1067 = vpop.f32.mrb[0].mxu0
        %v1068 = vadd.f32 %v907, %v1067
        %v1069 = vpop.f32.mrb[0].mxu0
        %v1070 = vpop.f32.mrb[0].mxu0
        %v1071 = vadd.f32 %v910, %v1070
        %v1072 = vpop.f32.mrb[0].mxu0
        %1073 = vmatprep.mubr.bf16.mxu0 %v547
        %1074 = vmatmul.mubr.bf16.gmra.mrb[0].mxu0 %v546
        %v1075 = vpop.f32.mrb[0].mxu0
        %v1076 = vadd.f32 %v915, %v1075
        %v1077 = vpop.f32.mrb[0].mxu0
        %v1078 = vpop.f32.mrb[0].mxu0
        %v1079 = vadd.f32 %v918, %v1078
        %v1080 = vpop.f32.mrb[0].mxu0
        %1081 = vmatprep.mubr.bf16.mxu0 %v551
        %1082 = vmatmul.mubr.bf16.gmra.mrb[0].mxu0 %v550
        %v1083 = vpop.f32.mrb[0].mxu0
        %v1084 = vadd.f32 %v923, %v1083
        %v1085 = vpop.f32.mrb[0].mxu0
        %v1086 = vpop.f32.mrb[0].mxu0
        %v1087 = vadd.f32 %v926, %v1086
        %v1088 = vpop.f32.mrb[0].mxu0
        %1089 = vmatprep.mubr.bf16.mxu0 %v555
        %1090 = vmatmul.mubr.bf16.gmra.mrb[0].mxu0 %v554
        %v1091 = vpop.f32.mrb[0].mxu0
        %v1092 = vadd.f32 %v931, %v1091
        %v1093 = vpop.f32.mrb[0].mxu0
        %v1094 = vpop.f32.mrb[0].mxu0
        %v1095 = vadd.f32 %v934, %v1094
        %v1096 = vpop.f32.mrb[0].mxu0
        %1097 = vmatprep.mubr.bf16.mxu0 %v559
        %1098 = vmatmul.mubr.bf16.gmra.mrb[0].mxu0 %v558
        %v1099 = vpop.f32.mrb[0].mxu0
        %v1100 = vadd.f32 %v939, %v1099
        %v1101 = vpop.f32.mrb[0].mxu0
        %v1102 = vpop.f32.mrb[0].mxu0
        %v1103 = vadd.f32 %v942, %v1102
        %v1104 = vpop.f32.mrb[0].mxu0
        %1105 = vmatprep.mubr.bf16.mxu0 %v563
        %1106 = vmatmul.mubr.bf16.gmra.mrb[0].mxu0 %v562
        %v1107 = vpop.f32.mrb[0].mxu0
        %v1108 = vadd.f32 %v947, %v1107
        %v1109 = vpop.f32.mrb[0].mxu0
        %v1110 = vpop.f32.mrb[0].mxu0
        %v1111 = vadd.f32 %v950, %v1110
        %v1112 = vpop.f32.mrb[0].mxu0
        %1113 = vmatprep.mubr.bf16.mxu0 %v567
        %1114 = vmatmul.mubr.bf16.gmra.mrb[0].mxu0 %v566
        %v1115 = vpop.f32.mrb[0].mxu0
        %v1116 = vadd.f32 %v955, %v1115
        %v1117 = vpop.f32.mrb[0].mxu0
        %v1118 = vpop.f32.mrb[0].mxu0
        %v1119 = vadd.f32 %v958, %v1118
        %v1120 = vpop.f32.mrb[0].mxu0
        %1121 = vmatprep.mubr.bf16.mxu0 %v571
        %1122 = vmatmul.mubr.bf16.gmra.mrb[0].mxu0 %v570
        %v1123 = vpop.f32.mrb[0].mxu0
        %v1124 = vadd.f32 %v963, %v1123
        %v1125 = vpop.f32.mrb[0].mxu0
        %v1126 = vpop.f32.mrb[0].mxu0
        %v1127 = vadd.f32 %v966, %v1126
        %v1128 = vpop.f32.mrb[0].mxu0
        %1129 = vmatprep.mubr.bf16.mxu0 %v575
        %1130 = vmatmul.mubr.bf16.gmra.mrb[0].mxu0 %v574
        %v1131 = vpop.f32.mrb[0].mxu0
        %v1132 = vadd.f32 %v971, %v1131
        %v1133 = vpop.f32.mrb[0].mxu0
        %v1134 = vpop.f32.mrb[0].mxu0
        %v1135 = vadd.f32 %v974, %v1134
        %v1136 = vpop.f32.mrb[0].mxu0
        %1137 = vmatprep.mubr.bf16.mxu0 %v579
        %1138 = vmatmul.mubr.bf16.gmra.mrb[0].mxu0 %v578
        %v1139 = vpop.f32.mrb[0].mxu0
        %v1140 = vadd.f32 %v979, %v1139
        %v1141 = vpop.f32.mrb[0].mxu0
        %v1142 = vpop.f32.mrb[0].mxu0
        %v1143 = vadd.f32 %v982, %v1142
        %v1144 = vpop.f32.mrb[0].mxu0
        %1145 = vmatprep.mubr.bf16.mxu0 %v583
        %1146 = vmatmul.mubr.bf16.gmra.mrb[0].mxu0 %v582
        %v1147 = vpop.f32.mrb[0].mxu0
        %v1148 = vadd.f32 %v987, %v1147
        %v1149 = vpop.f32.mrb[0].mxu0
        %v1150 = vpop.f32.mrb[0].mxu0
        %v1151 = vadd.f32 %v990, %v1150
        %v1152 = vpop.f32.mrb[0].mxu0
        %1153 = vmatprep.mubr.bf16.mxu0 %v587
        %1154 = vmatmul.mubr.bf16.gmra.mrb[0].mxu0 %v586
        %v1155 = vpop.f32.mrb[0].mxu0
        %v1156 = vadd.f32 %v995, %v1155
        %v1157 = vpop.f32.mrb[0].mxu0
        %v1158 = vpop.f32.mrb[0].mxu0
        %v1159 = vadd.f32 %v998, %v1158
        %v1160 = vpop.f32.mrb[0].mxu0
        %1161 = vmatprep.mubr.bf16.mxu0 %v591
        %1162 = vmatmul.mubr.bf16.gmra.mrb[0].mxu0 %v590
        %v1163 = vpop.f32.mrb[0].mxu0
        %v1164 = vadd.f32 %v1003, %v1163
        %v1165 = vpop.f32.mrb[0].mxu0
        %v1166 = vpop.f32.mrb[0].mxu0
        %v1167 = vadd.f32 %v1006, %v1166
        %v1168 = vpop.f32.mrb[0].mxu0
        %1169 = vdwg.mxu0
        %v1170 = vmax.f32 %v1044, 0.0
        %v1171 = vmax.f32 %v1047, 0.0
        %v1172 = vmax.f32 %v1052, 0.0
        %v1173 = vmax.f32 %v1055, 0.0
        %v1174 = vmax.f32 %v1060, 0.0
        %v1175 = vmax.f32 %v1063, 0.0
        %v1176 = vmax.f32 %v1068, 0.0
        %v1177 = vmax.f32 %v1071, 0.0
        %v1178 = vmax.f32 %v1076, 0.0
        %v1179 = vmax.f32 %v1079, 0.0
        %v1180 = vmax.f32 %v1084, 0.0
        %v1181 = vmax.f32 %v1087, 0.0
        %v1182 = vmax.f32 %v1092, 0.0
        %v1183 = vmax.f32 %v1095, 0.0
        %v1184 = vmax.f32 %v1100, 0.0
        %v1185 = vmax.f32 %v1103, 0.0
        %v1186 = vmax.f32 %v1108, 0.0
        %v1187 = vmax.f32 %v1111, 0.0
        %v1188 = vmax.f32 %v1116, 0.0
        %v1189 = vmax.f32 %v1119, 0.0
        %v1190 = vmax.f32 %v1124, 0.0
        %v1191 = vmax.f32 %v1127, 0.0
        %v1192 = vmax.f32 %v1132, 0.0
        %v1193 = vmax.f32 %v1135, 0.0
        %v1194 = vmax.f32 %v1140, 0.0
        %v1195 = vmax.f32 %v1143, 0.0
        %v1196 = vmax.f32 %v1148, 0.0
        %v1197 = vmax.f32 %v1151, 0.0
        %v1198 = vmax.f32 %v1156, 0.0
        %v1199 = vmax.f32 %v1159, 0.0
        %v1200 = vmax.f32 %v1164, 0.0
        %v1201 = vmax.f32 %v1167, 0.0
        %v1202 = vpack.c.bf16 %v1171, %v1170
        %v1203 = vpack.c.bf16 %v1173, %v1172
        %v1204 = vpack.c.bf16 %v1175, %v1174
        %v1205 = vpack.c.bf16 %v1177, %v1176
        %v1206 = vpack.c.bf16 %v1179, %v1178
        %v1207 = vpack.c.bf16 %v1181, %v1180
        %v1208 = vpack.c.bf16 %v1183, %v1182
        %v1209 = vpack.c.bf16 %v1185, %v1184
        %v1210 = vpack.c.bf16 %v1187, %v1186
        %v1211 = vpack.c.bf16 %v1189, %v1188
        %v1212 = vpack.c.bf16 %v1191, %v1190
        %v1213 = vpack.c.bf16 %v1193, %v1192
        %v1214 = vpack.c.bf16 %v1195, %v1194
        %v1215 = vpack.c.bf16 %v1197, %v1196
        %v1216 = vpack.c.bf16 %v1199, %v1198
        %v1217 = vpack.c.bf16 %v1201, %v1200
        %v1234 = vunpack.c.l.b16 %v1202
        %v1235 = vunpack.c.h.b16 %v1202
        %v1236 = vunpack.c.l.b16 %v1203
        %v1237 = vunpack.c.h.b16 %v1203
        %v1238 = vunpack.c.l.b16 %v1204
        %v1239 = vunpack.c.h.b16 %v1204
        %v1240 = vunpack.c.l.b16 %v1205
        %v1241 = vunpack.c.h.b16 %v1205
        %v1242 = vunpack.c.l.b16 %v1206
        %v1243 = vunpack.c.h.b16 %v1206
        %v1244 = vunpack.c.l.b16 %v1207
        %v1245 = vunpack.c.h.b16 %v1207
        %v1246 = vunpack.c.l.b16 %v1208
        %v1247 = vunpack.c.h.b16 %v1208
        %v1248 = vunpack.c.l.b16 %v1209
        %v1249 = vunpack.c.h.b16 %v1209
        %v1250 = vunpack.c.l.b16 %v1210
        %v1251 = vunpack.c.h.b16 %v1210
        %v1252 = vunpack.c.l.b16 %v1211
        %v1253 = vunpack.c.h.b16 %v1211
        %v1254 = vunpack.c.l.b16 %v1212
        %v1255 = vunpack.c.h.b16 %v1212
        %v1256 = vunpack.c.l.b16 %v1213
        %v1257 = vunpack.c.h.b16 %v1213
        %v1258 = vunpack.c.l.b16 %v1214
        %v1259 = vunpack.c.h.b16 %v1214
        %v1260 = vunpack.c.l.b16 %v1215
        %v1261 = vunpack.c.h.b16 %v1215
        %v1262 = vunpack.c.l.b16 %v1216
        %v1263 = vunpack.c.h.b16 %v1216
        %v1264 = vunpack.c.l.b16 %v1217
        %v1265 = vunpack.c.h.b16 %v1217
        %v1266 = vpack.c.b16 %v1234, %v1234
        %v1267 = vpack.c.b16 %v1235, %v1235
        %v1268 = vpack.c.b16 %v1236, %v1236
        %v1269 = vpack.c.b16 %v1237, %v1237
        %v1270 = vpack.c.b16 %v1238, %v1238
        %v1271 = vpack.c.b16 %v1239, %v1239
        %v1272 = vpack.c.b16 %v1240, %v1240
        %v1273 = vpack.c.b16 %v1241, %v1241
        %v1274 = vpack.c.b16 %v1242, %v1242
        %v1275 = vpack.c.b16 %v1243, %v1243
        %v1276 = vpack.c.b16 %v1244, %v1244
        %v1277 = vpack.c.b16 %v1245, %v1245
        %v1278 = vpack.c.b16 %v1246, %v1246
        %v1279 = vpack.c.b16 %v1247, %v1247
        %v1280 = vpack.c.b16 %v1248, %v1248
        %v1281 = vpack.c.b16 %v1249, %v1249
        %v1282 = vpack.c.b16 %v1250, %v1250
        %v1283 = vpack.c.b16 %v1251, %v1251
        %v1284 = vpack.c.b16 %v1252, %v1252
        %v1285 = vpack.c.b16 %v1253, %v1253
        %v1286 = vpack.c.b16 %v1254, %v1254
        %v1287 = vpack.c.b16 %v1255, %v1255
        %v1288 = vpack.c.b16 %v1256, %v1256
        %v1289 = vpack.c.b16 %v1257, %v1257
        %v1290 = vpack.c.b16 %v1258, %v1258
        %v1291 = vpack.c.b16 %v1259, %v1259
        %v1292 = vpack.c.b16 %v1260, %v1260
        %v1293 = vpack.c.b16 %v1261, %v1261
        %v1294 = vpack.c.b16 %v1262, %v1262
        %v1295 = vpack.c.b16 %v1263, %v1263
        %v1296 = vpack.c.b16 %v1264, %v1264
        %v1297 = vpack.c.b16 %v1265, %v1265
        %vm1330 = vcmask 519168
        %1331 = vst.msk [vmem:[%s177] sm:$0xf] %vm1330, %v1266
        %1332 = vst.msk [vmem:[%s177 + $0x4] sm:$0xf] %vm1330, %v1267
        %1333 = vst.msk [vmem:[%s177 + $0x8] sm:$0xf] %vm1330, %v1268
        %1334 = vst.msk [vmem:[%s177 + $0xc] sm:$0xf] %vm1330, %v1269
        %1335 = vst.msk [vmem:[%s177 + $0x10] sm:$0xf] %vm1330, %v1270
        %1336 = vst.msk [vmem:[%s177 + $0x14] sm:$0xf] %vm1330, %v1271
        %1337 = vst.msk [vmem:[%s177 + $0x18] sm:$0xf] %vm1330, %v1272
        %1338 = vst.msk [vmem:[%s177 + $0x1c] sm:$0xf] %vm1330, %v1273
        %1339 = vst.msk [vmem:[%s177 + $0x20] sm:$0xf] %vm1330, %v1274
        %1340 = vst.msk [vmem:[%s177 + $0x24] sm:$0xf] %vm1330, %v1275
        %1341 = vst.msk [vmem:[%s177 + $0x28] sm:$0xf] %vm1330, %v1276
        %1342 = vst.msk [vmem:[%s177 + $0x2c] sm:$0xf] %vm1330, %v1277
        %1343 = vst.msk [vmem:[%s177 + $0x30] sm:$0xf] %vm1330, %v1278
        %1344 = vst.msk [vmem:[%s177 + $0x34] sm:$0xf] %vm1330, %v1279
        %1345 = vst.msk [vmem:[%s177 + $0x38] sm:$0xf] %vm1330, %v1280
        %1346 = vst.msk [vmem:[%s177 + $0x3c] sm:$0xf] %vm1330, %v1281
        %1347 = vst.msk [vmem:[%s177 + $0x40] sm:$0xf] %vm1330, %v1282
        %1348 = vst.msk [vmem:[%s177 + $0x44] sm:$0xf] %vm1330, %v1283
        %1349 = vst.msk [vmem:[%s177 + $0x48] sm:$0xf] %vm1330, %v1284
        %1350 = vst.msk [vmem:[%s177 + $0x4c] sm:$0xf] %vm1330, %v1285
        %1351 = vst.msk [vmem:[%s177 + $0x50] sm:$0xf] %vm1330, %v1286
        %1352 = vst.msk [vmem:[%s177 + $0x54] sm:$0xf] %vm1330, %v1287
        %1353 = vst.msk [vmem:[%s177 + $0x58] sm:$0xf] %vm1330, %v1288
        %1354 = vst.msk [vmem:[%s177 + $0x5c] sm:$0xf] %vm1330, %v1289
        %1355 = vst.msk [vmem:[%s177 + $0x60] sm:$0xf] %vm1330, %v1290
        %1356 = vst.msk [vmem:[%s177 + $0x64] sm:$0xf] %vm1330, %v1291
        %1357 = vst.msk [vmem:[%s177 + $0x68] sm:$0xf] %vm1330, %v1292
        %1358 = vst.msk [vmem:[%s177 + $0x6c] sm:$0xf] %vm1330, %v1293
        %1359 = vst.msk [vmem:[%s177 + $0x70] sm:$0xf] %vm1330, %v1294
        %1360 = vst.msk [vmem:[%s177 + $0x74] sm:$0xf] %vm1330, %v1295
        %1361 = vst.msk [vmem:[%s177 + $0x78] sm:$0xf] %vm1330, %v1296
        %1362 = vst.msk [vmem:[%s177 + $0x7c] sm:$0xf] %vm1330, %v1297
        %s1363 = sand.u32 %s90, 1
        %s1364 = sand.u32 %s90, 1
        %s1365 = smul.addr %s1364, 128
        %s1366 = scalar_lea.vmem [#allocation2], %s1365
        // Predicated region
        $region33: #{encoder_forward.6} parent=31 // pred_check
          %p1367 = pneg %p100
        $region34: #{encoder_forward.6} parent=31 // pred_check_branch
          %1369 = sbr.rel (%p1367) target = $region36
        $region35: #{encoder_forward.6} parent=31 // pred_region
          %s1370 = smul.u32 32, %s14
          %s1371 = ssub.s32 49, %s1370
          %p1372 = scmp.lt.s32.totalorder %s1371, 32
          %s1373 = scalar_select %p1372, %s1371, 32
          %s1374 = smul.u32 64, %s1373
          %p1375 = scmp.ne.s32.totalorder 0, %s1374
          %s1376 = smul.addr %s1370, 4
          %s1377 = scalar_lea.vmem %s3, %s1376
          // Predicated region
          $region37: #{encoder_forward.6} parent=35 // pred_check
            %p1378 = pneg %p1375
          $region38: #{encoder_forward.6} parent=35 // pred_check_branch
            %1380 = sbr.rel (%p1378) target = $region40
          $region39: #{encoder_forward.6} parent=35 // pred_region
            // Predicated region
            $region41: #{encoder_forward.6} parent=39 // pred_check
              _
            $region42: #{encoder_forward.6} parent=39 // pred_check_branch
              %1382 = sbr.rel target = $region44
            $region43: #{encoder_forward.6} parent=39 // pred_region
              // Predicated region
              $region63: #{encoder_forward.6} parent=43 // pred_check
                _
              $region64: #{encoder_forward.6} parent=43 // pred_check_branch
                %1493 = sbr.rel (0) target = $region66
              $region65: #{encoder_forward.6} parent=43 // pred_region
                %s1495 = sshrl.u32 %s1373, 5
                // While loop
                $region67: #{encoder_forward.6} parent=65 // loop_pre_header
                  _
                $region68: #{encoder_forward.6} parent=65 // loop_header
                  %s1497 = sphi 0, %s1499
                  %p1498 = scmp.ge.s32.totalorder %s1497, %s1495
                  %s1502 = sphi 0, %s1571
                  %s1503 = sphi %s1366, %s1574
                  %s1504 = sphi %s1377, %s1575
                $region69: #{encoder_forward.6} parent=65 // loop_header_branch
                  %1501 = sbr.rel (%p1498) target = $region73
                $region70: #{encoder_forward.6} parent=65 // loop_body
                  %v1505 = vld [vmem:[%s1503] sm:$0xf]
                  %1506 = vst [vmem:[%s1504] sm:$0xf] %v1505
                  %v1507 = vld [vmem:[%s1503 + $0x4] sm:$0xf]
                  %1508 = vst [vmem:[%s1504 + $0x4] sm:$0xf] %v1507
                  %v1509 = vld [vmem:[%s1503 + $0x8] sm:$0xf]
                  %1510 = vst [vmem:[%s1504 + $0x8] sm:$0xf] %v1509
                  %v1511 = vld [vmem:[%s1503 + $0xc] sm:$0xf]
                  %1512 = vst [vmem:[%s1504 + $0xc] sm:$0xf] %v1511
                  %v1513 = vld [vmem:[%s1503 + $0x10] sm:$0xf]
                  %1514 = vst [vmem:[%s1504 + $0x10] sm:$0xf] %v1513
                  %v1515 = vld [vmem:[%s1503 + $0x14] sm:$0xf]
                  %1516 = vst [vmem:[%s1504 + $0x14] sm:$0xf] %v1515
                  %v1517 = vld [vmem:[%s1503 + $0x18] sm:$0xf]
                  %1518 = vst [vmem:[%s1504 + $0x18] sm:$0xf] %v1517
                  %v1519 = vld [vmem:[%s1503 + $0x1c] sm:$0xf]
                  %1520 = vst [vmem:[%s1504 + $0x1c] sm:$0xf] %v1519
                  %v1521 = vld [vmem:[%s1503 + $0x20] sm:$0xf]
                  %1522 = vst [vmem:[%s1504 + $0x20] sm:$0xf] %v1521
                  %v1523 = vld [vmem:[%s1503 + $0x24] sm:$0xf]
                  %1524 = vst [vmem:[%s1504 + $0x24] sm:$0xf] %v1523
                  %v1525 = vld [vmem:[%s1503 + $0x28] sm:$0xf]
                  %1526 = vst [vmem:[%s1504 + $0x28] sm:$0xf] %v1525
                  %v1527 = vld [vmem:[%s1503 + $0x2c] sm:$0xf]
                  %1528 = vst [vmem:[%s1504 + $0x2c] sm:$0xf] %v1527
                  %v1529 = vld [vmem:[%s1503 + $0x30] sm:$0xf]
                  %1530 = vst [vmem:[%s1504 + $0x30] sm:$0xf] %v1529
                  %v1531 = vld [vmem:[%s1503 + $0x34] sm:$0xf]
                  %1532 = vst [vmem:[%s1504 + $0x34] sm:$0xf] %v1531
                  %v1533 = vld [vmem:[%s1503 + $0x38] sm:$0xf]
                  %1534 = vst [vmem:[%s1504 + $0x38] sm:$0xf] %v1533
                  %v1535 = vld [vmem:[%s1503 + $0x3c] sm:$0xf]
                  %1536 = vst [vmem:[%s1504 + $0x3c] sm:$0xf] %v1535
                  %v1537 = vld [vmem:[%s1503 + $0x40] sm:$0xf]
                  %1538 = vst [vmem:[%s1504 + $0x40] sm:$0xf] %v1537
                  %v1539 = vld [vmem:[%s1503 + $0x44] sm:$0xf]
                  %1540 = vst [vmem:[%s1504 + $0x44] sm:$0xf] %v1539
                  %v1541 = vld [vmem:[%s1503 + $0x48] sm:$0xf]
                  %1542 = vst [vmem:[%s1504 + $0x48] sm:$0xf] %v1541
                  %v1543 = vld [vmem:[%s1503 + $0x4c] sm:$0xf]
                  %1544 = vst [vmem:[%s1504 + $0x4c] sm:$0xf] %v1543
                  %v1545 = vld [vmem:[%s1503 + $0x50] sm:$0xf]
                  %1546 = vst [vmem:[%s1504 + $0x50] sm:$0xf] %v1545
                  %v1547 = vld [vmem:[%s1503 + $0x54] sm:$0xf]
                  %1548 = vst [vmem:[%s1504 + $0x54] sm:$0xf] %v1547
                  %v1549 = vld [vmem:[%s1503 + $0x58] sm:$0xf]
                  %1550 = vst [vmem:[%s1504 + $0x58] sm:$0xf] %v1549
                  %v1551 = vld [vmem:[%s1503 + $0x5c] sm:$0xf]
                  %1552 = vst [vmem:[%s1504 + $0x5c] sm:$0xf] %v1551
                  %v1553 = vld [vmem:[%s1503 + $0x60] sm:$0xf]
                  %1554 = vst [vmem:[%s1504 + $0x60] sm:$0xf] %v1553
                  %v1555 = vld [vmem:[%s1503 + $0x64] sm:$0xf]
                  %1556 = vst [vmem:[%s1504 + $0x64] sm:$0xf] %v1555
                  %v1557 = vld [vmem:[%s1503 + $0x68] sm:$0xf]
                  %1558 = vst [vmem:[%s1504 + $0x68] sm:$0xf] %v1557
                  %v1559 = vld [vmem:[%s1503 + $0x6c] sm:$0xf]
                  %1560 = vst [vmem:[%s1504 + $0x6c] sm:$0xf] %v1559
                  %v1561 = vld [vmem:[%s1503 + $0x70] sm:$0xf]
                  %1562 = vst [vmem:[%s1504 + $0x70] sm:$0xf] %v1561
                  %v1563 = vld [vmem:[%s1503 + $0x74] sm:$0xf]
                  %1564 = vst [vmem:[%s1504 + $0x74] sm:$0xf] %v1563
                  %v1565 = vld [vmem:[%s1503 + $0x78] sm:$0xf]
                  %1566 = vst [vmem:[%s1504 + $0x78] sm:$0xf] %v1565
                  %v1567 = vld [vmem:[%s1503 + $0x7c] sm:$0xf]
                  %1568 = vst [vmem:[%s1504 + $0x7c] sm:$0xf] %v1567
                  %s1569 = sadd.s32 1, %s1502
                  %p1570 = scmp.ge.s32.totalorder %s1569, %s1495
                  %s1571 = scalar_select %p1570, 0, %s1569
                  %s1572 = smul.u32 %s1571, 128
                  %s1573 = smul.u32 %s1571, 128
                  %s1574 = scalar_lea.vmem %s1366, %s1572 [#allocation2]
                  %s1575 = scalar_lea.vmem %s1377, %s1573
                $region71: #{encoder_forward.6} parent=65 // loop_footer
                  %s1499 = sadd.s32 %s1497, 1
                $region72: #{encoder_forward.6} parent=65 // loop_footer_branch
                  %1496 = sbr.rel target = $region68
                $region73: #{encoder_forward.6} parent=65 // loop_exit
                  _
                %s1576 = sshrl.u32 %s1373, 5
                %s1577 = sand.u32 %s1373, 31
                %s1578 = smul.u32 %s1576, 32
                %s1579 = smul.u32 4, %s1578
                %s1580 = scalar_lea.vmem %s1366, %s1579 [#allocation2]
                %s1581 = smul.u32 4, %s1578
                %s1582 = scalar_lea.vmem %s1377, %s1581
                // While loop
                $region74: #{encoder_forward.6} parent=65 // loop_pre_header
                  _
                $region75: #{encoder_forward.6} parent=65 // loop_header
                  %s1584 = sphi 0, %s1586
                  %p1585 = scmp.ge.s32.totalorder %s1584, %s1577
                  %s1589 = sphi 0, %s1596
                  %s1590 = sphi %s1580, %s1599
                  %s1591 = sphi %s1582, %s1600
                $region76: #{encoder_forward.6} parent=65 // loop_header_branch
                  %1588 = sbr.rel (%p1585) target = $region80
                $region77: #{encoder_forward.6} parent=65 // loop_body
                  %v1592 = vld [vmem:[%s1590] sm:$0xf]
                  %1593 = vst [vmem:[%s1591] sm:$0xf] %v1592
                  %s1594 = sadd.s32 1, %s1589
                  %p1595 = scmp.ge.s32.totalorder %s1594, %s1577
                  %s1596 = scalar_select %p1595, 0, %s1594
                  %s1597 = smul.u32 %s1596, 4
                  %s1598 = smul.u32 %s1596, 4
                  %s1599 = scalar_lea.vmem %s1580, %s1597 [#allocation2]
                  %s1600 = scalar_lea.vmem %s1582, %s1598
                $region78: #{encoder_forward.6} parent=65 // loop_footer
                  %s1586 = sadd.s32 %s1584, 1
                $region79: #{encoder_forward.6} parent=65 // loop_footer_branch
                  %1583 = sbr.rel target = $region75
                $region80: #{encoder_forward.6} parent=65 // loop_exit
                  _
              $region66: #{encoder_forward.6} parent=43 // pred_fallthru
                _
            $region44: #{encoder_forward.6} parent=39 // pred_fallthru
              _
            // Predicated region
            $region45: #{encoder_forward.6} parent=39 // pred_check
              _
            $region46: #{encoder_forward.6} parent=39 // pred_check_branch
              %1384 = sbr.rel (0) target = $region48
            $region47: #{encoder_forward.6} parent=39 // pred_region
              %s1386 = sshrl.u32 %s1373, 5
              // While loop
              $region49: #{encoder_forward.6} parent=47 // loop_pre_header
                _
              $region50: #{encoder_forward.6} parent=47 // loop_header
                %s1388 = sphi 0, %s1390
                %p1389 = scmp.ge.s32.totalorder %s1388, %s1386
                %s1393 = sphi 0, %s1462
                %s1394 = sphi %s1366, %s1465
                %s1395 = sphi %s1377, %s1466
              $region51: #{encoder_forward.6} parent=47 // loop_header_branch
                %1392 = sbr.rel (%p1389) target = $region55
              $region52: #{encoder_forward.6} parent=47 // loop_body
                %v1396 = vld [vmem:[%s1394] sm:$0xf]
                %1397 = vst [vmem:[%s1395] sm:$0xf] %v1396
                %v1398 = vld [vmem:[%s1394 + $0x4] sm:$0xf]
                %1399 = vst [vmem:[%s1395 + $0x4] sm:$0xf] %v1398
                %v1400 = vld [vmem:[%s1394 + $0x8] sm:$0xf]
                %1401 = vst [vmem:[%s1395 + $0x8] sm:$0xf] %v1400
                %v1402 = vld [vmem:[%s1394 + $0xc] sm:$0xf]
                %1403 = vst [vmem:[%s1395 + $0xc] sm:$0xf] %v1402
                %v1404 = vld [vmem:[%s1394 + $0x10] sm:$0xf]
                %1405 = vst [vmem:[%s1395 + $0x10] sm:$0xf] %v1404
                %v1406 = vld [vmem:[%s1394 + $0x14] sm:$0xf]
                %1407 = vst [vmem:[%s1395 + $0x14] sm:$0xf] %v1406
                %v1408 = vld [vmem:[%s1394 + $0x18] sm:$0xf]
                %1409 = vst [vmem:[%s1395 + $0x18] sm:$0xf] %v1408
                %v1410 = vld [vmem:[%s1394 + $0x1c] sm:$0xf]
                %1411 = vst [vmem:[%s1395 + $0x1c] sm:$0xf] %v1410
                %v1412 = vld [vmem:[%s1394 + $0x20] sm:$0xf]
                %1413 = vst [vmem:[%s1395 + $0x20] sm:$0xf] %v1412
                %v1414 = vld [vmem:[%s1394 + $0x24] sm:$0xf]
                %1415 = vst [vmem:[%s1395 + $0x24] sm:$0xf] %v1414
                %v1416 = vld [vmem:[%s1394 + $0x28] sm:$0xf]
                %1417 = vst [vmem:[%s1395 + $0x28] sm:$0xf] %v1416
                %v1418 = vld [vmem:[%s1394 + $0x2c] sm:$0xf]
                %1419 = vst [vmem:[%s1395 + $0x2c] sm:$0xf] %v1418
                %v1420 = vld [vmem:[%s1394 + $0x30] sm:$0xf]
                %1421 = vst [vmem:[%s1395 + $0x30] sm:$0xf] %v1420
                %v1422 = vld [vmem:[%s1394 + $0x34] sm:$0xf]
                %1423 = vst [vmem:[%s1395 + $0x34] sm:$0xf] %v1422
                %v1424 = vld [vmem:[%s1394 + $0x38] sm:$0xf]
                %1425 = vst [vmem:[%s1395 + $0x38] sm:$0xf] %v1424
                %v1426 = vld [vmem:[%s1394 + $0x3c] sm:$0xf]
                %1427 = vst [vmem:[%s1395 + $0x3c] sm:$0xf] %v1426
                %v1428 = vld [vmem:[%s1394 + $0x40] sm:$0xf]
                %1429 = vst [vmem:[%s1395 + $0x40] sm:$0xf] %v1428
                %v1430 = vld [vmem:[%s1394 + $0x44] sm:$0xf]
                %1431 = vst [vmem:[%s1395 + $0x44] sm:$0xf] %v1430
                %v1432 = vld [vmem:[%s1394 + $0x48] sm:$0xf]
                %1433 = vst [vmem:[%s1395 + $0x48] sm:$0xf] %v1432
                %v1434 = vld [vmem:[%s1394 + $0x4c] sm:$0xf]
                %1435 = vst [vmem:[%s1395 + $0x4c] sm:$0xf] %v1434
                %v1436 = vld [vmem:[%s1394 + $0x50] sm:$0xf]
                %1437 = vst [vmem:[%s1395 + $0x50] sm:$0xf] %v1436
                %v1438 = vld [vmem:[%s1394 + $0x54] sm:$0xf]
                %1439 = vst [vmem:[%s1395 + $0x54] sm:$0xf] %v1438
                %v1440 = vld [vmem:[%s1394 + $0x58] sm:$0xf]
                %1441 = vst [vmem:[%s1395 + $0x58] sm:$0xf] %v1440
                %v1442 = vld [vmem:[%s1394 + $0x5c] sm:$0xf]
                %1443 = vst [vmem:[%s1395 + $0x5c] sm:$0xf] %v1442
                %v1444 = vld [vmem:[%s1394 + $0x60] sm:$0xf]
                %1445 = vst [vmem:[%s1395 + $0x60] sm:$0xf] %v1444
                %v1446 = vld [vmem:[%s1394 + $0x64] sm:$0xf]
                %1447 = vst [vmem:[%s1395 + $0x64] sm:$0xf] %v1446
                %v1448 = vld [vmem:[%s1394 + $0x68] sm:$0xf]
                %1449 = vst [vmem:[%s1395 + $0x68] sm:$0xf] %v1448
                %v1450 = vld [vmem:[%s1394 + $0x6c] sm:$0xf]
                %1451 = vst [vmem:[%s1395 + $0x6c] sm:$0xf] %v1450
                %v1452 = vld [vmem:[%s1394 + $0x70] sm:$0xf]
                %1453 = vst [vmem:[%s1395 + $0x70] sm:$0xf] %v1452
                %v1454 = vld [vmem:[%s1394 + $0x74] sm:$0xf]
                %1455 = vst [vmem:[%s1395 + $0x74] sm:$0xf] %v1454
                %v1456 = vld [vmem:[%s1394 + $0x78] sm:$0xf]
                %1457 = vst [vmem:[%s1395 + $0x78] sm:$0xf] %v1456
                %v1458 = vld [vmem:[%s1394 + $0x7c] sm:$0xf]
                %1459 = vst [vmem:[%s1395 + $0x7c] sm:$0xf] %v1458
                %s1460 = sadd.s32 1, %s1393
                %p1461 = scmp.ge.s32.totalorder %s1460, %s1386
                %s1462 = scalar_select %p1461, 0, %s1460
                %s1463 = smul.u32 %s1462, 128
                %s1464 = smul.u32 %s1462, 128
                %s1465 = scalar_lea.vmem %s1366, %s1463 [#allocation2]
                %s1466 = scalar_lea.vmem %s1377, %s1464
              $region53: #{encoder_forward.6} parent=47 // loop_footer
                %s1390 = sadd.s32 %s1388, 1
              $region54: #{encoder_forward.6} parent=47 // loop_footer_branch
                %1387 = sbr.rel target = $region50
              $region55: #{encoder_forward.6} parent=47 // loop_exit
                _
              %s1467 = sshrl.u32 %s1373, 5
              %s1468 = sand.u32 %s1373, 31
              %s1469 = smul.u32 %s1467, 32
              %s1470 = smul.u32 4, %s1469
              %s1471 = scalar_lea.vmem %s1366, %s1470 [#allocation2]
              %s1472 = smul.u32 4, %s1469
              %s1473 = scalar_lea.vmem %s1377, %s1472
              // While loop
              $region56: #{encoder_forward.6} parent=47 // loop_pre_header
                _
              $region57: #{encoder_forward.6} parent=47 // loop_header
                %s1475 = sphi 0, %s1477
                %p1476 = scmp.ge.s32.totalorder %s1475, %s1468
                %s1480 = sphi 0, %s1487
                %s1481 = sphi %s1471, %s1490
                %s1482 = sphi %s1473, %s1491
              $region58: #{encoder_forward.6} parent=47 // loop_header_branch
                %1479 = sbr.rel (%p1476) target = $region62
              $region59: #{encoder_forward.6} parent=47 // loop_body
                %v1483 = vld [vmem:[%s1481] sm:$0xf]
                %1484 = vst [vmem:[%s1482] sm:$0xf] %v1483
                %s1485 = sadd.s32 1, %s1480
                %p1486 = scmp.ge.s32.totalorder %s1485, %s1468
                %s1487 = scalar_select %p1486, 0, %s1485
                %s1488 = smul.u32 %s1487, 4
                %s1489 = smul.u32 %s1487, 4
                %s1490 = scalar_lea.vmem %s1471, %s1488 [#allocation2]
                %s1491 = scalar_lea.vmem %s1473, %s1489
              $region60: #{encoder_forward.6} parent=47 // loop_footer
                %s1477 = sadd.s32 %s1475, 1
              $region61: #{encoder_forward.6} parent=47 // loop_footer_branch
                %1474 = sbr.rel target = $region57
              $region62: #{encoder_forward.6} parent=47 // loop_exit
                _
            $region48: #{encoder_forward.6} parent=39 // pred_fallthru
              _
          $region40: #{encoder_forward.6} parent=35 // pred_fallthru
            _
          %1601 = vnop
        $region36: #{encoder_forward.6} parent=31 // pred_fallthru
          _
      $region32: #{encoder_forward.6} parent=5 // pred_fallthru
        _
      %p1602 = scmp.le.s32.totalorder 2, %s9
      // Predicated region
      $region81: #{encoder_forward.6} parent=5 // pred_check
        %p1603 = pneg %p1602
      $region82: #{encoder_forward.6} parent=5 // pred_check_branch
        %1605 = sbr.rel (%p1603) target = $region84
      $region83: #{encoder_forward.6} parent=5 // pred_region
        %s1606 = ssub.s32 %s9, 2
        // Predicated region
        $region85: #{encoder_forward.6} parent=83 // pred_check
          %p1607 = pneg %p106
        $region86: #{encoder_forward.6} parent=83 // pred_check_branch
          %1609 = sbr.rel (%p1607) target = $region88
        $region87: #{encoder_forward.6} parent=83 // pred_region
          %s1610 = sand.u32 %s91, 1
          %s1611 = sand.u32 %s91, 1
          %s1612 = smul.addr %s1611, 128
          %s1613 = scalar_lea.vmem [#allocation2], %s1612
        $region88: #{encoder_forward.6} parent=83 // pred_fallthru
          _
      $region84: #{encoder_forward.6} parent=5 // pred_fallthru
        _
    $region6: #{encoder_forward.6} parent=1 // loop_footer
      %s13 = sadd.s32 1, %s9
    $region7: #{encoder_forward.6} parent=1 // loop_footer_branch
      %8 = sbr.rel target = $region3
    $region8: #{encoder_forward.6} parent=1 // loop_exit
      _

// kernel: encoder_forward.7
$region0: #{encoder_forward.7}
  #allocation0 [shape = 'u32[]', space=smem, size = 0x4, offset = 0x4, fixed_abs, tag = 'smem constant byte address 0x4 - core index']
  #allocation1 [shape = 'u32[144,128]{1,0:T(1,128)}', space=vmem, size = 0x12000, scoped, tag = 'internal scratch']
  %s0 = inlined_call_operand.vmem [shape: bf16[72,1024], index: 0, kind: input, shape index: {}]
  %s1 = inlined_call_operand.vmem [shape: bf16[1024,128], index: 1, kind: input, shape index: {}]
  %s2 = inlined_call_operand.vmem [shape: f32[1,128], index: 2, kind: input, shape index: {}]
  %s3 = inlined_call_operand.vmem [shape: bf16[72,128], index: 3, kind: output, shape index: {}]
  %s4 = sld [smem:[#allocation0]]
  $region22: #{encoder_forward.7} parent=0
    _
  %s6 = ssub.s32 1, %s4
  %s7 = scalar_select 0, %s6, %s4
  // Predicated region
  $region2: #{encoder_forward.7} parent=0 // pred_check
    _
  $region3: #{encoder_forward.7} parent=0 // pred_check_branch
    %9 = sbr.rel (0) target = $region5
  $region4: #{encoder_forward.7} parent=0 // pred_region
    _
  $region5: #{encoder_forward.7} parent=0 // pred_fallthru
    _
  // Predicated region
  $region6: #{encoder_forward.7} parent=0 // pred_check
    _
  $region7: #{encoder_forward.7} parent=0 // pred_check_branch
    %11 = sbr.rel (0) target = $region9
  $region8: #{encoder_forward.7} parent=0 // pred_region
    _
  $region9: #{encoder_forward.7} parent=0 // pred_fallthru
    _
  // Predicated region
  $region10: #{encoder_forward.7} parent=0 // pred_check
    _
  $region11: #{encoder_forward.7} parent=0 // pred_check_branch
    %13 = sbr.rel (0) target = $region13
  $region12: #{encoder_forward.7} parent=0 // pred_region
    _
  $region13: #{encoder_forward.7} parent=0 // pred_fallthru
    _
  %v15 = vld [vmem:[%s0] sm:$0xff]
  %v16 = vld [vmem:[%s0 + $0x8] sm:$0xff]
  %v17 = vld [vmem:[%s0 + $0x10] sm:$0xff]
  %v18 = vld [vmem:[%s0 + $0x18] sm:$0xff]
  %v19 = vld [vmem:[%s0 + $0x20] sm:$0xff]
  %v20 = vld [vmem:[%s0 + $0x28] sm:$0xff]
  %v21 = vld [vmem:[%s0 + $0x30] sm:$0xff]
  %v22 = vld [vmem:[%s0 + $0x38] sm:$0xff]
  %v23 = vld [vmem:[%s0 + $0x40] sm:$0xff]
  %v24 = vld [vmem:[%s0 + $0x48] sm:$0xff]
  %v25 = vld [vmem:[%s0 + $0x50] sm:$0xff]
  %v26 = vld [vmem:[%s0 + $0x58] sm:$0xff]
  %v27 = vld [vmem:[%s0 + $0x60] sm:$0xff]
  %v28 = vld [vmem:[%s0 + $0x68] sm:$0xff]
  %v29 = vld [vmem:[%s0 + $0x70] sm:$0xff]
  %v30 = vld [vmem:[%s0 + $0x78] sm:$0xff]
  %v31 = vld [vmem:[%s0 + $0x80] sm:$0xff]
  %v32 = vld [vmem:[%s0 + $0x88] sm:$0xff]
  %v33 = vld [vmem:[%s0 + $0x90] sm:$0xff]
  %v34 = vld [vmem:[%s0 + $0x98] sm:$0xff]
  %v35 = vld [vmem:[%s0 + $0xa0] sm:$0xff]
  %v36 = vld [vmem:[%s0 + $0xa8] sm:$0xff]
  %v37 = vld [vmem:[%s0 + $0xb0] sm:$0xff]
  %v38 = vld [vmem:[%s0 + $0xb8] sm:$0xff]
  %v39 = vld [vmem:[%s0 + $0xc0] sm:$0xff]
  %v40 = vld [vmem:[%s0 + $0xc8] sm:$0xff]
  %v41 = vld [vmem:[%s0 + $0xd0] sm:$0xff]
  %v42 = vld [vmem:[%s0 + $0xd8] sm:$0xff]
  %v43 = vld [vmem:[%s0 + $0xe0] sm:$0xff]
  %v44 = vld [vmem:[%s0 + $0xe8] sm:$0xff]
  %v45 = vld [vmem:[%s0 + $0xf0] sm:$0xff]
  %v46 = vld [vmem:[%s0 + $0xf8] sm:$0xff]
  %v47 = vld [vmem:[%s0 + $0x100] sm:$0xff]
  %v48 = vld [vmem:[%s0 + $0x108] sm:$0xff]
  %v49 = vld [vmem:[%s0 + $0x110] sm:$0xff]
  %v50 = vld [vmem:[%s0 + $0x118] sm:$0xff]
  %v51 = vld [vmem:[%s1] sm:$0xf]
  %v52 = vld [vmem:[%s1 + $0x4] sm:$0xf]
  %v53 = vld [vmem:[%s1 + $0x8] sm:$0xf]
  %v54 = vld [vmem:[%s1 + $0xc] sm:$0xf]
  %v55 = vld [vmem:[%s1 + $0x10] sm:$0xf]
  %v56 = vld [vmem:[%s1 + $0x14] sm:$0xf]
  %v57 = vld [vmem:[%s1 + $0x18] sm:$0xf]
  %v58 = vld [vmem:[%s1 + $0x1c] sm:$0xf]
  %v59 = vld [vmem:[%s1 + $0x20] sm:$0xf]
  %v60 = vld [vmem:[%s1 + $0x24] sm:$0xf]
  %v61 = vld [vmem:[%s1 + $0x28] sm:$0xf]
  %v62 = vld [vmem:[%s1 + $0x2c] sm:$0xf]
  %v63 = vld [vmem:[%s1 + $0x30] sm:$0xf]
  %v64 = vld [vmem:[%s1 + $0x34] sm:$0xf]
  %v65 = vld [vmem:[%s1 + $0x38] sm:$0xf]
  %v66 = vld [vmem:[%s1 + $0x3c] sm:$0xf]
  %v67 = vld [vmem:[%s1 + $0x40] sm:$0xf]
  %v68 = vld [vmem:[%s1 + $0x44] sm:$0xf]
  %v69 = vld [vmem:[%s1 + $0x48] sm:$0xf]
  %v70 = vld [vmem:[%s1 + $0x4c] sm:$0xf]
  %v71 = vld [vmem:[%s1 + $0x50] sm:$0xf]
  %v72 = vld [vmem:[%s1 + $0x54] sm:$0xf]
  %v73 = vld [vmem:[%s1 + $0x58] sm:$0xf]
  %v74 = vld [vmem:[%s1 + $0x5c] sm:$0xf]
  %v75 = vld [vmem:[%s1 + $0x60] sm:$0xf]
  %v76 = vld [vmem:[%s1 + $0x64] sm:$0xf]
  %v77 = vld [vmem:[%s1 + $0x68] sm:$0xf]
  %v78 = vld [vmem:[%s1 + $0x6c] sm:$0xf]
  %v79 = vld [vmem:[%s1 + $0x70] sm:$0xf]
  %v80 = vld [vmem:[%s1 + $0x74] sm:$0xf]
  %v81 = vld [vmem:[%s1 + $0x78] sm:$0xf]
  %v82 = vld [vmem:[%s1 + $0x7c] sm:$0xf]
  %v83 = vld [vmem:[%s1 + $0x80] sm:$0xf]
  %v84 = vld [vmem:[%s1 + $0x84] sm:$0xf]
  %v85 = vld [vmem:[%s1 + $0x88] sm:$0xf]
  %v86 = vld [vmem:[%s1 + $0x8c] sm:$0xf]
  %v87 = vld [vmem:[%s1 + $0x90] sm:$0xf]
  %v88 = vld [vmem:[%s1 + $0x94] sm:$0xf]
  %v89 = vld [vmem:[%s1 + $0x98] sm:$0xf]
  %v90 = vld [vmem:[%s1 + $0x9c] sm:$0xf]
  %v91 = vld [vmem:[%s1 + $0xa0] sm:$0xf]
  %v92 = vld [vmem:[%s1 + $0xa4] sm:$0xf]
  %v93 = vld [vmem:[%s1 + $0xa8] sm:$0xf]
  %v94 = vld [vmem:[%s1 + $0xac] sm:$0xf]
  %v95 = vld [vmem:[%s1 + $0xb0] sm:$0xf]
  %v96 = vld [vmem:[%s1 + $0xb4] sm:$0xf]
  %v97 = vld [vmem:[%s1 + $0xb8] sm:$0xf]
  %v98 = vld [vmem:[%s1 + $0xbc] sm:$0xf]
  %v99 = vld [vmem:[%s1 + $0xc0] sm:$0xf]
  %v100 = vld [vmem:[%s1 + $0xc4] sm:$0xf]
  %v101 = vld [vmem:[%s1 + $0xc8] sm:$0xf]
  %v102 = vld [vmem:[%s1 + $0xcc] sm:$0xf]
  %v103 = vld [vmem:[%s1 + $0xd0] sm:$0xf]
  %v104 = vld [vmem:[%s1 + $0xd4] sm:$0xf]
  %v105 = vld [vmem:[%s1 + $0xd8] sm:$0xf]
  %v106 = vld [vmem:[%s1 + $0xdc] sm:$0xf]
  %v107 = vld [vmem:[%s1 + $0xe0] sm:$0xf]
  %v108 = vld [vmem:[%s1 + $0xe4] sm:$0xf]
  %v109 = vld [vmem:[%s1 + $0xe8] sm:$0xf]
  %v110 = vld [vmem:[%s1 + $0xec] sm:$0xf]
  %v111 = vld [vmem:[%s1 + $0xf0] sm:$0xf]
  %v112 = vld [vmem:[%s1 + $0xf4] sm:$0xf]
  %v113 = vld [vmem:[%s1 + $0xf8] sm:$0xf]
  %v114 = vld [vmem:[%s1 + $0xfc] sm:$0xf]
  %v115 = vld [vmem:[%s1 + $0x100] sm:$0xf]
  %v116 = vld [vmem:[%s1 + $0x104] sm:$0xf]
  %v117 = vld [vmem:[%s1 + $0x108] sm:$0xf]
  %v118 = vld [vmem:[%s1 + $0x10c] sm:$0xf]
  %v119 = vld [vmem:[%s1 + $0x110] sm:$0xf]
  %v120 = vld [vmem:[%s1 + $0x114] sm:$0xf]
  %v121 = vld [vmem:[%s1 + $0x118] sm:$0xf]
  %v122 = vld [vmem:[%s1 + $0x11c] sm:$0xf]
  %v123 = vld [vmem:[%s1 + $0x120] sm:$0xf]
  %v124 = vld [vmem:[%s1 + $0x124] sm:$0xf]
  %v125 = vld [vmem:[%s1 + $0x128] sm:$0xf]
  %v126 = vld [vmem:[%s1 + $0x12c] sm:$0xf]
  %v127 = vld [vmem:[%s1 + $0x130] sm:$0xf]
  %v128 = vld [vmem:[%s1 + $0x134] sm:$0xf]
  %v129 = vld [vmem:[%s1 + $0x138] sm:$0xf]
  %v130 = vld [vmem:[%s1 + $0x13c] sm:$0xf]
  %v131 = vld [vmem:[%s1 + $0x140] sm:$0xf]
  %v132 = vld [vmem:[%s1 + $0x144] sm:$0xf]
  %v133 = vld [vmem:[%s1 + $0x148] sm:$0xf]
  %v134 = vld [vmem:[%s1 + $0x14c] sm:$0xf]
  %v135 = vld [vmem:[%s1 + $0x150] sm:$0xf]
  %v136 = vld [vmem:[%s1 + $0x154] sm:$0xf]
  %v137 = vld [vmem:[%s1 + $0x158] sm:$0xf]
  %v138 = vld [vmem:[%s1 + $0x15c] sm:$0xf]
  %v139 = vld [vmem:[%s1 + $0x160] sm:$0xf]
  %v140 = vld [vmem:[%s1 + $0x164] sm:$0xf]
  %v141 = vld [vmem:[%s1 + $0x168] sm:$0xf]
  %v142 = vld [vmem:[%s1 + $0x16c] sm:$0xf]
  %v143 = vld [vmem:[%s1 + $0x170] sm:$0xf]
  %v144 = vld [vmem:[%s1 + $0x174] sm:$0xf]
  %v145 = vld [vmem:[%s1 + $0x178] sm:$0xf]
  %v146 = vld [vmem:[%s1 + $0x17c] sm:$0xf]
  %v147 = vld [vmem:[%s1 + $0x180] sm:$0xf]
  %v148 = vld [vmem:[%s1 + $0x184] sm:$0xf]
  %v149 = vld [vmem:[%s1 + $0x188] sm:$0xf]
  %v150 = vld [vmem:[%s1 + $0x18c] sm:$0xf]
  %v151 = vld [vmem:[%s1 + $0x190] sm:$0xf]
  %v152 = vld [vmem:[%s1 + $0x194] sm:$0xf]
  %v153 = vld [vmem:[%s1 + $0x198] sm:$0xf]
  %v154 = vld [vmem:[%s1 + $0x19c] sm:$0xf]
  %v155 = vld [vmem:[%s1 + $0x1a0] sm:$0xf]
  %v156 = vld [vmem:[%s1 + $0x1a4] sm:$0xf]
  %v157 = vld [vmem:[%s1 + $0x1a8] sm:$0xf]
  %v158 = vld [vmem:[%s1 + $0x1ac] sm:$0xf]
  %v159 = vld [vmem:[%s1 + $0x1b0] sm:$0xf]
  %v160 = vld [vmem:[%s1 + $0x1b4] sm:$0xf]
  %v161 = vld [vmem:[%s1 + $0x1b8] sm:$0xf]
  %v162 = vld [vmem:[%s1 + $0x1bc] sm:$0xf]
  %v163 = vld [vmem:[%s1 + $0x1c0] sm:$0xf]
  %v164 = vld [vmem:[%s1 + $0x1c4] sm:$0xf]
  %v165 = vld [vmem:[%s1 + $0x1c8] sm:$0xf]
  %v166 = vld [vmem:[%s1 + $0x1cc] sm:$0xf]
  %v167 = vld [vmem:[%s1 + $0x1d0] sm:$0xf]
  %v168 = vld [vmem:[%s1 + $0x1d4] sm:$0xf]
  %v169 = vld [vmem:[%s1 + $0x1d8] sm:$0xf]
  %v170 = vld [vmem:[%s1 + $0x1dc] sm:$0xf]
  %v171 = vld [vmem:[%s1 + $0x1e0] sm:$0xf]
  %v172 = vld [vmem:[%s1 + $0x1e4] sm:$0xf]
  %v173 = vld [vmem:[%s1 + $0x1e8] sm:$0xf]
  %v174 = vld [vmem:[%s1 + $0x1ec] sm:$0xf]
  %v175 = vld [vmem:[%s1 + $0x1f0] sm:$0xf]
  %v176 = vld [vmem:[%s1 + $0x1f4] sm:$0xf]
  %v177 = vld [vmem:[%s1 + $0x1f8] sm:$0xf]
  %v178 = vld [vmem:[%s1 + $0x1fc] sm:$0xf]
  %v179 = vld [vmem:[%s2] sm:$0x1]
  %v181 = vlaneseq
  %v182 = vshrl.u32 %v181, 7
  %v183 = vsub.s32 0, %v182
  %v184 = vrot.slane %v179, %v183
  %v222 = vunpack.c.l.b16 %v15
  %v223 = vunpack.c.h.b16 %v15
  %v224 = vunpack.c.l.b16 %v16
  %v225 = vunpack.c.h.b16 %v16
  %v226 = vunpack.c.l.b16 %v17
  %v227 = vunpack.c.h.b16 %v17
  %v228 = vunpack.c.l.b16 %v18
  %v229 = vunpack.c.h.b16 %v18
  %v230 = vunpack.c.l.b16 %v19
  %v231 = vunpack.c.h.b16 %v19
  %v232 = vunpack.c.l.b16 %v20
  %v233 = vunpack.c.h.b16 %v20
  %v234 = vunpack.c.l.b16 %v21
  %v235 = vunpack.c.h.b16 %v21
  %v236 = vunpack.c.l.b16 %v22
  %v237 = vunpack.c.h.b16 %v22
  %v238 = vunpack.c.l.b16 %v23
  %v239 = vunpack.c.h.b16 %v23
  %v240 = vunpack.c.l.b16 %v24
  %v241 = vunpack.c.h.b16 %v24
  %v242 = vunpack.c.l.b16 %v25
  %v243 = vunpack.c.h.b16 %v25
  %v244 = vunpack.c.l.b16 %v26
  %v245 = vunpack.c.h.b16 %v26
  %v246 = vunpack.c.l.b16 %v27
  %v247 = vunpack.c.h.b16 %v27
  %v248 = vunpack.c.l.b16 %v28
  %v249 = vunpack.c.h.b16 %v28
  %v250 = vunpack.c.l.b16 %v29
  %v251 = vunpack.c.h.b16 %v29
  %v252 = vunpack.c.l.b16 %v30
  %v253 = vunpack.c.h.b16 %v30
  %v254 = vunpack.c.l.b16 %v31
  %v255 = vunpack.c.h.b16 %v31
  %v256 = vunpack.c.l.b16 %v32
  %v257 = vunpack.c.h.b16 %v32
  %v258 = vunpack.c.l.b16 %v33
  %v259 = vunpack.c.h.b16 %v33
  %v260 = vunpack.c.l.b16 %v34
  %v261 = vunpack.c.h.b16 %v34
  %v262 = vunpack.c.l.b16 %v35
  %v263 = vunpack.c.h.b16 %v35
  %v264 = vunpack.c.l.b16 %v36
  %v265 = vunpack.c.h.b16 %v36
  %v266 = vunpack.c.l.b16 %v37
  %v267 = vunpack.c.h.b16 %v37
  %v268 = vunpack.c.l.b16 %v38
  %v269 = vunpack.c.h.b16 %v38
  %v270 = vunpack.c.l.b16 %v39
  %v271 = vunpack.c.h.b16 %v39
  %v272 = vunpack.c.l.b16 %v40
  %v273 = vunpack.c.h.b16 %v40
  %v274 = vunpack.c.l.b16 %v41
  %v275 = vunpack.c.h.b16 %v41
  %v276 = vunpack.c.l.b16 %v42
  %v277 = vunpack.c.h.b16 %v42
  %v278 = vunpack.c.l.b16 %v43
  %v279 = vunpack.c.h.b16 %v43
  %v280 = vunpack.c.l.b16 %v44
  %v281 = vunpack.c.h.b16 %v44
  %v282 = vunpack.c.l.b16 %v45
  %v283 = vunpack.c.h.b16 %v45
  %v284 = vunpack.c.l.b16 %v46
  %v285 = vunpack.c.h.b16 %v46
  %v286 = vunpack.c.l.b16 %v47
  %v287 = vunpack.c.h.b16 %v47
  %v288 = vunpack.c.l.b16 %v48
  %v289 = vunpack.c.h.b16 %v48
  %v290 = vunpack.c.l.b16 %v49
  %v291 = vunpack.c.h.b16 %v49
  %v292 = vunpack.c.l.b16 %v50
  %v293 = vunpack.c.h.b16 %v50
  %v294 = vpack.c.b16 %v230, %v222
  %v295 = vpack.c.b16 %v231, %v223
  %v296 = vpack.c.b16 %v232, %v224
  %v297 = vpack.c.b16 %v233, %v225
  %v298 = vpack.c.b16 %v234, %v226
  %v299 = vpack.c.b16 %v235, %v227
  %v300 = vpack.c.b16 %v236, %v228
  %v301 = vpack.c.b16 %v237, %v229
  %v302 = vpack.c.b16 %v246, %v238
  %v303 = vpack.c.b16 %v247, %v239
  %v304 = vpack.c.b16 %v248, %v240
  %v305 = vpack.c.b16 %v249, %v241
  %v306 = vpack.c.b16 %v250, %v242
  %v307 = vpack.c.b16 %v251, %v243
  %v308 = vpack.c.b16 %v252, %v244
  %v309 = vpack.c.b16 %v253, %v245
  %v310 = vpack.c.b16 %v262, %v254
  %v311 = vpack.c.b16 %v263, %v255
  %v312 = vpack.c.b16 %v264, %v256
  %v313 = vpack.c.b16 %v265, %v257
  %v314 = vpack.c.b16 %v266, %v258
  %v315 = vpack.c.b16 %v267, %v259
  %v316 = vpack.c.b16 %v268, %v260
  %v317 = vpack.c.b16 %v269, %v261
  %v318 = vpack.c.b16 %v278, %v270
  %v319 = vpack.c.b16 %v279, %v271
  %v320 = vpack.c.b16 %v280, %v272
  %v321 = vpack.c.b16 %v281, %v273
  %v322 = vpack.c.b16 %v282, %v274
  %v323 = vpack.c.b16 %v283, %v275
  %v324 = vpack.c.b16 %v284, %v276
  %v325 = vpack.c.b16 %v285, %v277
  %v326 = vpack.c.b16 %v286, %v286
  %v327 = vpack.c.b16 %v287, %v287
  %v328 = vpack.c.b16 %v288, %v288
  %v329 = vpack.c.b16 %v289, %v289
  %v330 = vpack.c.b16 %v290, %v290
  %v331 = vpack.c.b16 %v291, %v291
  %v332 = vpack.c.b16 %v292, %v292
  %v333 = vpack.c.b16 %v293, %v293
  %v502 = vunpack.c.l.b16 %v51
  %v503 = vunpack.c.l.b16 %v52
  %v504 = vunpack.c.l.b16 %v53
  %v505 = vunpack.c.l.b16 %v54
  %v506 = vunpack.c.l.b16 %v55
  %v507 = vunpack.c.l.b16 %v56
  %v508 = vunpack.c.l.b16 %v57
  %v509 = vunpack.c.l.b16 %v58
  %v510 = vunpack.c.l.b16 %v59
  %v511 = vunpack.c.l.b16 %v60
  %v512 = vunpack.c.l.b16 %v61
  %v513 = vunpack.c.l.b16 %v62
  %v514 = vunpack.c.l.b16 %v63
  %v515 = vunpack.c.l.b16 %v64
  %v516 = vunpack.c.l.b16 %v65
  %v517 = vunpack.c.l.b16 %v66
  %v518 = vunpack.c.l.b16 %v67
  %v519 = vunpack.c.l.b16 %v68
  %v520 = vunpack.c.l.b16 %v69
  %v521 = vunpack.c.l.b16 %v70
  %v522 = vunpack.c.l.b16 %v71
  %v523 = vunpack.c.l.b16 %v72
  %v524 = vunpack.c.l.b16 %v73
  %v525 = vunpack.c.l.b16 %v74
  %v526 = vunpack.c.l.b16 %v75
  %v527 = vunpack.c.l.b16 %v76
  %v528 = vunpack.c.l.b16 %v77
  %v529 = vunpack.c.l.b16 %v78
  %v530 = vunpack.c.l.b16 %v79
  %v531 = vunpack.c.l.b16 %v80
  %v532 = vunpack.c.l.b16 %v81
  %v533 = vunpack.c.l.b16 %v82
  %v534 = vunpack.c.l.b16 %v83
  %v535 = vunpack.c.l.b16 %v84
  %v536 = vunpack.c.l.b16 %v85
  %v537 = vunpack.c.l.b16 %v86
  %v538 = vunpack.c.l.b16 %v87
  %v539 = vunpack.c.l.b16 %v88
  %v540 = vunpack.c.l.b16 %v89
  %v541 = vunpack.c.l.b16 %v90
  %v542 = vunpack.c.l.b16 %v91
  %v543 = vunpack.c.l.b16 %v92
  %v544 = vunpack.c.l.b16 %v93
  %v545 = vunpack.c.l.b16 %v94
  %v546 = vunpack.c.l.b16 %v95
  %v547 = vunpack.c.l.b16 %v96
  %v548 = vunpack.c.l.b16 %v97
  %v549 = vunpack.c.l.b16 %v98
  %v550 = vunpack.c.l.b16 %v99
  %v551 = vunpack.c.l.b16 %v100
  %v552 = vunpack.c.l.b16 %v101
  %v553 = vunpack.c.l.b16 %v102
  %v554 = vunpack.c.l.b16 %v103
  %v555 = vunpack.c.l.b16 %v104
  %v556 = vunpack.c.l.b16 %v105
  %v557 = vunpack.c.l.b16 %v106
  %v558 = vunpack.c.l.b16 %v107
  %v559 = vunpack.c.l.b16 %v108
  %v560 = vunpack.c.l.b16 %v109
  %v561 = vunpack.c.l.b16 %v110
  %v562 = vunpack.c.l.b16 %v111
  %v563 = vunpack.c.l.b16 %v112
  %v564 = vunpack.c.l.b16 %v113
  %v565 = vunpack.c.l.b16 %v114
  %v566 = vunpack.c.l.b16 %v115
  %v567 = vunpack.c.l.b16 %v116
  %v568 = vunpack.c.l.b16 %v117
  %v569 = vunpack.c.l.b16 %v118
  %v570 = vunpack.c.l.b16 %v119
  %v571 = vunpack.c.l.b16 %v120
  %v572 = vunpack.c.l.b16 %v121
  %v573 = vunpack.c.l.b16 %v122
  %v574 = vunpack.c.l.b16 %v123
  %v575 = vunpack.c.l.b16 %v124
  %v576 = vunpack.c.l.b16 %v125
  %v577 = vunpack.c.l.b16 %v126
  %v578 = vunpack.c.l.b16 %v127
  %v579 = vunpack.c.l.b16 %v128
  %v580 = vunpack.c.l.b16 %v129
  %v581 = vunpack.c.l.b16 %v130
  %v582 = vunpack.c.l.b16 %v131
  %v583 = vunpack.c.l.b16 %v132
  %v584 = vunpack.c.l.b16 %v133
  %v585 = vunpack.c.l.b16 %v134
  %v586 = vunpack.c.l.b16 %v135
  %v587 = vunpack.c.l.b16 %v136
  %v588 = vunpack.c.l.b16 %v137
  %v589 = vunpack.c.l.b16 %v138
  %v590 = vunpack.c.l.b16 %v139
  %v591 = vunpack.c.l.b16 %v140
  %v592 = vunpack.c.l.b16 %v141
  %v593 = vunpack.c.l.b16 %v142
  %v594 = vunpack.c.l.b16 %v143
  %v595 = vunpack.c.l.b16 %v144
  %v596 = vunpack.c.l.b16 %v145
  %v597 = vunpack.c.l.b16 %v146
  %v598 = vunpack.c.l.b16 %v147
  %v599 = vunpack.c.l.b16 %v148
  %v600 = vunpack.c.l.b16 %v149
  %v601 = vunpack.c.l.b16 %v150
  %v602 = vunpack.c.l.b16 %v151
  %v603 = vunpack.c.l.b16 %v152
  %v604 = vunpack.c.l.b16 %v153
  %v605 = vunpack.c.l.b16 %v154
  %v606 = vunpack.c.l.b16 %v155
  %v607 = vunpack.c.l.b16 %v156
  %v608 = vunpack.c.l.b16 %v157
  %v609 = vunpack.c.l.b16 %v158
  %v610 = vunpack.c.l.b16 %v159
  %v611 = vunpack.c.l.b16 %v160
  %v612 = vunpack.c.l.b16 %v161
  %v613 = vunpack.c.l.b16 %v162
  %v614 = vunpack.c.l.b16 %v163
  %v615 = vunpack.c.l.b16 %v164
  %v616 = vunpack.c.l.b16 %v165
  %v617 = vunpack.c.l.b16 %v166
  %v618 = vunpack.c.l.b16 %v167
  %v619 = vunpack.c.l.b16 %v168
  %v620 = vunpack.c.l.b16 %v169
  %v621 = vunpack.c.l.b16 %v170
  %v622 = vunpack.c.l.b16 %v171
  %v623 = vunpack.c.l.b16 %v172
  %v624 = vunpack.c.l.b16 %v173
  %v625 = vunpack.c.l.b16 %v174
  %v626 = vunpack.c.l.b16 %v175
  %v627 = vunpack.c.l.b16 %v176
  %v628 = vunpack.c.l.b16 %v177
  %v629 = vunpack.c.l.b16 %v178
  %v630 = vpack.c.b16 %v503, %v502
  %v631 = vpack.c.b16 %v505, %v504
  %v632 = vpack.c.b16 %v507, %v506
  %v633 = vpack.c.b16 %v509, %v508
  %v634 = vpack.c.b16 %v511, %v510
  %v635 = vpack.c.b16 %v513, %v512
  %v636 = vpack.c.b16 %v515, %v514
  %v637 = vpack.c.b16 %v517, %v516
  %v638 = vpack.c.b16 %v519, %v518
  %v639 = vpack.c.b16 %v521, %v520
  %v640 = vpack.c.b16 %v523, %v522
  %v641 = vpack.c.b16 %v525, %v524
  %v642 = vpack.c.b16 %v527, %v526
  %v643 = vpack.c.b16 %v529, %v528
  %v644 = vpack.c.b16 %v531, %v530
  %v645 = vpack.c.b16 %v533, %v532
  %v646 = vpack.c.b16 %v535, %v534
  %v647 = vpack.c.b16 %v537, %v536
  %v648 = vpack.c.b16 %v539, %v538
  %v649 = vpack.c.b16 %v541, %v540
  %v650 = vpack.c.b16 %v543, %v542
  %v651 = vpack.c.b16 %v545, %v544
  %v652 = vpack.c.b16 %v547, %v546
  %v653 = vpack.c.b16 %v549, %v548
  %v654 = vpack.c.b16 %v551, %v550
  %v655 = vpack.c.b16 %v553, %v552
  %v656 = vpack.c.b16 %v555, %v554
  %v657 = vpack.c.b16 %v557, %v556
  %v658 = vpack.c.b16 %v559, %v558
  %v659 = vpack.c.b16 %v561, %v560
  %v660 = vpack.c.b16 %v563, %v562
  %v661 = vpack.c.b16 %v565, %v564
  %v662 = vpack.c.b16 %v567, %v566
  %v663 = vpack.c.b16 %v569, %v568
  %v664 = vpack.c.b16 %v571, %v570
  %v665 = vpack.c.b16 %v573, %v572
  %v666 = vpack.c.b16 %v575, %v574
  %v667 = vpack.c.b16 %v577, %v576
  %v668 = vpack.c.b16 %v579, %v578
  %v669 = vpack.c.b16 %v581, %v580
  %v670 = vpack.c.b16 %v583, %v582
  %v671 = vpack.c.b16 %v585, %v584
  %v672 = vpack.c.b16 %v587, %v586
  %v673 = vpack.c.b16 %v589, %v588
  %v674 = vpack.c.b16 %v591, %v590
  %v675 = vpack.c.b16 %v593, %v592
  %v676 = vpack.c.b16 %v595, %v594
  %v677 = vpack.c.b16 %v597, %v596
  %v678 = vpack.c.b16 %v599, %v598
  %v679 = vpack.c.b16 %v601, %v600
  %v680 = vpack.c.b16 %v603, %v602
  %v681 = vpack.c.b16 %v605, %v604
  %v682 = vpack.c.b16 %v607, %v606
  %v683 = vpack.c.b16 %v609, %v608
  %v684 = vpack.c.b16 %v611, %v610
  %v685 = vpack.c.b16 %v613, %v612
  %v686 = vpack.c.b16 %v615, %v614
  %v687 = vpack.c.b16 %v617, %v616
  %v688 = vpack.c.b16 %v619, %v618
  %v689 = vpack.c.b16 %v621, %v620
  %v690 = vpack.c.b16 %v623, %v622
  %v691 = vpack.c.b16 %v625, %v624
  %v692 = vpack.c.b16 %v627, %v626
  %v693 = vpack.c.b16 %v629, %v628
  %758 = vmatprep.subr.bf16.mxu0 0
  %759 = vmatpush1.bf16.msra.mxu0 %v630
  %760 = vmatprep.subr.bf16.mxu0 0
  %761 = vmatpush1.bf16.msra.mxu0 %v631
  %762 = vmatprep.subr.bf16.mxu0 0
  %763 = vmatpush1.bf16.msra.mxu0 %v632
  %764 = vmatprep.subr.bf16.mxu0 0
  %765 = vmatpush1.bf16.msra.mxu0 %v633
  %766 = vmatprep.subr.bf16.mxu0 0
  %767 = vmatpush1.bf16.msra.mxu0 %v634
  %768 = vmatprep.subr.bf16.mxu0 0
  %769 = vmatpush1.bf16.msra.mxu0 %v635
  %770 = vmatprep.subr.bf16.mxu0 0
  %771 = vmatpush1.bf16.msra.mxu0 %v636
  %772 = vmatprep.subr.bf16.mxu0 0
  %773 = vmatpush1.bf16.msra.mxu0 %v637
  %774 = vmatprep.subr.bf16.mxu0 0
  %775 = vmatpush1.bf16.msra.mxu0 %v638
  %776 = vmatprep.subr.bf16.mxu0 0
  %777 = vmatpush1.bf16.msra.mxu0 %v639
  %778 = vmatprep.subr.bf16.mxu0 0
  %779 = vmatpush1.bf16.msra.mxu0 %v640
  %780 = vmatprep.subr.bf16.mxu0 0
  %781 = vmatpush1.bf16.msra.mxu0 %v641
  %782 = vmatprep.subr.bf16.mxu0 0
  %783 = vmatpush1.bf16.msra.mxu0 %v642
  %784 = vmatprep.subr.bf16.mxu0 0
  %785 = vmatpush1.bf16.msra.mxu0 %v643
  %786 = vmatprep.subr.bf16.mxu0 0
  %787 = vmatpush1.bf16.msra.mxu0 %v644
  %788 = vmatprep.subr.bf16.mxu0 0
  %789 = vmatpush1.bf16.msra.mxu0 %v645
  %790 = vmatprep.mubr.bf16.mxu0 %v295
  %791 = vmatmul.mubr.bf16.gmra.mrb[0].mxu0 %v294
  %v792 = vpop.f32.mrb[0].mxu0
  %v793 = vadd.f32 %v184, %v792
  %v794 = vpop.f32.mrb[0].mxu0
  %v795 = vpop.f32.mrb[0].mxu0
  %v796 = vadd.f32 %v184, %v795
  %v797 = vpop.f32.mrb[0].mxu0
  %798 = vmatprep.mubr.bf16.mxu0 %v303
  %799 = vmatmul.mubr.bf16.gmra.mrb[0].mxu0 %v302
  %v800 = vpop.f32.mrb[0].mxu0
  %v801 = vadd.f32 %v184, %v800
  %v802 = vpop.f32.mrb[0].mxu0
  %v803 = vpop.f32.mrb[0].mxu0
  %v804 = vadd.f32 %v184, %v803
  %v805 = vpop.f32.mrb[0].mxu0
  %806 = vmatprep.mubr.bf16.mxu0 %v311
  %807 = vmatmul.mubr.bf16.gmra.mrb[0].mxu0 %v310
  %v808 = vpop.f32.mrb[0].mxu0
  %v809 = vadd.f32 %v184, %v808
  %v810 = vpop.f32.mrb[0].mxu0
  %v811 = vpop.f32.mrb[0].mxu0
  %v812 = vadd.f32 %v184, %v811
  %v813 = vpop.f32.mrb[0].mxu0
  %814 = vmatprep.mubr.bf16.mxu0 %v319
  %815 = vmatmul.mubr.bf16.gmra.mrb[0].mxu0 %v318
  %v816 = vpop.f32.mrb[0].mxu0
  %v817 = vadd.f32 %v184, %v816
  %v818 = vpop.f32.mrb[0].mxu0
  %v819 = vpop.f32.mrb[0].mxu0
  %v820 = vadd.f32 %v184, %v819
  %v821 = vpop.f32.mrb[0].mxu0
  %822 = vmatprep.mubr.bf16.mxu0 %v327
  %823 = vmatmul.mubr.bf16.gmra.mrb[0].mxu0 %v326
  %v824 = vpop.f32.mrb[0].mxu0
  %v825 = vadd.f32 %v184, %v824
  %v826 = vpop.f32.mrb[0].mxu0
  %v827 = vpop.f32.mrb[0].mxu0
  %v828 = vpop.f32.mrb[0].mxu0
  %829 = vdwg.mxu0
  %830 = vmatprep.subr.bf16.mxu0 0
  %831 = vmatpush1.bf16.msra.mxu0 %v646
  %832 = vmatprep.subr.bf16.mxu0 0
  %833 = vmatpush1.bf16.msra.mxu0 %v647
  %834 = vmatprep.subr.bf16.mxu0 0
  %835 = vmatpush1.bf16.msra.mxu0 %v648
  %836 = vmatprep.subr.bf16.mxu0 0
  %837 = vmatpush1.bf16.msra.mxu0 %v649
  %838 = vmatprep.subr.bf16.mxu0 0
  %839 = vmatpush1.bf16.msra.mxu0 %v650
  %840 = vmatprep.subr.bf16.mxu0 0
  %841 = vmatpush1.bf16.msra.mxu0 %v651
  %842 = vmatprep.subr.bf16.mxu0 0
  %843 = vmatpush1.bf16.msra.mxu0 %v652
  %844 = vmatprep.subr.bf16.mxu0 0
  %845 = vmatpush1.bf16.msra.mxu0 %v653
  %846 = vmatprep.subr.bf16.mxu0 0
  %847 = vmatpush1.bf16.msra.mxu0 %v654
  %848 = vmatprep.subr.bf16.mxu0 0
  %849 = vmatpush1.bf16.msra.mxu0 %v655
  %850 = vmatprep.subr.bf16.mxu0 0
  %851 = vmatpush1.bf16.msra.mxu0 %v656
  %852 = vmatprep.subr.bf16.mxu0 0
  %853 = vmatpush1.bf16.msra.mxu0 %v657
  %854 = vmatprep.subr.bf16.mxu0 0
  %855 = vmatpush1.bf16.msra.mxu0 %v658
  %856 = vmatprep.subr.bf16.mxu0 0
  %857 = vmatpush1.bf16.msra.mxu0 %v659
  %858 = vmatprep.subr.bf16.mxu0 0
  %859 = vmatpush1.bf16.msra.mxu0 %v660
  %860 = vmatprep.subr.bf16.mxu0 0
  %861 = vmatpush1.bf16.msra.mxu0 %v661
  %862 = vmatprep.mubr.bf16.mxu0 %v297
  %863 = vmatmul.mubr.bf16.gmra.mrb[0].mxu0 %v296
  %v864 = vpop.f32.mrb[0].mxu0
  %v865 = vadd.f32 %v793, %v864
  %v866 = vpop.f32.mrb[0].mxu0
  %v867 = vpop.f32.mrb[0].mxu0
  %v868 = vadd.f32 %v796, %v867
  %v869 = vpop.f32.mrb[0].mxu0
  %870 = vmatprep.mubr.bf16.mxu0 %v305
  %871 = vmatmul.mubr.bf16.gmra.mrb[0].mxu0 %v304
  %v872 = vpop.f32.mrb[0].mxu0
  %v873 = vadd.f32 %v801, %v872
  %v874 = vpop.f32.mrb[0].mxu0
  %v875 = vpop.f32.mrb[0].mxu0
  %v876 = vadd.f32 %v804, %v875
  %v877 = vpop.f32.mrb[0].mxu0
  %878 = vmatprep.mubr.bf16.mxu0 %v313
  %879 = vmatmul.mubr.bf16.gmra.mrb[0].mxu0 %v312
  %v880 = vpop.f32.mrb[0].mxu0
  %v881 = vadd.f32 %v809, %v880
  %v882 = vpop.f32.mrb[0].mxu0
  %v883 = vpop.f32.mrb[0].mxu0
  %v884 = vadd.f32 %v812, %v883
  %v885 = vpop.f32.mrb[0].mxu0
  %886 = vmatprep.mubr.bf16.mxu0 %v321
  %887 = vmatmul.mubr.bf16.gmra.mrb[0].mxu0 %v320
  %v888 = vpop.f32.mrb[0].mxu0
  %v889 = vadd.f32 %v817, %v888
  %v890 = vpop.f32.mrb[0].mxu0
  %v891 = vpop.f32.mrb[0].mxu0
  %v892 = vadd.f32 %v820, %v891
  %v893 = vpop.f32.mrb[0].mxu0
  %894 = vmatprep.mubr.bf16.mxu0 %v329
  %895 = vmatmul.mubr.bf16.gmra.mrb[0].mxu0 %v328
  %v896 = vpop.f32.mrb[0].mxu0
  %v897 = vadd.f32 %v825, %v896
  %v898 = vpop.f32.mrb[0].mxu0
  %v899 = vpop.f32.mrb[0].mxu0
  %v900 = vpop.f32.mrb[0].mxu0
  %901 = vdwg.mxu0
  %902 = vmatprep.subr.bf16.mxu0 0
  %903 = vmatpush1.bf16.msra.mxu0 %v662
  %904 = vmatprep.subr.bf16.mxu0 0
  %905 = vmatpush1.bf16.msra.mxu0 %v663
  %906 = vmatprep.subr.bf16.mxu0 0
  %907 = vmatpush1.bf16.msra.mxu0 %v664
  %908 = vmatprep.subr.bf16.mxu0 0
  %909 = vmatpush1.bf16.msra.mxu0 %v665
  %910 = vmatprep.subr.bf16.mxu0 0
  %911 = vmatpush1.bf16.msra.mxu0 %v666
  %912 = vmatprep.subr.bf16.mxu0 0
  %913 = vmatpush1.bf16.msra.mxu0 %v667
  %914 = vmatprep.subr.bf16.mxu0 0
  %915 = vmatpush1.bf16.msra.mxu0 %v668
  %916 = vmatprep.subr.bf16.mxu0 0
  %917 = vmatpush1.bf16.msra.mxu0 %v669
  %918 = vmatprep.subr.bf16.mxu0 0
  %919 = vmatpush1.bf16.msra.mxu0 %v670
  %920 = vmatprep.subr.bf16.mxu0 0
  %921 = vmatpush1.bf16.msra.mxu0 %v671
  %922 = vmatprep.subr.bf16.mxu0 0
  %923 = vmatpush1.bf16.msra.mxu0 %v672
  %924 = vmatprep.subr.bf16.mxu0 0
  %925 = vmatpush1.bf16.msra.mxu0 %v673
  %926 = vmatprep.subr.bf16.mxu0 0
  %927 = vmatpush1.bf16.msra.mxu0 %v674
  %928 = vmatprep.subr.bf16.mxu0 0
  %929 = vmatpush1.bf16.msra.mxu0 %v675
  %930 = vmatprep.subr.bf16.mxu0 0
  %931 = vmatpush1.bf16.msra.mxu0 %v676
  %932 = vmatprep.subr.bf16.mxu0 0
  %933 = vmatpush1.bf16.msra.mxu0 %v677
  %934 = vmatprep.mubr.bf16.mxu0 %v299
  %935 = vmatmul.mubr.bf16.gmra.mrb[0].mxu0 %v298
  %v936 = vpop.f32.mrb[0].mxu0
  %v937 = vadd.f32 %v865, %v936
  %v938 = vpop.f32.mrb[0].mxu0
  %v939 = vpop.f32.mrb[0].mxu0
  %v940 = vadd.f32 %v868, %v939
  %v941 = vpop.f32.mrb[0].mxu0
  %942 = vmatprep.mubr.bf16.mxu0 %v307
  %943 = vmatmul.mubr.bf16.gmra.mrb[0].mxu0 %v306
  %v944 = vpop.f32.mrb[0].mxu0
  %v945 = vadd.f32 %v873, %v944
  %v946 = vpop.f32.mrb[0].mxu0
  %v947 = vpop.f32.mrb[0].mxu0
  %v948 = vadd.f32 %v876, %v947
  %v949 = vpop.f32.mrb[0].mxu0
  %950 = vmatprep.mubr.bf16.mxu0 %v315
  %951 = vmatmul.mubr.bf16.gmra.mrb[0].mxu0 %v314
  %v952 = vpop.f32.mrb[0].mxu0
  %v953 = vadd.f32 %v881, %v952
  %v954 = vpop.f32.mrb[0].mxu0
  %v955 = vpop.f32.mrb[0].mxu0
  %v956 = vadd.f32 %v884, %v955
  %v957 = vpop.f32.mrb[0].mxu0
  %958 = vmatprep.mubr.bf16.mxu0 %v323
  %959 = vmatmul.mubr.bf16.gmra.mrb[0].mxu0 %v322
  %v960 = vpop.f32.mrb[0].mxu0
  %v961 = vadd.f32 %v889, %v960
  %v962 = vpop.f32.mrb[0].mxu0
  %v963 = vpop.f32.mrb[0].mxu0
  %v964 = vadd.f32 %v892, %v963
  %v965 = vpop.f32.mrb[0].mxu0
  %966 = vmatprep.mubr.bf16.mxu0 %v331
  %967 = vmatmul.mubr.bf16.gmra.mrb[0].mxu0 %v330
  %v968 = vpop.f32.mrb[0].mxu0
  %v969 = vadd.f32 %v897, %v968
  %v970 = vpop.f32.mrb[0].mxu0
  %v971 = vpop.f32.mrb[0].mxu0
  %v972 = vpop.f32.mrb[0].mxu0
  %973 = vdwg.mxu0
  %974 = vmatprep.subr.bf16.mxu0 0
  %975 = vmatpush1.bf16.msra.mxu0 %v678
  %976 = vmatprep.subr.bf16.mxu0 0
  %977 = vmatpush1.bf16.msra.mxu0 %v679
  %978 = vmatprep.subr.bf16.mxu0 0
  %979 = vmatpush1.bf16.msra.mxu0 %v680
  %980 = vmatprep.subr.bf16.mxu0 0
  %981 = vmatpush1.bf16.msra.mxu0 %v681
  %982 = vmatprep.subr.bf16.mxu0 0
  %983 = vmatpush1.bf16.msra.mxu0 %v682
  %984 = vmatprep.subr.bf16.mxu0 0
  %985 = vmatpush1.bf16.msra.mxu0 %v683
  %986 = vmatprep.subr.bf16.mxu0 0
  %987 = vmatpush1.bf16.msra.mxu0 %v684
  %988 = vmatprep.subr.bf16.mxu0 0
  %989 = vmatpush1.bf16.msra.mxu0 %v685
  %990 = vmatprep.subr.bf16.mxu0 0
  %991 = vmatpush1.bf16.msra.mxu0 %v686
  %992 = vmatprep.subr.bf16.mxu0 0
  %993 = vmatpush1.bf16.msra.mxu0 %v687
  %994 = vmatprep.subr.bf16.mxu0 0
  %995 = vmatpush1.bf16.msra.mxu0 %v688
  %996 = vmatprep.subr.bf16.mxu0 0
  %997 = vmatpush1.bf16.msra.mxu0 %v689
  %998 = vmatprep.subr.bf16.mxu0 0
  %999 = vmatpush1.bf16.msra.mxu0 %v690
  %1000 = vmatprep.subr.bf16.mxu0 0
  %1001 = vmatpush1.bf16.msra.mxu0 %v691
  %1002 = vmatprep.subr.bf16.mxu0 0
  %1003 = vmatpush1.bf16.msra.mxu0 %v692
  %1004 = vmatprep.subr.bf16.mxu0 0
  %1005 = vmatpush1.bf16.msra.mxu0 %v693
  %1006 = vmatprep.mubr.bf16.mxu0 %v301
  %1007 = vmatmul.mubr.bf16.gmra.mrb[0].mxu0 %v300
  %v1008 = vpop.f32.mrb[0].mxu0
  %v1009 = vadd.f32 %v937, %v1008
  %v1010 = vpop.f32.mrb[0].mxu0
  %v1011 = vpop.f32.mrb[0].mxu0
  %v1012 = vadd.f32 %v940, %v1011
  %v1013 = vpop.f32.mrb[0].mxu0
  %1014 = vmatprep.mubr.bf16.mxu0 %v309
  %1015 = vmatmul.mubr.bf16.gmra.mrb[0].mxu0 %v308
  %v1016 = vpop.f32.mrb[0].mxu0
  %v1017 = vadd.f32 %v945, %v1016
  %v1018 = vpop.f32.mrb[0].mxu0
  %v1019 = vpop.f32.mrb[0].mxu0
  %v1020 = vadd.f32 %v948, %v1019
  %v1021 = vpop.f32.mrb[0].mxu0
  %1022 = vmatprep.mubr.bf16.mxu0 %v317
  %1023 = vmatmul.mubr.bf16.gmra.mrb[0].mxu0 %v316
  %v1024 = vpop.f32.mrb[0].mxu0
  %v1025 = vadd.f32 %v953, %v1024
  %v1026 = vpop.f32.mrb[0].mxu0
  %v1027 = vpop.f32.mrb[0].mxu0
  %v1028 = vadd.f32 %v956, %v1027
  %v1029 = vpop.f32.mrb[0].mxu0
  %1030 = vmatprep.mubr.bf16.mxu0 %v325
  %1031 = vmatmul.mubr.bf16.gmra.mrb[0].mxu0 %v324
  %v1032 = vpop.f32.mrb[0].mxu0
  %v1033 = vadd.f32 %v961, %v1032
  %v1034 = vpop.f32.mrb[0].mxu0
  %v1035 = vpop.f32.mrb[0].mxu0
  %v1036 = vadd.f32 %v964, %v1035
  %v1037 = vpop.f32.mrb[0].mxu0
  %1038 = vmatprep.mubr.bf16.mxu0 %v333
  %1039 = vmatmul.mubr.bf16.gmra.mrb[0].mxu0 %v332
  %v1040 = vpop.f32.mrb[0].mxu0
  %v1041 = vadd.f32 %v969, %v1040
  %v1042 = vpop.f32.mrb[0].mxu0
  %v1043 = vpop.f32.mrb[0].mxu0
  %v1044 = vpop.f32.mrb[0].mxu0
  %1045 = vdwg.mxu0
  %v1046 = vmax.f32 %v1009, 0.0
  %v1047 = vmax.f32 %v1012, 0.0
  %v1048 = vmax.f32 %v1017, 0.0
  %v1049 = vmax.f32 %v1020, 0.0
  %v1050 = vmax.f32 %v1025, 0.0
  %v1051 = vmax.f32 %v1028, 0.0
  %v1052 = vmax.f32 %v1033, 0.0
  %v1053 = vmax.f32 %v1036, 0.0
  %v1054 = vmax.f32 %v1041, 0.0
  %v1055 = vpack.c.bf16 %v1047, %v1046
  %v1056 = vpack.c.bf16 %v1049, %v1048
  %v1057 = vpack.c.bf16 %v1051, %v1050
  %v1058 = vpack.c.bf16 %v1053, %v1052
  %v1059 = vpack.c.bf16 %v1054, %v1054
  %v1065 = vunpack.c.l.b16 %v1055
  %v1066 = vunpack.c.h.b16 %v1055
  %v1067 = vunpack.c.l.b16 %v1056
  %v1068 = vunpack.c.h.b16 %v1056
  %v1069 = vunpack.c.l.b16 %v1057
  %v1070 = vunpack.c.h.b16 %v1057
  %v1071 = vunpack.c.l.b16 %v1058
  %v1072 = vunpack.c.h.b16 %v1058
  %v1073 = vunpack.c.l.b16 %v1059
  %v1074 = vpack.c.b16 %v1065, %v1065
  %v1075 = vpack.c.b16 %v1066, %v1066
  %v1076 = vpack.c.b16 %v1067, %v1067
  %v1077 = vpack.c.b16 %v1068, %v1068
  %v1078 = vpack.c.b16 %v1069, %v1069
  %v1079 = vpack.c.b16 %v1070, %v1070
  %v1080 = vpack.c.b16 %v1071, %v1071
  %v1081 = vpack.c.b16 %v1072, %v1072
  %v1082 = vpack.c.b16 %v1073, %v1073
  %1092 = vst [vmem:[%s3] sm:$0xf] %v1074
  %1093 = vst [vmem:[%s3 + $0x4] sm:$0xf] %v1075
  %1094 = vst [vmem:[%s3 + $0x8] sm:$0xf] %v1076
  %1095 = vst [vmem:[%s3 + $0xc] sm:$0xf] %v1077
  %1096 = vst [vmem:[%s3 + $0x10] sm:$0xf] %v1078
  %1097 = vst [vmem:[%s3 + $0x14] sm:$0xf] %v1079
  %1098 = vst [vmem:[%s3 + $0x18] sm:$0xf] %v1080
  %1099 = vst [vmem:[%s3 + $0x1c] sm:$0xf] %v1081
  %1100 = vst [vmem:[%s3 + $0x20] sm:$0xf] %v1082
  // Predicated region
  $region14: #{encoder_forward.7} parent=0 // pred_check
    _
  $region15: #{encoder_forward.7} parent=0 // pred_check_branch
    %1102 = sbr.rel (0) target = $region17
  $region16: #{encoder_forward.7} parent=0 // pred_region
    _
  $region17: #{encoder_forward.7} parent=0 // pred_fallthru
    _
  // Predicated region
  $region18: #{encoder_forward.7} parent=0 // pred_check
    _
  $region19: #{encoder_forward.7} parent=0 // pred_check_branch
    %1104 = sbr.rel (0) target = $region21
  $region20: #{encoder_forward.7} parent=0 // pred_region
    _
  $region21: #{encoder_forward.7} parent=0 // pred_fallthru
    _

// kernel: encoder_forward.9
$region0: #{encoder_forward.9}
  #allocation0 [shape = 'u32[]', space=smem, size = 0x4, offset = 0x4, fixed_abs, tag = 'smem constant byte address 0x4 - core index']
  #allocation1 [shape = 'u32[144,128]{1,0:T(1,128)}', space=vmem, size = 0x12000, scoped, tag = 'internal scratch']
  %s0 = inlined_call_operand.vmem [shape: bf16[2,1024], index: 0, kind: input, shape index: {}]
  %s1 = inlined_call_operand.vmem [shape: bf16[1024,64], index: 1, kind: input, shape index: {}]
  %s2 = inlined_call_operand.vmem [shape: f32[1,64], index: 2, kind: input, shape index: {}]
  %s3 = inlined_call_operand.vmem [shape: f32[2,64], index: 3, kind: output, shape index: {}]
  %s4 = sld [smem:[#allocation0]]
  $region52: #{encoder_forward.9} parent=0
    _
  %s6 = ssub.s32 1, %s4
  %s7 = scalar_select 0, %s6, %s4
  $region1: #{encoder_forward.9} parent=0
    #allocation2 [shape = 'u8[4096]{0}', space=vmem, size = 0x1000, scoped, tag = 'output window, operand 0, single buffered']
    // Predicated region
    $region2: #{encoder_forward.9} parent=1 // pred_check
      _
    $region3: #{encoder_forward.9} parent=1 // pred_check_branch
      %9 = sbr.rel (0) target = $region5
    $region4: #{encoder_forward.9} parent=1 // pred_region
      _
    $region5: #{encoder_forward.9} parent=1 // pred_fallthru
      _
    // Predicated region
    $region6: #{encoder_forward.9} parent=1 // pred_check
      _
    $region7: #{encoder_forward.9} parent=1 // pred_check_branch
      %11 = sbr.rel (0) target = $region9
    $region8: #{encoder_forward.9} parent=1 // pred_region
      _
    $region9: #{encoder_forward.9} parent=1 // pred_fallthru
      _
    // Predicated region
    $region10: #{encoder_forward.9} parent=1 // pred_check
      _
    $region11: #{encoder_forward.9} parent=1 // pred_check_branch
      %13 = sbr.rel (0) target = $region13
    $region12: #{encoder_forward.9} parent=1 // pred_region
      _
    $region13: #{encoder_forward.9} parent=1 // pred_fallthru
      _
    %v15 = vld [vmem:[%s0] sm:$0xff]
    %v16 = vld [vmem:[%s0 + $0x8] sm:$0xff]
    %v17 = vld [vmem:[%s0 + $0x10] sm:$0xff]
    %v18 = vld [vmem:[%s0 + $0x18] sm:$0xff]
    %v19 = vld [vmem:[%s1] sm:$0xf]
    %v20 = vld [vmem:[%s1 + $0x4] sm:$0xf]
    %v21 = vld [vmem:[%s1 + $0x8] sm:$0xf]
    %v22 = vld [vmem:[%s1 + $0xc] sm:$0xf]
    %v23 = vld [vmem:[%s1 + $0x10] sm:$0xf]
    %v24 = vld [vmem:[%s1 + $0x14] sm:$0xf]
    %v25 = vld [vmem:[%s1 + $0x18] sm:$0xf]
    %v26 = vld [vmem:[%s1 + $0x1c] sm:$0xf]
    %v27 = vld [vmem:[%s1 + $0x20] sm:$0xf]
    %v28 = vld [vmem:[%s1 + $0x24] sm:$0xf]
    %v29 = vld [vmem:[%s1 + $0x28] sm:$0xf]
    %v30 = vld [vmem:[%s1 + $0x2c] sm:$0xf]
    %v31 = vld [vmem:[%s1 + $0x30] sm:$0xf]
    %v32 = vld [vmem:[%s1 + $0x34] sm:$0xf]
    %v33 = vld [vmem:[%s1 + $0x38] sm:$0xf]
    %v34 = vld [vmem:[%s1 + $0x3c] sm:$0xf]
    %v35 = vld [vmem:[%s1 + $0x40] sm:$0xf]
    %v36 = vld [vmem:[%s1 + $0x44] sm:$0xf]
    %v37 = vld [vmem:[%s1 + $0x48] sm:$0xf]
    %v38 = vld [vmem:[%s1 + $0x4c] sm:$0xf]
    %v39 = vld [vmem:[%s1 + $0x50] sm:$0xf]
    %v40 = vld [vmem:[%s1 + $0x54] sm:$0xf]
    %v41 = vld [vmem:[%s1 + $0x58] sm:$0xf]
    %v42 = vld [vmem:[%s1 + $0x5c] sm:$0xf]
    %v43 = vld [vmem:[%s1 + $0x60] sm:$0xf]
    %v44 = vld [vmem:[%s1 + $0x64] sm:$0xf]
    %v45 = vld [vmem:[%s1 + $0x68] sm:$0xf]
    %v46 = vld [vmem:[%s1 + $0x6c] sm:$0xf]
    %v47 = vld [vmem:[%s1 + $0x70] sm:$0xf]
    %v48 = vld [vmem:[%s1 + $0x74] sm:$0xf]
    %v49 = vld [vmem:[%s1 + $0x78] sm:$0xf]
    %v50 = vld [vmem:[%s1 + $0x7c] sm:$0xf]
    %v51 = vld [vmem:[%s1 + $0x80] sm:$0xf]
    %v52 = vld [vmem:[%s1 + $0x84] sm:$0xf]
    %v53 = vld [vmem:[%s1 + $0x88] sm:$0xf]
    %v54 = vld [vmem:[%s1 + $0x8c] sm:$0xf]
    %v55 = vld [vmem:[%s1 + $0x90] sm:$0xf]
    %v56 = vld [vmem:[%s1 + $0x94] sm:$0xf]
    %v57 = vld [vmem:[%s1 + $0x98] sm:$0xf]
    %v58 = vld [vmem:[%s1 + $0x9c] sm:$0xf]
    %v59 = vld [vmem:[%s1 + $0xa0] sm:$0xf]
    %v60 = vld [vmem:[%s1 + $0xa4] sm:$0xf]
    %v61 = vld [vmem:[%s1 + $0xa8] sm:$0xf]
    %v62 = vld [vmem:[%s1 + $0xac] sm:$0xf]
    %v63 = vld [vmem:[%s1 + $0xb0] sm:$0xf]
    %v64 = vld [vmem:[%s1 + $0xb4] sm:$0xf]
    %v65 = vld [vmem:[%s1 + $0xb8] sm:$0xf]
    %v66 = vld [vmem:[%s1 + $0xbc] sm:$0xf]
    %v67 = vld [vmem:[%s1 + $0xc0] sm:$0xf]
    %v68 = vld [vmem:[%s1 + $0xc4] sm:$0xf]
    %v69 = vld [vmem:[%s1 + $0xc8] sm:$0xf]
    %v70 = vld [vmem:[%s1 + $0xcc] sm:$0xf]
    %v71 = vld [vmem:[%s1 + $0xd0] sm:$0xf]
    %v72 = vld [vmem:[%s1 + $0xd4] sm:$0xf]
    %v73 = vld [vmem:[%s1 + $0xd8] sm:$0xf]
    %v74 = vld [vmem:[%s1 + $0xdc] sm:$0xf]
    %v75 = vld [vmem:[%s1 + $0xe0] sm:$0xf]
    %v76 = vld [vmem:[%s1 + $0xe4] sm:$0xf]
    %v77 = vld [vmem:[%s1 + $0xe8] sm:$0xf]
    %v78 = vld [vmem:[%s1 + $0xec] sm:$0xf]
    %v79 = vld [vmem:[%s1 + $0xf0] sm:$0xf]
    %v80 = vld [vmem:[%s1 + $0xf4] sm:$0xf]
    %v81 = vld [vmem:[%s1 + $0xf8] sm:$0xf]
    %v82 = vld [vmem:[%s1 + $0xfc] sm:$0xf]
    %v83 = vld [vmem:[%s1 + $0x100] sm:$0xf]
    %v84 = vld [vmem:[%s1 + $0x104] sm:$0xf]
    %v85 = vld [vmem:[%s1 + $0x108] sm:$0xf]
    %v86 = vld [vmem:[%s1 + $0x10c] sm:$0xf]
    %v87 = vld [vmem:[%s1 + $0x110] sm:$0xf]
    %v88 = vld [vmem:[%s1 + $0x114] sm:$0xf]
    %v89 = vld [vmem:[%s1 + $0x118] sm:$0xf]
    %v90 = vld [vmem:[%s1 + $0x11c] sm:$0xf]
    %v91 = vld [vmem:[%s1 + $0x120] sm:$0xf]
    %v92 = vld [vmem:[%s1 + $0x124] sm:$0xf]
    %v93 = vld [vmem:[%s1 + $0x128] sm:$0xf]
    %v94 = vld [vmem:[%s1 + $0x12c] sm:$0xf]
    %v95 = vld [vmem:[%s1 + $0x130] sm:$0xf]
    %v96 = vld [vmem:[%s1 + $0x134] sm:$0xf]
    %v97 = vld [vmem:[%s1 + $0x138] sm:$0xf]
    %v98 = vld [vmem:[%s1 + $0x13c] sm:$0xf]
    %v99 = vld [vmem:[%s1 + $0x140] sm:$0xf]
    %v100 = vld [vmem:[%s1 + $0x144] sm:$0xf]
    %v101 = vld [vmem:[%s1 + $0x148] sm:$0xf]
    %v102 = vld [vmem:[%s1 + $0x14c] sm:$0xf]
    %v103 = vld [vmem:[%s1 + $0x150] sm:$0xf]
    %v104 = vld [vmem:[%s1 + $0x154] sm:$0xf]
    %v105 = vld [vmem:[%s1 + $0x158] sm:$0xf]
    %v106 = vld [vmem:[%s1 + $0x15c] sm:$0xf]
    %v107 = vld [vmem:[%s1 + $0x160] sm:$0xf]
    %v108 = vld [vmem:[%s1 + $0x164] sm:$0xf]
    %v109 = vld [vmem:[%s1 + $0x168] sm:$0xf]
    %v110 = vld [vmem:[%s1 + $0x16c] sm:$0xf]
    %v111 = vld [vmem:[%s1 + $0x170] sm:$0xf]
    %v112 = vld [vmem:[%s1 + $0x174] sm:$0xf]
    %v113 = vld [vmem:[%s1 + $0x178] sm:$0xf]
    %v114 = vld [vmem:[%s1 + $0x17c] sm:$0xf]
    %v115 = vld [vmem:[%s1 + $0x180] sm:$0xf]
    %v116 = vld [vmem:[%s1 + $0x184] sm:$0xf]
    %v117 = vld [vmem:[%s1 + $0x188] sm:$0xf]
    %v118 = vld [vmem:[%s1 + $0x18c] sm:$0xf]
    %v119 = vld [vmem:[%s1 + $0x190] sm:$0xf]
    %v120 = vld [vmem:[%s1 + $0x194] sm:$0xf]
    %v121 = vld [vmem:[%s1 + $0x198] sm:$0xf]
    %v122 = vld [vmem:[%s1 + $0x19c] sm:$0xf]
    %v123 = vld [vmem:[%s1 + $0x1a0] sm:$0xf]
    %v124 = vld [vmem:[%s1 + $0x1a4] sm:$0xf]
    %v125 = vld [vmem:[%s1 + $0x1a8] sm:$0xf]
    %v126 = vld [vmem:[%s1 + $0x1ac] sm:$0xf]
    %v127 = vld [vmem:[%s1 + $0x1b0] sm:$0xf]
    %v128 = vld [vmem:[%s1 + $0x1b4] sm:$0xf]
    %v129 = vld [vmem:[%s1 + $0x1b8] sm:$0xf]
    %v130 = vld [vmem:[%s1 + $0x1bc] sm:$0xf]
    %v131 = vld [vmem:[%s1 + $0x1c0] sm:$0xf]
    %v132 = vld [vmem:[%s1 + $0x1c4] sm:$0xf]
    %v133 = vld [vmem:[%s1 + $0x1c8] sm:$0xf]
    %v134 = vld [vmem:[%s1 + $0x1cc] sm:$0xf]
    %v135 = vld [vmem:[%s1 + $0x1d0] sm:$0xf]
    %v136 = vld [vmem:[%s1 + $0x1d4] sm:$0xf]
    %v137 = vld [vmem:[%s1 + $0x1d8] sm:$0xf]
    %v138 = vld [vmem:[%s1 + $0x1dc] sm:$0xf]
    %v139 = vld [vmem:[%s1 + $0x1e0] sm:$0xf]
    %v140 = vld [vmem:[%s1 + $0x1e4] sm:$0xf]
    %v141 = vld [vmem:[%s1 + $0x1e8] sm:$0xf]
    %v142 = vld [vmem:[%s1 + $0x1ec] sm:$0xf]
    %v143 = vld [vmem:[%s1 + $0x1f0] sm:$0xf]
    %v144 = vld [vmem:[%s1 + $0x1f4] sm:$0xf]
    %v145 = vld [vmem:[%s1 + $0x1f8] sm:$0xf]
    %v146 = vld [vmem:[%s1 + $0x1fc] sm:$0xf]
    %v147 = vld [vmem:[%s2] sm:$0x1]
    %v149 = vlaneseq
    %v150 = vshrl.u32 %v149, 7
    %v151 = vsub.s32 0, %v150
    %v152 = vrot.slane %v147, %v151
    %v158 = vcombine.low %v15, %v16
    %v159 = vcombine.high %v15, %v16
    %v160 = vcombine.low %v17, %v18
    %v161 = vcombine.high %v17, %v18
    %v163 = vunpack.c.l.s4 1966171168
    %v164 = vunpack.c.0.s8 %v163
    %v165 = vlaneseq
    %v166 = vshrl.u32 %v165, 7
    %v167 = vsub.s32 %v164, %v166
    %v168 = vrot.slane %v158, %v167
    %v170 = vunpack.c.l.s4 1966171168
    %v171 = vunpack.c.0.s8 %v170
    %v172 = vlaneseq
    %v173 = vshrl.u32 %v172, 7
    %v174 = vsub.s32 %v171, %v173
    %v175 = vrot.slane %v159, %v174
    %v177 = vunpack.c.l.s4 1966171168
    %v178 = vunpack.c.0.s8 %v177
    %v179 = vlaneseq
    %v180 = vshrl.u32 %v179, 7
    %v181 = vsub.s32 %v178, %v180
    %v182 = vrot.slane %v160, %v181
    %v184 = vunpack.c.l.s4 1966171168
    %v185 = vunpack.c.0.s8 %v184
    %v186 = vlaneseq
    %v187 = vshrl.u32 %v186, 7
    %v188 = vsub.s32 %v185, %v187
    %v189 = vrot.slane %v161, %v188
    %v190 = vcombine.low %v168, %v182
    %v191 = vcombine.high %v168, %v182
    %v192 = vcombine.low %v175, %v189
    %v193 = vcombine.high %v175, %v189
    %v195 = vunpack.c.l.s4 1966171168
    %v196 = vunpack.c.0.s8 %v195
    %v197 = vlaneseq
    %v198 = vshrl.u32 %v197, 7
    %v199 = vsub.s32 %v196, %v198
    %v200 = vrot.slane %v190, %v199
    %v202 = vunpack.c.l.s4 1966171168
    %v203 = vunpack.c.0.s8 %v202
    %v204 = vlaneseq
    %v205 = vshrl.u32 %v204, 7
    %v206 = vsub.s32 %v203, %v205
    %v207 = vrot.slane %v192, %v206
    %v209 = vunpack.c.l.s4 1966171168
    %v210 = vunpack.c.0.s8 %v209
    %v211 = vlaneseq
    %v212 = vshrl.u32 %v211, 7
    %v213 = vsub.s32 %v210, %v212
    %v214 = vrot.slane %v191, %v213
    %v216 = vunpack.c.l.s4 1966171168
    %v217 = vunpack.c.0.s8 %v216
    %v218 = vlaneseq
    %v219 = vshrl.u32 %v218, 7
    %v220 = vsub.s32 %v217, %v219
    %v221 = vrot.slane %v193, %v220
    %v222 = vcombine.high %v200, %v200
    %v223 = vcombine.high %v207, %v207
    %v224 = vcombine.high %v214, %v214
    %v225 = vcombine.high %v221, %v221
    %v362 = vunpack.c.l.b16 %v19
    %v363 = vunpack.c.l.b16 %v20
    %v364 = vunpack.c.l.b16 %v21
    %v365 = vunpack.c.l.b16 %v22
    %v366 = vunpack.c.l.b16 %v23
    %v367 = vunpack.c.l.b16 %v24
    %v368 = vunpack.c.l.b16 %v25
    %v369 = vunpack.c.l.b16 %v26
    %v370 = vunpack.c.l.b16 %v27
    %v371 = vunpack.c.l.b16 %v28
    %v372 = vunpack.c.l.b16 %v29
    %v373 = vunpack.c.l.b16 %v30
    %v374 = vunpack.c.l.b16 %v31
    %v375 = vunpack.c.l.b16 %v32
    %v376 = vunpack.c.l.b16 %v33
    %v377 = vunpack.c.l.b16 %v34
    %v378 = vunpack.c.l.b16 %v35
    %v379 = vunpack.c.l.b16 %v36
    %v380 = vunpack.c.l.b16 %v37
    %v381 = vunpack.c.l.b16 %v38
    %v382 = vunpack.c.l.b16 %v39
    %v383 = vunpack.c.l.b16 %v40
    %v384 = vunpack.c.l.b16 %v41
    %v385 = vunpack.c.l.b16 %v42
    %v386 = vunpack.c.l.b16 %v43
    %v387 = vunpack.c.l.b16 %v44
    %v388 = vunpack.c.l.b16 %v45
    %v389 = vunpack.c.l.b16 %v46
    %v390 = vunpack.c.l.b16 %v47
    %v391 = vunpack.c.l.b16 %v48
    %v392 = vunpack.c.l.b16 %v49
    %v393 = vunpack.c.l.b16 %v50
    %v394 = vunpack.c.l.b16 %v51
    %v395 = vunpack.c.l.b16 %v52
    %v396 = vunpack.c.l.b16 %v53
    %v397 = vunpack.c.l.b16 %v54
    %v398 = vunpack.c.l.b16 %v55
    %v399 = vunpack.c.l.b16 %v56
    %v400 = vunpack.c.l.b16 %v57
    %v401 = vunpack.c.l.b16 %v58
    %v402 = vunpack.c.l.b16 %v59
    %v403 = vunpack.c.l.b16 %v60
    %v404 = vunpack.c.l.b16 %v61
    %v405 = vunpack.c.l.b16 %v62
    %v406 = vunpack.c.l.b16 %v63
    %v407 = vunpack.c.l.b16 %v64
    %v408 = vunpack.c.l.b16 %v65
    %v409 = vunpack.c.l.b16 %v66
    %v410 = vunpack.c.l.b16 %v67
    %v411 = vunpack.c.l.b16 %v68
    %v412 = vunpack.c.l.b16 %v69
    %v413 = vunpack.c.l.b16 %v70
    %v414 = vunpack.c.l.b16 %v71
    %v415 = vunpack.c.l.b16 %v72
    %v416 = vunpack.c.l.b16 %v73
    %v417 = vunpack.c.l.b16 %v74
    %v418 = vunpack.c.l.b16 %v75
    %v419 = vunpack.c.l.b16 %v76
    %v420 = vunpack.c.l.b16 %v77
    %v421 = vunpack.c.l.b16 %v78
    %v422 = vunpack.c.l.b16 %v79
    %v423 = vunpack.c.l.b16 %v80
    %v424 = vunpack.c.l.b16 %v81
    %v425 = vunpack.c.l.b16 %v82
    %v426 = vunpack.c.l.b16 %v83
    %v427 = vunpack.c.l.b16 %v84
    %v428 = vunpack.c.l.b16 %v85
    %v429 = vunpack.c.l.b16 %v86
    %v430 = vunpack.c.l.b16 %v87
    %v431 = vunpack.c.l.b16 %v88
    %v432 = vunpack.c.l.b16 %v89
    %v433 = vunpack.c.l.b16 %v90
    %v434 = vunpack.c.l.b16 %v91
    %v435 = vunpack.c.l.b16 %v92
    %v436 = vunpack.c.l.b16 %v93
    %v437 = vunpack.c.l.b16 %v94
    %v438 = vunpack.c.l.b16 %v95
    %v439 = vunpack.c.l.b16 %v96
    %v440 = vunpack.c.l.b16 %v97
    %v441 = vunpack.c.l.b16 %v98
    %v442 = vunpack.c.l.b16 %v99
    %v443 = vunpack.c.l.b16 %v100
    %v444 = vunpack.c.l.b16 %v101
    %v445 = vunpack.c.l.b16 %v102
    %v446 = vunpack.c.l.b16 %v103
    %v447 = vunpack.c.l.b16 %v104
    %v448 = vunpack.c.l.b16 %v105
    %v449 = vunpack.c.l.b16 %v106
    %v450 = vunpack.c.l.b16 %v107
    %v451 = vunpack.c.l.b16 %v108
    %v452 = vunpack.c.l.b16 %v109
    %v453 = vunpack.c.l.b16 %v110
    %v454 = vunpack.c.l.b16 %v111
    %v455 = vunpack.c.l.b16 %v112
    %v456 = vunpack.c.l.b16 %v113
    %v457 = vunpack.c.l.b16 %v114
    %v458 = vunpack.c.l.b16 %v115
    %v459 = vunpack.c.l.b16 %v116
    %v460 = vunpack.c.l.b16 %v117
    %v461 = vunpack.c.l.b16 %v118
    %v462 = vunpack.c.l.b16 %v119
    %v463 = vunpack.c.l.b16 %v120
    %v464 = vunpack.c.l.b16 %v121
    %v465 = vunpack.c.l.b16 %v122
    %v466 = vunpack.c.l.b16 %v123
    %v467 = vunpack.c.l.b16 %v124
    %v468 = vunpack.c.l.b16 %v125
    %v469 = vunpack.c.l.b16 %v126
    %v470 = vunpack.c.l.b16 %v127
    %v471 = vunpack.c.l.b16 %v128
    %v472 = vunpack.c.l.b16 %v129
    %v473 = vunpack.c.l.b16 %v130
    %v474 = vunpack.c.l.b16 %v131
    %v475 = vunpack.c.l.b16 %v132
    %v476 = vunpack.c.l.b16 %v133
    %v477 = vunpack.c.l.b16 %v134
    %v478 = vunpack.c.l.b16 %v135
    %v479 = vunpack.c.l.b16 %v136
    %v480 = vunpack.c.l.b16 %v137
    %v481 = vunpack.c.l.b16 %v138
    %v482 = vunpack.c.l.b16 %v139
    %v483 = vunpack.c.l.b16 %v140
    %v484 = vunpack.c.l.b16 %v141
    %v485 = vunpack.c.l.b16 %v142
    %v486 = vunpack.c.l.b16 %v143
    %v487 = vunpack.c.l.b16 %v144
    %v488 = vunpack.c.l.b16 %v145
    %v489 = vunpack.c.l.b16 %v146
    %v490 = vpack.c.b16 %v363, %v362
    %v491 = vpack.c.b16 %v365, %v364
    %v492 = vpack.c.b16 %v367, %v366
    %v493 = vpack.c.b16 %v369, %v368
    %v494 = vpack.c.b16 %v371, %v370
    %v495 = vpack.c.b16 %v373, %v372
    %v496 = vpack.c.b16 %v375, %v374
    %v497 = vpack.c.b16 %v377, %v376
    %v498 = vpack.c.b16 %v379, %v378
    %v499 = vpack.c.b16 %v381, %v380
    %v500 = vpack.c.b16 %v383, %v382
    %v501 = vpack.c.b16 %v385, %v384
    %v502 = vpack.c.b16 %v387, %v386
    %v503 = vpack.c.b16 %v389, %v388
    %v504 = vpack.c.b16 %v391, %v390
    %v505 = vpack.c.b16 %v393, %v392
    %v506 = vpack.c.b16 %v395, %v394
    %v507 = vpack.c.b16 %v397, %v396
    %v508 = vpack.c.b16 %v399, %v398
    %v509 = vpack.c.b16 %v401, %v400
    %v510 = vpack.c.b16 %v403, %v402
    %v511 = vpack.c.b16 %v405, %v404
    %v512 = vpack.c.b16 %v407, %v406
    %v513 = vpack.c.b16 %v409, %v408
    %v514 = vpack.c.b16 %v411, %v410
    %v515 = vpack.c.b16 %v413, %v412
    %v516 = vpack.c.b16 %v415, %v414
    %v517 = vpack.c.b16 %v417, %v416
    %v518 = vpack.c.b16 %v419, %v418
    %v519 = vpack.c.b16 %v421, %v420
    %v520 = vpack.c.b16 %v423, %v422
    %v521 = vpack.c.b16 %v425, %v424
    %v522 = vpack.c.b16 %v427, %v426
    %v523 = vpack.c.b16 %v429, %v428
    %v524 = vpack.c.b16 %v431, %v430
    %v525 = vpack.c.b16 %v433, %v432
    %v526 = vpack.c.b16 %v435, %v434
    %v527 = vpack.c.b16 %v437, %v436
    %v528 = vpack.c.b16 %v439, %v438
    %v529 = vpack.c.b16 %v441, %v440
    %v530 = vpack.c.b16 %v443, %v442
    %v531 = vpack.c.b16 %v445, %v444
    %v532 = vpack.c.b16 %v447, %v446
    %v533 = vpack.c.b16 %v449, %v448
    %v534 = vpack.c.b16 %v451, %v450
    %v535 = vpack.c.b16 %v453, %v452
    %v536 = vpack.c.b16 %v455, %v454
    %v537 = vpack.c.b16 %v457, %v456
    %v538 = vpack.c.b16 %v459, %v458
    %v539 = vpack.c.b16 %v461, %v460
    %v540 = vpack.c.b16 %v463, %v462
    %v541 = vpack.c.b16 %v465, %v464
    %v542 = vpack.c.b16 %v467, %v466
    %v543 = vpack.c.b16 %v469, %v468
    %v544 = vpack.c.b16 %v471, %v470
    %v545 = vpack.c.b16 %v473, %v472
    %v546 = vpack.c.b16 %v475, %v474
    %v547 = vpack.c.b16 %v477, %v476
    %v548 = vpack.c.b16 %v479, %v478
    %v549 = vpack.c.b16 %v481, %v480
    %v550 = vpack.c.b16 %v483, %v482
    %v551 = vpack.c.b16 %v485, %v484
    %v552 = vpack.c.b16 %v487, %v486
    %v553 = vpack.c.b16 %v489, %v488
    %618 = vmatprep.subr.bf16.mxu0 0
    %619 = vmatpush1.bf16.msra.mxu0 %v490
    %620 = vmatprep.subr.bf16.mxu0 0
    %621 = vmatpush1.bf16.msra.mxu0 %v491
    %622 = vmatprep.subr.bf16.mxu0 0
    %623 = vmatpush1.bf16.msra.mxu0 %v492
    %624 = vmatprep.subr.bf16.mxu0 0
    %625 = vmatpush1.bf16.msra.mxu0 %v493
    %626 = vmatprep.subr.bf16.mxu0 0
    %627 = vmatpush1.bf16.msra.mxu0 %v494
    %628 = vmatprep.subr.bf16.mxu0 0
    %629 = vmatpush1.bf16.msra.mxu0 %v495
    %630 = vmatprep.subr.bf16.mxu0 0
    %631 = vmatpush1.bf16.msra.mxu0 %v496
    %632 = vmatprep.subr.bf16.mxu0 0
    %633 = vmatpush1.bf16.msra.mxu0 %v497
    %634 = vmatprep.subr.bf16.mxu0 0
    %635 = vmatpush1.bf16.msra.mxu0 %v498
    %636 = vmatprep.subr.bf16.mxu0 0
    %637 = vmatpush1.bf16.msra.mxu0 %v499
    %638 = vmatprep.subr.bf16.mxu0 0
    %639 = vmatpush1.bf16.msra.mxu0 %v500
    %640 = vmatprep.subr.bf16.mxu0 0
    %641 = vmatpush1.bf16.msra.mxu0 %v501
    %642 = vmatprep.subr.bf16.mxu0 0
    %643 = vmatpush1.bf16.msra.mxu0 %v502
    %644 = vmatprep.subr.bf16.mxu0 0
    %645 = vmatpush1.bf16.msra.mxu0 %v503
    %646 = vmatprep.subr.bf16.mxu0 0
    %647 = vmatpush1.bf16.msra.mxu0 %v504
    %648 = vmatprep.subr.bf16.mxu0 0
    %649 = vmatpush1.bf16.msra.mxu0 %v505
    %650 = vmatprep.mubr.bf16.mxu0 %v214
    %651 = vmatmul.mubr.bf16.gmra.mrb[0].mxu0 %v200
    %v652 = vpop.f32.mrb[0].mxu0
    %v653 = vadd.f32 %v152, %v652
    %v654 = vpop.f32.mrb[0].mxu0
    %v655 = vpop.f32.mrb[0].mxu0
    %v656 = vpop.f32.mrb[0].mxu0
    %657 = vdwg.mxu0
    %658 = vmatprep.subr.bf16.mxu0 0
    %659 = vmatpush1.bf16.msra.mxu0 %v506
    %660 = vmatprep.subr.bf16.mxu0 0
    %661 = vmatpush1.bf16.msra.mxu0 %v507
    %662 = vmatprep.subr.bf16.mxu0 0
    %663 = vmatpush1.bf16.msra.mxu0 %v508
    %664 = vmatprep.subr.bf16.mxu0 0
    %665 = vmatpush1.bf16.msra.mxu0 %v509
    %666 = vmatprep.subr.bf16.mxu0 0
    %667 = vmatpush1.bf16.msra.mxu0 %v510
    %668 = vmatprep.subr.bf16.mxu0 0
    %669 = vmatpush1.bf16.msra.mxu0 %v511
    %670 = vmatprep.subr.bf16.mxu0 0
    %671 = vmatpush1.bf16.msra.mxu0 %v512
    %672 = vmatprep.subr.bf16.mxu0 0
    %673 = vmatpush1.bf16.msra.mxu0 %v513
    %674 = vmatprep.subr.bf16.mxu0 0
    %675 = vmatpush1.bf16.msra.mxu0 %v514
    %676 = vmatprep.subr.bf16.mxu0 0
    %677 = vmatpush1.bf16.msra.mxu0 %v515
    %678 = vmatprep.subr.bf16.mxu0 0
    %679 = vmatpush1.bf16.msra.mxu0 %v516
    %680 = vmatprep.subr.bf16.mxu0 0
    %681 = vmatpush1.bf16.msra.mxu0 %v517
    %682 = vmatprep.subr.bf16.mxu0 0
    %683 = vmatpush1.bf16.msra.mxu0 %v518
    %684 = vmatprep.subr.bf16.mxu0 0
    %685 = vmatpush1.bf16.msra.mxu0 %v519
    %686 = vmatprep.subr.bf16.mxu0 0
    %687 = vmatpush1.bf16.msra.mxu0 %v520
    %688 = vmatprep.subr.bf16.mxu0 0
    %689 = vmatpush1.bf16.msra.mxu0 %v521
    %690 = vmatprep.mubr.bf16.mxu0 %v224
    %691 = vmatmul.mubr.bf16.gmra.mrb[0].mxu0 %v222
    %v692 = vpop.f32.mrb[0].mxu0
    %v693 = vadd.f32 %v653, %v692
    %v694 = vpop.f32.mrb[0].mxu0
    %v695 = vpop.f32.mrb[0].mxu0
    %v696 = vpop.f32.mrb[0].mxu0
    %697 = vdwg.mxu0
    %698 = vmatprep.subr.bf16.mxu0 0
    %699 = vmatpush1.bf16.msra.mxu0 %v522
    %700 = vmatprep.subr.bf16.mxu0 0
    %701 = vmatpush1.bf16.msra.mxu0 %v523
    %702 = vmatprep.subr.bf16.mxu0 0
    %703 = vmatpush1.bf16.msra.mxu0 %v524
    %704 = vmatprep.subr.bf16.mxu0 0
    %705 = vmatpush1.bf16.msra.mxu0 %v525
    %706 = vmatprep.subr.bf16.mxu0 0
    %707 = vmatpush1.bf16.msra.mxu0 %v526
    %708 = vmatprep.subr.bf16.mxu0 0
    %709 = vmatpush1.bf16.msra.mxu0 %v527
    %710 = vmatprep.subr.bf16.mxu0 0
    %711 = vmatpush1.bf16.msra.mxu0 %v528
    %712 = vmatprep.subr.bf16.mxu0 0
    %713 = vmatpush1.bf16.msra.mxu0 %v529
    %714 = vmatprep.subr.bf16.mxu0 0
    %715 = vmatpush1.bf16.msra.mxu0 %v530
    %716 = vmatprep.subr.bf16.mxu0 0
    %717 = vmatpush1.bf16.msra.mxu0 %v531
    %718 = vmatprep.subr.bf16.mxu0 0
    %719 = vmatpush1.bf16.msra.mxu0 %v532
    %720 = vmatprep.subr.bf16.mxu0 0
    %721 = vmatpush1.bf16.msra.mxu0 %v533
    %722 = vmatprep.subr.bf16.mxu0 0
    %723 = vmatpush1.bf16.msra.mxu0 %v534
    %724 = vmatprep.subr.bf16.mxu0 0
    %725 = vmatpush1.bf16.msra.mxu0 %v535
    %726 = vmatprep.subr.bf16.mxu0 0
    %727 = vmatpush1.bf16.msra.mxu0 %v536
    %728 = vmatprep.subr.bf16.mxu0 0
    %729 = vmatpush1.bf16.msra.mxu0 %v537
    %730 = vmatprep.mubr.bf16.mxu0 %v221
    %731 = vmatmul.mubr.bf16.gmra.mrb[0].mxu0 %v207
    %v732 = vpop.f32.mrb[0].mxu0
    %v733 = vadd.f32 %v693, %v732
    %v734 = vpop.f32.mrb[0].mxu0
    %v735 = vpop.f32.mrb[0].mxu0
    %v736 = vpop.f32.mrb[0].mxu0
    %737 = vdwg.mxu0
    %738 = vmatprep.subr.bf16.mxu0 0
    %739 = vmatpush1.bf16.msra.mxu0 %v538
    %740 = vmatprep.subr.bf16.mxu0 0
    %741 = vmatpush1.bf16.msra.mxu0 %v539
    %742 = vmatprep.subr.bf16.mxu0 0
    %743 = vmatpush1.bf16.msra.mxu0 %v540
    %744 = vmatprep.subr.bf16.mxu0 0
    %745 = vmatpush1.bf16.msra.mxu0 %v541
    %746 = vmatprep.subr.bf16.mxu0 0
    %747 = vmatpush1.bf16.msra.mxu0 %v542
    %748 = vmatprep.subr.bf16.mxu0 0
    %749 = vmatpush1.bf16.msra.mxu0 %v543
    %750 = vmatprep.subr.bf16.mxu0 0
    %751 = vmatpush1.bf16.msra.mxu0 %v544
    %752 = vmatprep.subr.bf16.mxu0 0
    %753 = vmatpush1.bf16.msra.mxu0 %v545
    %754 = vmatprep.subr.bf16.mxu0 0
    %755 = vmatpush1.bf16.msra.mxu0 %v546
    %756 = vmatprep.subr.bf16.mxu0 0
    %757 = vmatpush1.bf16.msra.mxu0 %v547
    %758 = vmatprep.subr.bf16.mxu0 0
    %759 = vmatpush1.bf16.msra.mxu0 %v548
    %760 = vmatprep.subr.bf16.mxu0 0
    %761 = vmatpush1.bf16.msra.mxu0 %v549
    %762 = vmatprep.subr.bf16.mxu0 0
    %763 = vmatpush1.bf16.msra.mxu0 %v550
    %764 = vmatprep.subr.bf16.mxu0 0
    %765 = vmatpush1.bf16.msra.mxu0 %v551
    %766 = vmatprep.subr.bf16.mxu0 0
    %767 = vmatpush1.bf16.msra.mxu0 %v552
    %768 = vmatprep.subr.bf16.mxu0 0
    %769 = vmatpush1.bf16.msra.mxu0 %v553
    %770 = vmatprep.mubr.bf16.mxu0 %v225
    %771 = vmatmul.mubr.bf16.gmra.mrb[0].mxu0 %v223
    %v772 = vpop.f32.mrb[0].mxu0
    %v773 = vadd.f32 %v733, %v772
    %v774 = vpop.f32.mrb[0].mxu0
    %v775 = vpop.f32.mrb[0].mxu0
    %v776 = vpop.f32.mrb[0].mxu0
    %777 = vdwg.mxu0
    %vm778 = vcmask 523264
    %779 = vst.msk [vmem:[#allocation2] sm:$0xff] %vm778, %v773
    // Predicated region
    $region14: #{encoder_forward.9} parent=1 // pred_check
      _
    $region15: #{encoder_forward.9} parent=1 // pred_check_branch
      %781 = sbr.rel (0) target = $region17
    $region16: #{encoder_forward.9} parent=1 // pred_region
      // Predicated region
      $region18: #{encoder_forward.9} parent=16 // pred_check
        _
      $region19: #{encoder_forward.9} parent=16 // pred_check_branch
        %783 = sbr.rel (0) target = $region21
      $region20: #{encoder_forward.9} parent=16 // pred_region
        // Predicated region
        $region22: #{encoder_forward.9} parent=20 // pred_check
          _
        $region23: #{encoder_forward.9} parent=20 // pred_check_branch
          %785 = sbr.rel target = $region25
        $region24: #{encoder_forward.9} parent=20 // pred_region
          // Predicated region
          $region37: #{encoder_forward.9} parent=24 // pred_check
            _
          $region38: #{encoder_forward.9} parent=24 // pred_check_branch
            %800 = sbr.rel (0) target = $region40
          $region39: #{encoder_forward.9} parent=24 // pred_region
            loop: start=0, step=1, limit=1
            $region41: #{encoder_forward.9} parent=39 // loop_pre_header
              _
            $region42: #{encoder_forward.9} parent=39 // loop_header
              %s803 = sphi 0, %s807
              %p804 = scmp.ge.s32.totalorder %s803, 1
              %s808 = sphi [#allocation2], [#allocation2]
              %s809 = sphi %s3, %s3
            $region43: #{encoder_forward.9} parent=39 // loop_header_branch
              %806 = sbr.rel (%p804) target = $region47
            $region44: #{encoder_forward.9} parent=39 // loop_body
              %v810 = vld [vmem:[%s808] sm:$0x3]
              %811 = vst [vmem:[%s809] sm:$0x3] %v810
            $region45: #{encoder_forward.9} parent=39 // loop_footer
              %s807 = sadd.s32 1, %s803
            $region46: #{encoder_forward.9} parent=39 // loop_footer_branch
              %802 = sbr.rel target = $region42
            $region47: #{encoder_forward.9} parent=39 // loop_exit
              _
          $region40: #{encoder_forward.9} parent=24 // pred_fallthru
            _
        $region25: #{encoder_forward.9} parent=20 // pred_fallthru
          _
        // Predicated region
        $region26: #{encoder_forward.9} parent=20 // pred_check
          _
        $region27: #{encoder_forward.9} parent=20 // pred_check_branch
          %787 = sbr.rel (0) target = $region29
        $region28: #{encoder_forward.9} parent=20 // pred_region
          loop: start=0, step=1, limit=1
          $region30: #{encoder_forward.9} parent=28 // loop_pre_header
            _
          $region31: #{encoder_forward.9} parent=28 // loop_header
            %s790 = sphi 0, %s794
            %p791 = scmp.ge.s32.totalorder %s790, 1
            %s795 = sphi [#allocation2], [#allocation2]
            %s796 = sphi %s3, %s3
          $region32: #{encoder_forward.9} parent=28 // loop_header_branch
            %793 = sbr.rel (%p791) target = $region36
          $region33: #{encoder_forward.9} parent=28 // loop_body
            %v797 = vld [vmem:[%s795] sm:$0x3]
            %798 = vst [vmem:[%s796] sm:$0x3] %v797
          $region34: #{encoder_forward.9} parent=28 // loop_footer
            %s794 = sadd.s32 1, %s790
          $region35: #{encoder_forward.9} parent=28 // loop_footer_branch
            %789 = sbr.rel target = $region31
          $region36: #{encoder_forward.9} parent=28 // loop_exit
            _
        $region29: #{encoder_forward.9} parent=20 // pred_fallthru
          _
      $region21: #{encoder_forward.9} parent=16 // pred_fallthru
        _
      %812 = vnop
    $region17: #{encoder_forward.9} parent=1 // pred_fallthru
      _
    // Predicated region
    $region48: #{encoder_forward.9} parent=1 // pred_check
      _
    $region49: #{encoder_forward.9} parent=1 // pred_check_branch
      %814 = sbr.rel (0) target = $region51
    $region50: #{encoder_forward.9} parent=1 // pred_region
      _
    $region51: #{encoder_forward.9} parent=1 // pred_fallthru
      _

// kernel: encoder_forward.8
$region0: #{encoder_forward.8}
  #allocation0 [shape = 'u32[]', space=smem, size = 0x4, offset = 0x4, fixed_abs, tag = 'smem constant byte address 0x4 - core index']
  #allocation1 [shape = 'u32[144,128]{1,0:T(1,128)}', space=vmem, size = 0x12000, scoped, tag = 'internal scratch']
  %s0 = inlined_call_operand.vmem [shape: bf16[8,2048], index: 0, kind: input, shape index: {}]
  %s1 = inlined_call_operand.vmem [shape: bf16[2048,256], index: 1, kind: input, shape index: {}]
  %s2 = inlined_call_operand.vmem [shape: f32[1,256], index: 2, kind: input, shape index: {}]
  %s3 = inlined_call_operand.vmem [shape: bf16[8,256], index: 3, kind: output, shape index: {}]
  %s4 = sld [smem:[#allocation0]]
  $region22: #{encoder_forward.8} parent=0
    _
  %s6 = ssub.s32 1, %s4
  %s7 = scalar_select 0, %s6, %s4
  // Predicated region
  $region2: #{encoder_forward.8} parent=0 // pred_check
    _
  $region3: #{encoder_forward.8} parent=0 // pred_check_branch
    %9 = sbr.rel (0) target = $region5
  $region4: #{encoder_forward.8} parent=0 // pred_region
    _
  $region5: #{encoder_forward.8} parent=0 // pred_fallthru
    _
  // Predicated region
  $region6: #{encoder_forward.8} parent=0 // pred_check
    _
  $region7: #{encoder_forward.8} parent=0 // pred_check_branch
    %11 = sbr.rel (0) target = $region9
  $region8: #{encoder_forward.8} parent=0 // pred_region
    _
  $region9: #{encoder_forward.8} parent=0 // pred_fallthru
    _
  // Predicated region
  $region10: #{encoder_forward.8} parent=0 // pred_check
    _
  $region11: #{encoder_forward.8} parent=0 // pred_check_branch
    %13 = sbr.rel (0) target = $region13
  $region12: #{encoder_forward.8} parent=0 // pred_region
    _
  $region13: #{encoder_forward.8} parent=0 // pred_fallthru
    _
  %v14 = vld [vmem:[%s0] sm:$0xff]
  %v15 = vld [vmem:[%s0 + $0x8] sm:$0xff]
  %v16 = vld [vmem:[%s0 + $0x10] sm:$0xff]
  %v17 = vld [vmem:[%s0 + $0x18] sm:$0xff]
  %v18 = vld [vmem:[%s0 + $0x20] sm:$0xff]
  %v19 = vld [vmem:[%s0 + $0x28] sm:$0xff]
  %v20 = vld [vmem:[%s0 + $0x30] sm:$0xff]
  %v21 = vld [vmem:[%s0 + $0x38] sm:$0xff]
  %v22 = vld [vmem:[%s1] sm:$0xff]
  %v23 = vld [vmem:[%s1 + $0x8] sm:$0xff]
  %v24 = vld [vmem:[%s1 + $0x10] sm:$0xff]
  %v25 = vld [vmem:[%s1 + $0x18] sm:$0xff]
  %v26 = vld [vmem:[%s1 + $0x20] sm:$0xff]
  %v27 = vld [vmem:[%s1 + $0x28] sm:$0xff]
  %v28 = vld [vmem:[%s1 + $0x30] sm:$0xff]
  %v29 = vld [vmem:[%s1 + $0x38] sm:$0xff]
  %v30 = vld [vmem:[%s1 + $0x40] sm:$0xff]
  %v31 = vld [vmem:[%s1 + $0x48] sm:$0xff]
  %v32 = vld [vmem:[%s1 + $0x50] sm:$0xff]
  %v33 = vld [vmem:[%s1 + $0x58] sm:$0xff]
  %v34 = vld [vmem:[%s1 + $0x60] sm:$0xff]
  %v35 = vld [vmem:[%s1 + $0x68] sm:$0xff]
  %v36 = vld [vmem:[%s1 + $0x70] sm:$0xff]
  %v37 = vld [vmem:[%s1 + $0x78] sm:$0xff]
  %v38 = vld [vmem:[%s1 + $0x80] sm:$0xff]
  %v39 = vld [vmem:[%s1 + $0x88] sm:$0xff]
  %v40 = vld [vmem:[%s1 + $0x90] sm:$0xff]
  %v41 = vld [vmem:[%s1 + $0x98] sm:$0xff]
  %v42 = vld [vmem:[%s1 + $0xa0] sm:$0xff]
  %v43 = vld [vmem:[%s1 + $0xa8] sm:$0xff]
  %v44 = vld [vmem:[%s1 + $0xb0] sm:$0xff]
  %v45 = vld [vmem:[%s1 + $0xb8] sm:$0xff]
  %v46 = vld [vmem:[%s1 + $0xc0] sm:$0xff]
  %v47 = vld [vmem:[%s1 + $0xc8] sm:$0xff]
  %v48 = vld [vmem:[%s1 + $0xd0] sm:$0xff]
  %v49 = vld [vmem:[%s1 + $0xd8] sm:$0xff]
  %v50 = vld [vmem:[%s1 + $0xe0] sm:$0xff]
  %v51 = vld [vmem:[%s1 + $0xe8] sm:$0xff]
  %v52 = vld [vmem:[%s1 + $0xf0] sm:$0xff]
  %v53 = vld [vmem:[%s1 + $0xf8] sm:$0xff]
  %v54 = vld [vmem:[%s1 + $0x100] sm:$0xff]
  %v55 = vld [vmem:[%s1 + $0x108] sm:$0xff]
  %v56 = vld [vmem:[%s1 + $0x110] sm:$0xff]
  %v57 = vld [vmem:[%s1 + $0x118] sm:$0xff]
  %v58 = vld [vmem:[%s1 + $0x120] sm:$0xff]
  %v59 = vld [vmem:[%s1 + $0x128] sm:$0xff]
  %v60 = vld [vmem:[%s1 + $0x130] sm:$0xff]
  %v61 = vld [vmem:[%s1 + $0x138] sm:$0xff]
  %v62 = vld [vmem:[%s1 + $0x140] sm:$0xff]
  %v63 = vld [vmem:[%s1 + $0x148] sm:$0xff]
  %v64 = vld [vmem:[%s1 + $0x150] sm:$0xff]
  %v65 = vld [vmem:[%s1 + $0x158] sm:$0xff]
  %v66 = vld [vmem:[%s1 + $0x160] sm:$0xff]
  %v67 = vld [vmem:[%s1 + $0x168] sm:$0xff]
  %v68 = vld [vmem:[%s1 + $0x170] sm:$0xff]
  %v69 = vld [vmem:[%s1 + $0x178] sm:$0xff]
  %v70 = vld [vmem:[%s1 + $0x180] sm:$0xff]
  %v71 = vld [vmem:[%s1 + $0x188] sm:$0xff]
  %v72 = vld [vmem:[%s1 + $0x190] sm:$0xff]
  %v73 = vld [vmem:[%s1 + $0x198] sm:$0xff]
  %v74 = vld [vmem:[%s1 + $0x1a0] sm:$0xff]
  %v75 = vld [vmem:[%s1 + $0x1a8] sm:$0xff]
  %v76 = vld [vmem:[%s1 + $0x1b0] sm:$0xff]
  %v77 = vld [vmem:[%s1 + $0x1b8] sm:$0xff]
  %v78 = vld [vmem:[%s1 + $0x1c0] sm:$0xff]
  %v79 = vld [vmem:[%s1 + $0x1c8] sm:$0xff]
  %v80 = vld [vmem:[%s1 + $0x1d0] sm:$0xff]
  %v81 = vld [vmem:[%s1 + $0x1d8] sm:$0xff]
  %v82 = vld [vmem:[%s1 + $0x1e0] sm:$0xff]
  %v83 = vld [vmem:[%s1 + $0x1e8] sm:$0xff]
  %v84 = vld [vmem:[%s1 + $0x1f0] sm:$0xff]
  %v85 = vld [vmem:[%s1 + $0x1f8] sm:$0xff]
  %v86 = vld [vmem:[%s1 + $0x200] sm:$0xff]
  %v87 = vld [vmem:[%s1 + $0x208] sm:$0xff]
  %v88 = vld [vmem:[%s1 + $0x210] sm:$0xff]
  %v89 = vld [vmem:[%s1 + $0x218] sm:$0xff]
  %v90 = vld [vmem:[%s1 + $0x220] sm:$0xff]
  %v91 = vld [vmem:[%s1 + $0x228] sm:$0xff]
  %v92 = vld [vmem:[%s1 + $0x230] sm:$0xff]
  %v93 = vld [vmem:[%s1 + $0x238] sm:$0xff]
  %v94 = vld [vmem:[%s1 + $0x240] sm:$0xff]
  %v95 = vld [vmem:[%s1 + $0x248] sm:$0xff]
  %v96 = vld [vmem:[%s1 + $0x250] sm:$0xff]
  %v97 = vld [vmem:[%s1 + $0x258] sm:$0xff]
  %v98 = vld [vmem:[%s1 + $0x260] sm:$0xff]
  %v99 = vld [vmem:[%s1 + $0x268] sm:$0xff]
  %v100 = vld [vmem:[%s1 + $0x270] sm:$0xff]
  %v101 = vld [vmem:[%s1 + $0x278] sm:$0xff]
  %v102 = vld [vmem:[%s1 + $0x280] sm:$0xff]
  %v103 = vld [vmem:[%s1 + $0x288] sm:$0xff]
  %v104 = vld [vmem:[%s1 + $0x290] sm:$0xff]
  %v105 = vld [vmem:[%s1 + $0x298] sm:$0xff]
  %v106 = vld [vmem:[%s1 + $0x2a0] sm:$0xff]
  %v107 = vld [vmem:[%s1 + $0x2a8] sm:$0xff]
  %v108 = vld [vmem:[%s1 + $0x2b0] sm:$0xff]
  %v109 = vld [vmem:[%s1 + $0x2b8] sm:$0xff]
  %v110 = vld [vmem:[%s1 + $0x2c0] sm:$0xff]
  %v111 = vld [vmem:[%s1 + $0x2c8] sm:$0xff]
  %v112 = vld [vmem:[%s1 + $0x2d0] sm:$0xff]
  %v113 = vld [vmem:[%s1 + $0x2d8] sm:$0xff]
  %v114 = vld [vmem:[%s1 + $0x2e0] sm:$0xff]
  %v115 = vld [vmem:[%s1 + $0x2e8] sm:$0xff]
  %v116 = vld [vmem:[%s1 + $0x2f0] sm:$0xff]
  %v117 = vld [vmem:[%s1 + $0x2f8] sm:$0xff]
  %v118 = vld [vmem:[%s1 + $0x300] sm:$0xff]
  %v119 = vld [vmem:[%s1 + $0x308] sm:$0xff]
  %v120 = vld [vmem:[%s1 + $0x310] sm:$0xff]
  %v121 = vld [vmem:[%s1 + $0x318] sm:$0xff]
  %v122 = vld [vmem:[%s1 + $0x320] sm:$0xff]
  %v123 = vld [vmem:[%s1 + $0x328] sm:$0xff]
  %v124 = vld [vmem:[%s1 + $0x330] sm:$0xff]
  %v125 = vld [vmem:[%s1 + $0x338] sm:$0xff]
  %v126 = vld [vmem:[%s1 + $0x340] sm:$0xff]
  %v127 = vld [vmem:[%s1 + $0x348] sm:$0xff]
  %v128 = vld [vmem:[%s1 + $0x350] sm:$0xff]
  %v129 = vld [vmem:[%s1 + $0x358] sm:$0xff]
  %v130 = vld [vmem:[%s1 + $0x360] sm:$0xff]
  %v131 = vld [vmem:[%s1 + $0x368] sm:$0xff]
  %v132 = vld [vmem:[%s1 + $0x370] sm:$0xff]
  %v133 = vld [vmem:[%s1 + $0x378] sm:$0xff]
  %v134 = vld [vmem:[%s1 + $0x380] sm:$0xff]
  %v135 = vld [vmem:[%s1 + $0x388] sm:$0xff]
  %v136 = vld [vmem:[%s1 + $0x390] sm:$0xff]
  %v137 = vld [vmem:[%s1 + $0x398] sm:$0xff]
  %v138 = vld [vmem:[%s1 + $0x3a0] sm:$0xff]
  %v139 = vld [vmem:[%s1 + $0x3a8] sm:$0xff]
  %v140 = vld [vmem:[%s1 + $0x3b0] sm:$0xff]
  %v141 = vld [vmem:[%s1 + $0x3b8] sm:$0xff]
  %v142 = vld [vmem:[%s1 + $0x3c0] sm:$0xff]
  %v143 = vld [vmem:[%s1 + $0x3c8] sm:$0xff]
  %v144 = vld [vmem:[%s1 + $0x3d0] sm:$0xff]
  %v145 = vld [vmem:[%s1 + $0x3d8] sm:$0xff]
  %v146 = vld [vmem:[%s1 + $0x3e0] sm:$0xff]
  %v147 = vld [vmem:[%s1 + $0x3e8] sm:$0xff]
  %v148 = vld [vmem:[%s1 + $0x3f0] sm:$0xff]
  %v149 = vld [vmem:[%s1 + $0x3f8] sm:$0xff]
  %v150 = vld [vmem:[%s1 + $0x400] sm:$0xff]
  %v151 = vld [vmem:[%s1 + $0x408] sm:$0xff]
  %v152 = vld [vmem:[%s1 + $0x410] sm:$0xff]
  %v153 = vld [vmem:[%s1 + $0x418] sm:$0xff]
  %v154 = vld [vmem:[%s1 + $0x420] sm:$0xff]
  %v155 = vld [vmem:[%s1 + $0x428] sm:$0xff]
  %v156 = vld [vmem:[%s1 + $0x430] sm:$0xff]
  %v157 = vld [vmem:[%s1 + $0x438] sm:$0xff]
  %v158 = vld [vmem:[%s1 + $0x440] sm:$0xff]
  %v159 = vld [vmem:[%s1 + $0x448] sm:$0xff]
  %v160 = vld [vmem:[%s1 + $0x450] sm:$0xff]
  %v161 = vld [vmem:[%s1 + $0x458] sm:$0xff]
  %v162 = vld [vmem:[%s1 + $0x460] sm:$0xff]
  %v163 = vld [vmem:[%s1 + $0x468] sm:$0xff]
  %v164 = vld [vmem:[%s1 + $0x470] sm:$0xff]
  %v165 = vld [vmem:[%s1 + $0x478] sm:$0xff]
  %v166 = vld [vmem:[%s1 + $0x480] sm:$0xff]
  %v167 = vld [vmem:[%s1 + $0x488] sm:$0xff]
  %v168 = vld [vmem:[%s1 + $0x490] sm:$0xff]
  %v169 = vld [vmem:[%s1 + $0x498] sm:$0xff]
  %v170 = vld [vmem:[%s1 + $0x4a0] sm:$0xff]
  %v171 = vld [vmem:[%s1 + $0x4a8] sm:$0xff]
  %v172 = vld [vmem:[%s1 + $0x4b0] sm:$0xff]
  %v173 = vld [vmem:[%s1 + $0x4b8] sm:$0xff]
  %v174 = vld [vmem:[%s1 + $0x4c0] sm:$0xff]
  %v175 = vld [vmem:[%s1 + $0x4c8] sm:$0xff]
  %v176 = vld [vmem:[%s1 + $0x4d0] sm:$0xff]
  %v177 = vld [vmem:[%s1 + $0x4d8] sm:$0xff]
  %v178 = vld [vmem:[%s1 + $0x4e0] sm:$0xff]
  %v179 = vld [vmem:[%s1 + $0x4e8] sm:$0xff]
  %v180 = vld [vmem:[%s1 + $0x4f0] sm:$0xff]
  %v181 = vld [vmem:[%s1 + $0x4f8] sm:$0xff]
  %v182 = vld [vmem:[%s1 + $0x500] sm:$0xff]
  %v183 = vld [vmem:[%s1 + $0x508] sm:$0xff]
  %v184 = vld [vmem:[%s1 + $0x510] sm:$0xff]
  %v185 = vld [vmem:[%s1 + $0x518] sm:$0xff]
  %v186 = vld [vmem:[%s1 + $0x520] sm:$0xff]
  %v187 = vld [vmem:[%s1 + $0x528] sm:$0xff]
  %v188 = vld [vmem:[%s1 + $0x530] sm:$0xff]
  %v189 = vld [vmem:[%s1 + $0x538] sm:$0xff]
  %v190 = vld [vmem:[%s1 + $0x540] sm:$0xff]
  %v191 = vld [vmem:[%s1 + $0x548] sm:$0xff]
  %v192 = vld [vmem:[%s1 + $0x550] sm:$0xff]
  %v193 = vld [vmem:[%s1 + $0x558] sm:$0xff]
  %v194 = vld [vmem:[%s1 + $0x560] sm:$0xff]
  %v195 = vld [vmem:[%s1 + $0x568] sm:$0xff]
  %v196 = vld [vmem:[%s1 + $0x570] sm:$0xff]
  %v197 = vld [vmem:[%s1 + $0x578] sm:$0xff]
  %v198 = vld [vmem:[%s1 + $0x580] sm:$0xff]
  %v199 = vld [vmem:[%s1 + $0x588] sm:$0xff]
  %v200 = vld [vmem:[%s1 + $0x590] sm:$0xff]
  %v201 = vld [vmem:[%s1 + $0x598] sm:$0xff]
  %v202 = vld [vmem:[%s1 + $0x5a0] sm:$0xff]
  %v203 = vld [vmem:[%s1 + $0x5a8] sm:$0xff]
  %v204 = vld [vmem:[%s1 + $0x5b0] sm:$0xff]
  %v205 = vld [vmem:[%s1 + $0x5b8] sm:$0xff]
  %v206 = vld [vmem:[%s1 + $0x5c0] sm:$0xff]
  %v207 = vld [vmem:[%s1 + $0x5c8] sm:$0xff]
  %v208 = vld [vmem:[%s1 + $0x5d0] sm:$0xff]
  %v209 = vld [vmem:[%s1 + $0x5d8] sm:$0xff]
  %v210 = vld [vmem:[%s1 + $0x5e0] sm:$0xff]
  %v211 = vld [vmem:[%s1 + $0x5e8] sm:$0xff]
  %v212 = vld [vmem:[%s1 + $0x5f0] sm:$0xff]
  %v213 = vld [vmem:[%s1 + $0x5f8] sm:$0xff]
  %v214 = vld [vmem:[%s1 + $0x600] sm:$0xff]
  %v215 = vld [vmem:[%s1 + $0x608] sm:$0xff]
  %v216 = vld [vmem:[%s1 + $0x610] sm:$0xff]
  %v217 = vld [vmem:[%s1 + $0x618] sm:$0xff]
  %v218 = vld [vmem:[%s1 + $0x620] sm:$0xff]
  %v219 = vld [vmem:[%s1 + $0x628] sm:$0xff]
  %v220 = vld [vmem:[%s1 + $0x630] sm:$0xff]
  %v221 = vld [vmem:[%s1 + $0x638] sm:$0xff]
  %v222 = vld [vmem:[%s1 + $0x640] sm:$0xff]
  %v223 = vld [vmem:[%s1 + $0x648] sm:$0xff]
  %v224 = vld [vmem:[%s1 + $0x650] sm:$0xff]
  %v225 = vld [vmem:[%s1 + $0x658] sm:$0xff]
  %v226 = vld [vmem:[%s1 + $0x660] sm:$0xff]
  %v227 = vld [vmem:[%s1 + $0x668] sm:$0xff]
  %v228 = vld [vmem:[%s1 + $0x670] sm:$0xff]
  %v229 = vld [vmem:[%s1 + $0x678] sm:$0xff]
  %v230 = vld [vmem:[%s1 + $0x680] sm:$0xff]
  %v231 = vld [vmem:[%s1 + $0x688] sm:$0xff]
  %v232 = vld [vmem:[%s1 + $0x690] sm:$0xff]
  %v233 = vld [vmem:[%s1 + $0x698] sm:$0xff]
  %v234 = vld [vmem:[%s1 + $0x6a0] sm:$0xff]
  %v235 = vld [vmem:[%s1 + $0x6a8] sm:$0xff]
  %v236 = vld [vmem:[%s1 + $0x6b0] sm:$0xff]
  %v237 = vld [vmem:[%s1 + $0x6b8] sm:$0xff]
  %v238 = vld [vmem:[%s1 + $0x6c0] sm:$0xff]
  %v239 = vld [vmem:[%s1 + $0x6c8] sm:$0xff]
  %v240 = vld [vmem:[%s1 + $0x6d0] sm:$0xff]
  %v241 = vld [vmem:[%s1 + $0x6d8] sm:$0xff]
  %v242 = vld [vmem:[%s1 + $0x6e0] sm:$0xff]
  %v243 = vld [vmem:[%s1 + $0x6e8] sm:$0xff]
  %v244 = vld [vmem:[%s1 + $0x6f0] sm:$0xff]
  %v245 = vld [vmem:[%s1 + $0x6f8] sm:$0xff]
  %v246 = vld [vmem:[%s1 + $0x700] sm:$0xff]
  %v247 = vld [vmem:[%s1 + $0x708] sm:$0xff]
  %v248 = vld [vmem:[%s1 + $0x710] sm:$0xff]
  %v249 = vld [vmem:[%s1 + $0x718] sm:$0xff]
  %v250 = vld [vmem:[%s1 + $0x720] sm:$0xff]
  %v251 = vld [vmem:[%s1 + $0x728] sm:$0xff]
  %v252 = vld [vmem:[%s1 + $0x730] sm:$0xff]
  %v253 = vld [vmem:[%s1 + $0x738] sm:$0xff]
  %v254 = vld [vmem:[%s1 + $0x740] sm:$0xff]
  %v255 = vld [vmem:[%s1 + $0x748] sm:$0xff]
  %v256 = vld [vmem:[%s1 + $0x750] sm:$0xff]
  %v257 = vld [vmem:[%s1 + $0x758] sm:$0xff]
  %v258 = vld [vmem:[%s1 + $0x760] sm:$0xff]
  %v259 = vld [vmem:[%s1 + $0x768] sm:$0xff]
  %v260 = vld [vmem:[%s1 + $0x770] sm:$0xff]
  %v261 = vld [vmem:[%s1 + $0x778] sm:$0xff]
  %v262 = vld [vmem:[%s1 + $0x780] sm:$0xff]
  %v263 = vld [vmem:[%s1 + $0x788] sm:$0xff]
  %v264 = vld [vmem:[%s1 + $0x790] sm:$0xff]
  %v265 = vld [vmem:[%s1 + $0x798] sm:$0xff]
  %v266 = vld [vmem:[%s1 + $0x7a0] sm:$0xff]
  %v267 = vld [vmem:[%s1 + $0x7a8] sm:$0xff]
  %v268 = vld [vmem:[%s1 + $0x7b0] sm:$0xff]
  %v269 = vld [vmem:[%s1 + $0x7b8] sm:$0xff]
  %v270 = vld [vmem:[%s1 + $0x7c0] sm:$0xff]
  %v271 = vld [vmem:[%s1 + $0x7c8] sm:$0xff]
  %v272 = vld [vmem:[%s1 + $0x7d0] sm:$0xff]
  %v273 = vld [vmem:[%s1 + $0x7d8] sm:$0xff]
  %v274 = vld [vmem:[%s1 + $0x7e0] sm:$0xff]
  %v275 = vld [vmem:[%s1 + $0x7e8] sm:$0xff]
  %v276 = vld [vmem:[%s1 + $0x7f0] sm:$0xff]
  %v277 = vld [vmem:[%s1 + $0x7f8] sm:$0xff]
  %v278 = vld [vmem:[%s2] sm:$0x3]
  %v280 = vlaneseq
  %v281 = vshrl.u32 %v280, 7
  %v282 = vsub.s32 0, %v281
  %v283 = vrot.slane %v278, %v282
  %v284 = vlaneseq
  %v285 = vshrl.u32 %v284, 7
  %v286 = vsub.s32 1, %v285
  %v287 = vrot.slane %v278, %v286
  %v298 = vunpack.c.l.b16 %v14
  %v299 = vunpack.c.h.b16 %v14
  %v300 = vunpack.c.l.b16 %v15
  %v301 = vunpack.c.h.b16 %v15
  %v302 = vunpack.c.l.b16 %v16
  %v303 = vunpack.c.h.b16 %v16
  %v304 = vunpack.c.l.b16 %v17
  %v305 = vunpack.c.h.b16 %v17
  %v306 = vunpack.c.l.b16 %v18
  %v307 = vunpack.c.h.b16 %v18
  %v308 = vunpack.c.l.b16 %v19
  %v309 = vunpack.c.h.b16 %v19
  %v310 = vunpack.c.l.b16 %v20
  %v311 = vunpack.c.h.b16 %v20
  %v312 = vunpack.c.l.b16 %v21
  %v313 = vunpack.c.h.b16 %v21
  %v314 = vpack.c.b16 %v298, %v298
  %v315 = vpack.c.b16 %v299, %v299
  %v316 = vpack.c.b16 %v300, %v300
  %v317 = vpack.c.b16 %v301, %v301
  %v318 = vpack.c.b16 %v302, %v302
  %v319 = vpack.c.b16 %v303, %v303
  %v320 = vpack.c.b16 %v304, %v304
  %v321 = vpack.c.b16 %v305, %v305
  %v322 = vpack.c.b16 %v306, %v306
  %v323 = vpack.c.b16 %v307, %v307
  %v324 = vpack.c.b16 %v308, %v308
  %v325 = vpack.c.b16 %v309, %v309
  %v326 = vpack.c.b16 %v310, %v310
  %v327 = vpack.c.b16 %v311, %v311
  %v328 = vpack.c.b16 %v312, %v312
  %v329 = vpack.c.b16 %v313, %v313
  %v602 = vunpack.c.l.b16 %v22
  %v603 = vunpack.c.h.b16 %v22
  %v604 = vunpack.c.l.b16 %v23
  %v605 = vunpack.c.h.b16 %v23
  %v606 = vunpack.c.l.b16 %v24
  %v607 = vunpack.c.h.b16 %v24
  %v608 = vunpack.c.l.b16 %v25
  %v609 = vunpack.c.h.b16 %v25
  %v610 = vunpack.c.l.b16 %v26
  %v611 = vunpack.c.h.b16 %v26
  %v612 = vunpack.c.l.b16 %v27
  %v613 = vunpack.c.h.b16 %v27
  %v614 = vunpack.c.l.b16 %v28
  %v615 = vunpack.c.h.b16 %v28
  %v616 = vunpack.c.l.b16 %v29
  %v617 = vunpack.c.h.b16 %v29
  %v618 = vunpack.c.l.b16 %v30
  %v619 = vunpack.c.h.b16 %v30
  %v620 = vunpack.c.l.b16 %v31
  %v621 = vunpack.c.h.b16 %v31
  %v622 = vunpack.c.l.b16 %v32
  %v623 = vunpack.c.h.b16 %v32
  %v624 = vunpack.c.l.b16 %v33
  %v625 = vunpack.c.h.b16 %v33
  %v626 = vunpack.c.l.b16 %v34
  %v627 = vunpack.c.h.b16 %v34
  %v628 = vunpack.c.l.b16 %v35
  %v629 = vunpack.c.h.b16 %v35
  %v630 = vunpack.c.l.b16 %v36
  %v631 = vunpack.c.h.b16 %v36
  %v632 = vunpack.c.l.b16 %v37
  %v633 = vunpack.c.h.b16 %v37
  %v634 = vunpack.c.l.b16 %v38
  %v635 = vunpack.c.h.b16 %v38
  %v636 = vunpack.c.l.b16 %v39
  %v637 = vunpack.c.h.b16 %v39
  %v638 = vunpack.c.l.b16 %v40
  %v639 = vunpack.c.h.b16 %v40
  %v640 = vunpack.c.l.b16 %v41
  %v641 = vunpack.c.h.b16 %v41
  %v642 = vunpack.c.l.b16 %v42
  %v643 = vunpack.c.h.b16 %v42
  %v644 = vunpack.c.l.b16 %v43
  %v645 = vunpack.c.h.b16 %v43
  %v646 = vunpack.c.l.b16 %v44
  %v647 = vunpack.c.h.b16 %v44
  %v648 = vunpack.c.l.b16 %v45
  %v649 = vunpack.c.h.b16 %v45
  %v650 = vunpack.c.l.b16 %v46
  %v651 = vunpack.c.h.b16 %v46
  %v652 = vunpack.c.l.b16 %v47
  %v653 = vunpack.c.h.b16 %v47
  %v654 = vunpack.c.l.b16 %v48
  %v655 = vunpack.c.h.b16 %v48
  %v656 = vunpack.c.l.b16 %v49
  %v657 = vunpack.c.h.b16 %v49
  %v658 = vunpack.c.l.b16 %v50
  %v659 = vunpack.c.h.b16 %v50
  %v660 = vunpack.c.l.b16 %v51
  %v661 = vunpack.c.h.b16 %v51
  %v662 = vunpack.c.l.b16 %v52
  %v663 = vunpack.c.h.b16 %v52
  %v664 = vunpack.c.l.b16 %v53
  %v665 = vunpack.c.h.b16 %v53
  %v666 = vunpack.c.l.b16 %v54
  %v667 = vunpack.c.h.b16 %v54
  %v668 = vunpack.c.l.b16 %v55
  %v669 = vunpack.c.h.b16 %v55
  %v670 = vunpack.c.l.b16 %v56
  %v671 = vunpack.c.h.b16 %v56
  %v672 = vunpack.c.l.b16 %v57
  %v673 = vunpack.c.h.b16 %v57
  %v674 = vunpack.c.l.b16 %v58
  %v675 = vunpack.c.h.b16 %v58
  %v676 = vunpack.c.l.b16 %v59
  %v677 = vunpack.c.h.b16 %v59
  %v678 = vunpack.c.l.b16 %v60
  %v679 = vunpack.c.h.b16 %v60
  %v680 = vunpack.c.l.b16 %v61
  %v681 = vunpack.c.h.b16 %v61
  %v682 = vunpack.c.l.b16 %v62
  %v683 = vunpack.c.h.b16 %v62
  %v684 = vunpack.c.l.b16 %v63
  %v685 = vunpack.c.h.b16 %v63
  %v686 = vunpack.c.l.b16 %v64
  %v687 = vunpack.c.h.b16 %v64
  %v688 = vunpack.c.l.b16 %v65
  %v689 = vunpack.c.h.b16 %v65
  %v690 = vunpack.c.l.b16 %v66
  %v691 = vunpack.c.h.b16 %v66
  %v692 = vunpack.c.l.b16 %v67
  %v693 = vunpack.c.h.b16 %v67
  %v694 = vunpack.c.l.b16 %v68
  %v695 = vunpack.c.h.b16 %v68
  %v696 = vunpack.c.l.b16 %v69
  %v697 = vunpack.c.h.b16 %v69
  %v698 = vunpack.c.l.b16 %v70
  %v699 = vunpack.c.h.b16 %v70
  %v700 = vunpack.c.l.b16 %v71
  %v701 = vunpack.c.h.b16 %v71
  %v702 = vunpack.c.l.b16 %v72
  %v703 = vunpack.c.h.b16 %v72
  %v704 = vunpack.c.l.b16 %v73
  %v705 = vunpack.c.h.b16 %v73
  %v706 = vunpack.c.l.b16 %v74
  %v707 = vunpack.c.h.b16 %v74
  %v708 = vunpack.c.l.b16 %v75
  %v709 = vunpack.c.h.b16 %v75
  %v710 = vunpack.c.l.b16 %v76
  %v711 = vunpack.c.h.b16 %v76
  %v712 = vunpack.c.l.b16 %v77
  %v713 = vunpack.c.h.b16 %v77
  %v714 = vunpack.c.l.b16 %v78
  %v715 = vunpack.c.h.b16 %v78
  %v716 = vunpack.c.l.b16 %v79
  %v717 = vunpack.c.h.b16 %v79
  %v718 = vunpack.c.l.b16 %v80
  %v719 = vunpack.c.h.b16 %v80
  %v720 = vunpack.c.l.b16 %v81
  %v721 = vunpack.c.h.b16 %v81
  %v722 = vunpack.c.l.b16 %v82
  %v723 = vunpack.c.h.b16 %v82
  %v724 = vunpack.c.l.b16 %v83
  %v725 = vunpack.c.h.b16 %v83
  %v726 = vunpack.c.l.b16 %v84
  %v727 = vunpack.c.h.b16 %v84
  %v728 = vunpack.c.l.b16 %v85
  %v729 = vunpack.c.h.b16 %v85
  %v730 = vunpack.c.l.b16 %v86
  %v731 = vunpack.c.h.b16 %v86
  %v732 = vunpack.c.l.b16 %v87
  %v733 = vunpack.c.h.b16 %v87
  %v734 = vunpack.c.l.b16 %v88
  %v735 = vunpack.c.h.b16 %v88
  %v736 = vunpack.c.l.b16 %v89
  %v737 = vunpack.c.h.b16 %v89
  %v738 = vunpack.c.l.b16 %v90
  %v739 = vunpack.c.h.b16 %v90
  %v740 = vunpack.c.l.b16 %v91
  %v741 = vunpack.c.h.b16 %v91
  %v742 = vunpack.c.l.b16 %v92
  %v743 = vunpack.c.h.b16 %v92
  %v744 = vunpack.c.l.b16 %v93
  %v745 = vunpack.c.h.b16 %v93
  %v746 = vunpack.c.l.b16 %v94
  %v747 = vunpack.c.h.b16 %v94
  %v748 = vunpack.c.l.b16 %v95
  %v749 = vunpack.c.h.b16 %v95
  %v750 = vunpack.c.l.b16 %v96
  %v751 = vunpack.c.h.b16 %v96
  %v752 = vunpack.c.l.b16 %v97
  %v753 = vunpack.c.h.b16 %v97
  %v754 = vunpack.c.l.b16 %v98
  %v755 = vunpack.c.h.b16 %v98
  %v756 = vunpack.c.l.b16 %v99
  %v757 = vunpack.c.h.b16 %v99
  %v758 = vunpack.c.l.b16 %v100
  %v759 = vunpack.c.h.b16 %v100
  %v760 = vunpack.c.l.b16 %v101
  %v761 = vunpack.c.h.b16 %v101
  %v762 = vunpack.c.l.b16 %v102
  %v763 = vunpack.c.h.b16 %v102
  %v764 = vunpack.c.l.b16 %v103
  %v765 = vunpack.c.h.b16 %v103
  %v766 = vunpack.c.l.b16 %v104
  %v767 = vunpack.c.h.b16 %v104
  %v768 = vunpack.c.l.b16 %v105
  %v769 = vunpack.c.h.b16 %v105
  %v770 = vunpack.c.l.b16 %v106
  %v771 = vunpack.c.h.b16 %v106
  %v772 = vunpack.c.l.b16 %v107
  %v773 = vunpack.c.h.b16 %v107
  %v774 = vunpack.c.l.b16 %v108
  %v775 = vunpack.c.h.b16 %v108
  %v776 = vunpack.c.l.b16 %v109
  %v777 = vunpack.c.h.b16 %v109
  %v778 = vunpack.c.l.b16 %v110
  %v779 = vunpack.c.h.b16 %v110
  %v780 = vunpack.c.l.b16 %v111
  %v781 = vunpack.c.h.b16 %v111
  %v782 = vunpack.c.l.b16 %v112
  %v783 = vunpack.c.h.b16 %v112
  %v784 = vunpack.c.l.b16 %v113
  %v785 = vunpack.c.h.b16 %v113
  %v786 = vunpack.c.l.b16 %v114
  %v787 = vunpack.c.h.b16 %v114
  %v788 = vunpack.c.l.b16 %v115
  %v789 = vunpack.c.h.b16 %v115
  %v790 = vunpack.c.l.b16 %v116
  %v791 = vunpack.c.h.b16 %v116
  %v792 = vunpack.c.l.b16 %v117
  %v793 = vunpack.c.h.b16 %v117
  %v794 = vunpack.c.l.b16 %v118
  %v795 = vunpack.c.h.b16 %v118
  %v796 = vunpack.c.l.b16 %v119
  %v797 = vunpack.c.h.b16 %v119
  %v798 = vunpack.c.l.b16 %v120
  %v799 = vunpack.c.h.b16 %v120
  %v800 = vunpack.c.l.b16 %v121
  %v801 = vunpack.c.h.b16 %v121
  %v802 = vunpack.c.l.b16 %v122
  %v803 = vunpack.c.h.b16 %v122
  %v804 = vunpack.c.l.b16 %v123
  %v805 = vunpack.c.h.b16 %v123
  %v806 = vunpack.c.l.b16 %v124
  %v807 = vunpack.c.h.b16 %v124
  %v808 = vunpack.c.l.b16 %v125
  %v809 = vunpack.c.h.b16 %v125
  %v810 = vunpack.c.l.b16 %v126
  %v811 = vunpack.c.h.b16 %v126
  %v812 = vunpack.c.l.b16 %v127
  %v813 = vunpack.c.h.b16 %v127
  %v814 = vunpack.c.l.b16 %v128
  %v815 = vunpack.c.h.b16 %v128
  %v816 = vunpack.c.l.b16 %v129
  %v817 = vunpack.c.h.b16 %v129
  %v818 = vunpack.c.l.b16 %v130
  %v819 = vunpack.c.h.b16 %v130
  %v820 = vunpack.c.l.b16 %v131
  %v821 = vunpack.c.h.b16 %v131
  %v822 = vunpack.c.l.b16 %v132
  %v823 = vunpack.c.h.b16 %v132
  %v824 = vunpack.c.l.b16 %v133
  %v825 = vunpack.c.h.b16 %v133
  %v826 = vunpack.c.l.b16 %v134
  %v827 = vunpack.c.h.b16 %v134
  %v828 = vunpack.c.l.b16 %v135
  %v829 = vunpack.c.h.b16 %v135
  %v830 = vunpack.c.l.b16 %v136
  %v831 = vunpack.c.h.b16 %v136
  %v832 = vunpack.c.l.b16 %v137
  %v833 = vunpack.c.h.b16 %v137
  %v834 = vunpack.c.l.b16 %v138
  %v835 = vunpack.c.h.b16 %v138
  %v836 = vunpack.c.l.b16 %v139
  %v837 = vunpack.c.h.b16 %v139
  %v838 = vunpack.c.l.b16 %v140
  %v839 = vunpack.c.h.b16 %v140
  %v840 = vunpack.c.l.b16 %v141
  %v841 = vunpack.c.h.b16 %v141
  %v842 = vunpack.c.l.b16 %v142
  %v843 = vunpack.c.h.b16 %v142
  %v844 = vunpack.c.l.b16 %v143
  %v845 = vunpack.c.h.b16 %v143
  %v846 = vunpack.c.l.b16 %v144
  %v847 = vunpack.c.h.b16 %v144
  %v848 = vunpack.c.l.b16 %v145
  %v849 = vunpack.c.h.b16 %v145
  %v850 = vunpack.c.l.b16 %v146
  %v851 = vunpack.c.h.b16 %v146
  %v852 = vunpack.c.l.b16 %v147
  %v853 = vunpack.c.h.b16 %v147
  %v854 = vunpack.c.l.b16 %v148
  %v855 = vunpack.c.h.b16 %v148
  %v856 = vunpack.c.l.b16 %v149
  %v857 = vunpack.c.h.b16 %v149
  %v858 = vunpack.c.l.b16 %v150
  %v859 = vunpack.c.h.b16 %v150
  %v860 = vunpack.c.l.b16 %v151
  %v861 = vunpack.c.h.b16 %v151
  %v862 = vunpack.c.l.b16 %v152
  %v863 = vunpack.c.h.b16 %v152
  %v864 = vunpack.c.l.b16 %v153
  %v865 = vunpack.c.h.b16 %v153
  %v866 = vunpack.c.l.b16 %v154
  %v867 = vunpack.c.h.b16 %v154
  %v868 = vunpack.c.l.b16 %v155
  %v869 = vunpack.c.h.b16 %v155
  %v870 = vunpack.c.l.b16 %v156
  %v871 = vunpack.c.h.b16 %v156
  %v872 = vunpack.c.l.b16 %v157
  %v873 = vunpack.c.h.b16 %v157
  %v874 = vunpack.c.l.b16 %v158
  %v875 = vunpack.c.h.b16 %v158
  %v876 = vunpack.c.l.b16 %v159
  %v877 = vunpack.c.h.b16 %v159
  %v878 = vunpack.c.l.b16 %v160
  %v879 = vunpack.c.h.b16 %v160
  %v880 = vunpack.c.l.b16 %v161
  %v881 = vunpack.c.h.b16 %v161
  %v882 = vunpack.c.l.b16 %v162
  %v883 = vunpack.c.h.b16 %v162
  %v884 = vunpack.c.l.b16 %v163
  %v885 = vunpack.c.h.b16 %v163
  %v886 = vunpack.c.l.b16 %v164
  %v887 = vunpack.c.h.b16 %v164
  %v888 = vunpack.c.l.b16 %v165
  %v889 = vunpack.c.h.b16 %v165
  %v890 = vunpack.c.l.b16 %v166
  %v891 = vunpack.c.h.b16 %v166
  %v892 = vunpack.c.l.b16 %v167
  %v893 = vunpack.c.h.b16 %v167
  %v894 = vunpack.c.l.b16 %v168
  %v895 = vunpack.c.h.b16 %v168
  %v896 = vunpack.c.l.b16 %v169
  %v897 = vunpack.c.h.b16 %v169
  %v898 = vunpack.c.l.b16 %v170
  %v899 = vunpack.c.h.b16 %v170
  %v900 = vunpack.c.l.b16 %v171
  %v901 = vunpack.c.h.b16 %v171
  %v902 = vunpack.c.l.b16 %v172
  %v903 = vunpack.c.h.b16 %v172
  %v904 = vunpack.c.l.b16 %v173
  %v905 = vunpack.c.h.b16 %v173
  %v906 = vunpack.c.l.b16 %v174
  %v907 = vunpack.c.h.b16 %v174
  %v908 = vunpack.c.l.b16 %v175
  %v909 = vunpack.c.h.b16 %v175
  %v910 = vunpack.c.l.b16 %v176
  %v911 = vunpack.c.h.b16 %v176
  %v912 = vunpack.c.l.b16 %v177
  %v913 = vunpack.c.h.b16 %v177
  %v914 = vunpack.c.l.b16 %v178
  %v915 = vunpack.c.h.b16 %v178
  %v916 = vunpack.c.l.b16 %v179
  %v917 = vunpack.c.h.b16 %v179
  %v918 = vunpack.c.l.b16 %v180
  %v919 = vunpack.c.h.b16 %v180
  %v920 = vunpack.c.l.b16 %v181
  %v921 = vunpack.c.h.b16 %v181
  %v922 = vunpack.c.l.b16 %v182
  %v923 = vunpack.c.h.b16 %v182
  %v924 = vunpack.c.l.b16 %v183
  %v925 = vunpack.c.h.b16 %v183
  %v926 = vunpack.c.l.b16 %v184
  %v927 = vunpack.c.h.b16 %v184
  %v928 = vunpack.c.l.b16 %v185
  %v929 = vunpack.c.h.b16 %v185
  %v930 = vunpack.c.l.b16 %v186
  %v931 = vunpack.c.h.b16 %v186
  %v932 = vunpack.c.l.b16 %v187
  %v933 = vunpack.c.h.b16 %v187
  %v934 = vunpack.c.l.b16 %v188
  %v935 = vunpack.c.h.b16 %v188
  %v936 = vunpack.c.l.b16 %v189
  %v937 = vunpack.c.h.b16 %v189
  %v938 = vunpack.c.l.b16 %v190
  %v939 = vunpack.c.h.b16 %v190
  %v940 = vunpack.c.l.b16 %v191
  %v941 = vunpack.c.h.b16 %v191
  %v942 = vunpack.c.l.b16 %v192
  %v943 = vunpack.c.h.b16 %v192
  %v944 = vunpack.c.l.b16 %v193
  %v945 = vunpack.c.h.b16 %v193
  %v946 = vunpack.c.l.b16 %v194
  %v947 = vunpack.c.h.b16 %v194
  %v948 = vunpack.c.l.b16 %v195
  %v949 = vunpack.c.h.b16 %v195
  %v950 = vunpack.c.l.b16 %v196
  %v951 = vunpack.c.h.b16 %v196
  %v952 = vunpack.c.l.b16 %v197
  %v953 = vunpack.c.h.b16 %v197
  %v954 = vunpack.c.l.b16 %v198
  %v955 = vunpack.c.h.b16 %v198
  %v956 = vunpack.c.l.b16 %v199
  %v957 = vunpack.c.h.b16 %v199
  %v958 = vunpack.c.l.b16 %v200
  %v959 = vunpack.c.h.b16 %v200
  %v960 = vunpack.c.l.b16 %v201
  %v961 = vunpack.c.h.b16 %v201
  %v962 = vunpack.c.l.b16 %v202
  %v963 = vunpack.c.h.b16 %v202
  %v964 = vunpack.c.l.b16 %v203
  %v965 = vunpack.c.h.b16 %v203
  %v966 = vunpack.c.l.b16 %v204
  %v967 = vunpack.c.h.b16 %v204
  %v968 = vunpack.c.l.b16 %v205
  %v969 = vunpack.c.h.b16 %v205
  %v970 = vunpack.c.l.b16 %v206
  %v971 = vunpack.c.h.b16 %v206
  %v972 = vunpack.c.l.b16 %v207
  %v973 = vunpack.c.h.b16 %v207
  %v974 = vunpack.c.l.b16 %v208
  %v975 = vunpack.c.h.b16 %v208
  %v976 = vunpack.c.l.b16 %v209
  %v977 = vunpack.c.h.b16 %v209
  %v978 = vunpack.c.l.b16 %v210
  %v979 = vunpack.c.h.b16 %v210
  %v980 = vunpack.c.l.b16 %v211
  %v981 = vunpack.c.h.b16 %v211
  %v982 = vunpack.c.l.b16 %v212
  %v983 = vunpack.c.h.b16 %v212
  %v984 = vunpack.c.l.b16 %v213
  %v985 = vunpack.c.h.b16 %v213
  %v986 = vunpack.c.l.b16 %v214
  %v987 = vunpack.c.h.b16 %v214
  %v988 = vunpack.c.l.b16 %v215
  %v989 = vunpack.c.h.b16 %v215
  %v990 = vunpack.c.l.b16 %v216
  %v991 = vunpack.c.h.b16 %v216
  %v992 = vunpack.c.l.b16 %v217
  %v993 = vunpack.c.h.b16 %v217
  %v994 = vunpack.c.l.b16 %v218
  %v995 = vunpack.c.h.b16 %v218
  %v996 = vunpack.c.l.b16 %v219
  %v997 = vunpack.c.h.b16 %v219
  %v998 = vunpack.c.l.b16 %v220
  %v999 = vunpack.c.h.b16 %v220
  %v1000 = vunpack.c.l.b16 %v221
  %v1001 = vunpack.c.h.b16 %v221
  %v1002 = vunpack.c.l.b16 %v222
  %v1003 = vunpack.c.h.b16 %v222
  %v1004 = vunpack.c.l.b16 %v223
  %v1005 = vunpack.c.h.b16 %v223
  %v1006 = vunpack.c.l.b16 %v224
  %v1007 = vunpack.c.h.b16 %v224
  %v1008 = vunpack.c.l.b16 %v225
  %v1009 = vunpack.c.h.b16 %v225
  %v1010 = vunpack.c.l.b16 %v226
  %v1011 = vunpack.c.h.b16 %v226
  %v1012 = vunpack.c.l.b16 %v227
  %v1013 = vunpack.c.h.b16 %v227
  %v1014 = vunpack.c.l.b16 %v228
  %v1015 = vunpack.c.h.b16 %v228
  %v1016 = vunpack.c.l.b16 %v229
  %v1017 = vunpack.c.h.b16 %v229
  %v1018 = vunpack.c.l.b16 %v230
  %v1019 = vunpack.c.h.b16 %v230
  %v1020 = vunpack.c.l.b16 %v231
  %v1021 = vunpack.c.h.b16 %v231
  %v1022 = vunpack.c.l.b16 %v232
  %v1023 = vunpack.c.h.b16 %v232
  %v1024 = vunpack.c.l.b16 %v233
  %v1025 = vunpack.c.h.b16 %v233
  %v1026 = vunpack.c.l.b16 %v234
  %v1027 = vunpack.c.h.b16 %v234
  %v1028 = vunpack.c.l.b16 %v235
  %v1029 = vunpack.c.h.b16 %v235
  %v1030 = vunpack.c.l.b16 %v236
  %v1031 = vunpack.c.h.b16 %v236
  %v1032 = vunpack.c.l.b16 %v237
  %v1033 = vunpack.c.h.b16 %v237
  %v1034 = vunpack.c.l.b16 %v238
  %v1035 = vunpack.c.h.b16 %v238
  %v1036 = vunpack.c.l.b16 %v239
  %v1037 = vunpack.c.h.b16 %v239
  %v1038 = vunpack.c.l.b16 %v240
  %v1039 = vunpack.c.h.b16 %v240
  %v1040 = vunpack.c.l.b16 %v241
  %v1041 = vunpack.c.h.b16 %v241
  %v1042 = vunpack.c.l.b16 %v242
  %v1043 = vunpack.c.h.b16 %v242
  %v1044 = vunpack.c.l.b16 %v243
  %v1045 = vunpack.c.h.b16 %v243
  %v1046 = vunpack.c.l.b16 %v244
  %v1047 = vunpack.c.h.b16 %v244
  %v1048 = vunpack.c.l.b16 %v245
  %v1049 = vunpack.c.h.b16 %v245
  %v1050 = vunpack.c.l.b16 %v246
  %v1051 = vunpack.c.h.b16 %v246
  %v1052 = vunpack.c.l.b16 %v247
  %v1053 = vunpack.c.h.b16 %v247
  %v1054 = vunpack.c.l.b16 %v248
  %v1055 = vunpack.c.h.b16 %v248
  %v1056 = vunpack.c.l.b16 %v249
  %v1057 = vunpack.c.h.b16 %v249
  %v1058 = vunpack.c.l.b16 %v250
  %v1059 = vunpack.c.h.b16 %v250
  %v1060 = vunpack.c.l.b16 %v251
  %v1061 = vunpack.c.h.b16 %v251
  %v1062 = vunpack.c.l.b16 %v252
  %v1063 = vunpack.c.h.b16 %v252
  %v1064 = vunpack.c.l.b16 %v253
  %v1065 = vunpack.c.h.b16 %v253
  %v1066 = vunpack.c.l.b16 %v254
  %v1067 = vunpack.c.h.b16 %v254
  %v1068 = vunpack.c.l.b16 %v255
  %v1069 = vunpack.c.h.b16 %v255
  %v1070 = vunpack.c.l.b16 %v256
  %v1071 = vunpack.c.h.b16 %v256
  %v1072 = vunpack.c.l.b16 %v257
  %v1073 = vunpack.c.h.b16 %v257
  %v1074 = vunpack.c.l.b16 %v258
  %v1075 = vunpack.c.h.b16 %v258
  %v1076 = vunpack.c.l.b16 %v259
  %v1077 = vunpack.c.h.b16 %v259
  %v1078 = vunpack.c.l.b16 %v260
  %v1079 = vunpack.c.h.b16 %v260
  %v1080 = vunpack.c.l.b16 %v261
  %v1081 = vunpack.c.h.b16 %v261
  %v1082 = vunpack.c.l.b16 %v262
  %v1083 = vunpack.c.h.b16 %v262
  %v1084 = vunpack.c.l.b16 %v263
  %v1085 = vunpack.c.h.b16 %v263
  %v1086 = vunpack.c.l.b16 %v264
  %v1087 = vunpack.c.h.b16 %v264
  %v1088 = vunpack.c.l.b16 %v265
  %v1089 = vunpack.c.h.b16 %v265
  %v1090 = vunpack.c.l.b16 %v266
  %v1091 = vunpack.c.h.b16 %v266
  %v1092 = vunpack.c.l.b16 %v267
  %v1093 = vunpack.c.h.b16 %v267
  %v1094 = vunpack.c.l.b16 %v268
  %v1095 = vunpack.c.h.b16 %v268
  %v1096 = vunpack.c.l.b16 %v269
  %v1097 = vunpack.c.h.b16 %v269
  %v1098 = vunpack.c.l.b16 %v270
  %v1099 = vunpack.c.h.b16 %v270
  %v1100 = vunpack.c.l.b16 %v271
  %v1101 = vunpack.c.h.b16 %v271
  %v1102 = vunpack.c.l.b16 %v272
  %v1103 = vunpack.c.h.b16 %v272
  %v1104 = vunpack.c.l.b16 %v273
  %v1105 = vunpack.c.h.b16 %v273
  %v1106 = vunpack.c.l.b16 %v274
  %v1107 = vunpack.c.h.b16 %v274
  %v1108 = vunpack.c.l.b16 %v275
  %v1109 = vunpack.c.h.b16 %v275
  %v1110 = vunpack.c.l.b16 %v276
  %v1111 = vunpack.c.h.b16 %v276
  %v1112 = vunpack.c.l.b16 %v277
  %v1113 = vunpack.c.h.b16 %v277
  %v1114 = vpack.c.b16 %v604, %v602
  %v1115 = vpack.c.b16 %v605, %v603
  %v1116 = vpack.c.b16 %v608, %v606
  %v1117 = vpack.c.b16 %v609, %v607
  %v1118 = vpack.c.b16 %v612, %v610
  %v1119 = vpack.c.b16 %v613, %v611
  %v1120 = vpack.c.b16 %v616, %v614
  %v1121 = vpack.c.b16 %v617, %v615
  %v1122 = vpack.c.b16 %v620, %v618
  %v1123 = vpack.c.b16 %v621, %v619
  %v1124 = vpack.c.b16 %v624, %v622
  %v1125 = vpack.c.b16 %v625, %v623
  %v1126 = vpack.c.b16 %v628, %v626
  %v1127 = vpack.c.b16 %v629, %v627
  %v1128 = vpack.c.b16 %v632, %v630
  %v1129 = vpack.c.b16 %v633, %v631
  %v1130 = vpack.c.b16 %v636, %v634
  %v1131 = vpack.c.b16 %v637, %v635
  %v1132 = vpack.c.b16 %v640, %v638
  %v1133 = vpack.c.b16 %v641, %v639
  %v1134 = vpack.c.b16 %v644, %v642
  %v1135 = vpack.c.b16 %v645, %v643
  %v1136 = vpack.c.b16 %v648, %v646
  %v1137 = vpack.c.b16 %v649, %v647
  %v1138 = vpack.c.b16 %v652, %v650
  %v1139 = vpack.c.b16 %v653, %v651
  %v1140 = vpack.c.b16 %v656, %v654
  %v1141 = vpack.c.b16 %v657, %v655
  %v1142 = vpack.c.b16 %v660, %v658
  %v1143 = vpack.c.b16 %v661, %v659
  %v1144 = vpack.c.b16 %v664, %v662
  %v1145 = vpack.c.b16 %v665, %v663
  %v1146 = vpack.c.b16 %v668, %v666
  %v1147 = vpack.c.b16 %v669, %v667
  %v1148 = vpack.c.b16 %v672, %v670
  %v1149 = vpack.c.b16 %v673, %v671
  %v1150 = vpack.c.b16 %v676, %v674
  %v1151 = vpack.c.b16 %v677, %v675
  %v1152 = vpack.c.b16 %v680, %v678
  %v1153 = vpack.c.b16 %v681, %v679
  %v1154 = vpack.c.b16 %v684, %v682
  %v1155 = vpack.c.b16 %v685, %v683
  %v1156 = vpack.c.b16 %v688, %v686
  %v1157 = vpack.c.b16 %v689, %v687
  %v1158 = vpack.c.b16 %v692, %v690
  %v1159 = vpack.c.b16 %v693, %v691
  %v1160 = vpack.c.b16 %v696, %v694
  %v1161 = vpack.c.b16 %v697, %v695
  %v1162 = vpack.c.b16 %v700, %v698
  %v1163 = vpack.c.b16 %v701, %v699
  %v1164 = vpack.c.b16 %v704, %v702
  %v1165 = vpack.c.b16 %v705, %v703
  %v1166 = vpack.c.b16 %v708, %v706
  %v1167 = vpack.c.b16 %v709, %v707
  %v1168 = vpack.c.b16 %v712, %v710
  %v1169 = vpack.c.b16 %v713, %v711
  %v1170 = vpack.c.b16 %v716, %v714
  %v1171 = vpack.c.b16 %v717, %v715
  %v1172 = vpack.c.b16 %v720, %v718
  %v1173 = vpack.c.b16 %v721, %v719
  %v1174 = vpack.c.b16 %v724, %v722
  %v1175 = vpack.c.b16 %v725, %v723
  %v1176 = vpack.c.b16 %v728, %v726
  %v1177 = vpack.c.b16 %v729, %v727
  %v1178 = vpack.c.b16 %v732, %v730
  %v1179 = vpack.c.b16 %v733, %v731
  %v1180 = vpack.c.b16 %v736, %v734
  %v1181 = vpack.c.b16 %v737, %v735
  %v1182 = vpack.c.b16 %v740, %v738
  %v1183 = vpack.c.b16 %v741, %v739
  %v1184 = vpack.c.b16 %v744, %v742
  %v1185 = vpack.c.b16 %v745, %v743
  %v1186 = vpack.c.b16 %v748, %v746
  %v1187 = vpack.c.b16 %v749, %v747
  %v1188 = vpack.c.b16 %v752, %v750
  %v1189 = vpack.c.b16 %v753, %v751
  %v1190 = vpack.c.b16 %v756, %v754
  %v1191 = vpack.c.b16 %v757, %v755
  %v1192 = vpack.c.b16 %v760, %v758
  %v1193 = vpack.c.b16 %v761, %v759
  %v1194 = vpack.c.b16 %v764, %v762
  %v1195 = vpack.c.b16 %v765, %v763
  %v1196 = vpack.c.b16 %v768, %v766
  %v1197 = vpack.c.b16 %v769, %v767
  %v1198 = vpack.c.b16 %v772, %v770
  %v1199 = vpack.c.b16 %v773, %v771
  %v1200 = vpack.c.b16 %v776, %v774
  %v1201 = vpack.c.b16 %v777, %v775
  %v1202 = vpack.c.b16 %v780, %v778
  %v1203 = vpack.c.b16 %v781, %v779
  %v1204 = vpack.c.b16 %v784, %v782
  %v1205 = vpack.c.b16 %v785, %v783
  %v1206 = vpack.c.b16 %v788, %v786
  %v1207 = vpack.c.b16 %v789, %v787
  %v1208 = vpack.c.b16 %v792, %v790
  %v1209 = vpack.c.b16 %v793, %v791
  %v1210 = vpack.c.b16 %v796, %v794
  %v1211 = vpack.c.b16 %v797, %v795
  %v1212 = vpack.c.b16 %v800, %v798
  %v1213 = vpack.c.b16 %v801, %v799
  %v1214 = vpack.c.b16 %v804, %v802
  %v1215 = vpack.c.b16 %v805, %v803
  %v1216 = vpack.c.b16 %v808, %v806
  %v1217 = vpack.c.b16 %v809, %v807
  %v1218 = vpack.c.b16 %v812, %v810
  %v1219 = vpack.c.b16 %v813, %v811
  %v1220 = vpack.c.b16 %v816, %v814
  %v1221 = vpack.c.b16 %v817, %v815
  %v1222 = vpack.c.b16 %v820, %v818
  %v1223 = vpack.c.b16 %v821, %v819
  %v1224 = vpack.c.b16 %v824, %v822
  %v1225 = vpack.c.b16 %v825, %v823
  %v1226 = vpack.c.b16 %v828, %v826
  %v1227 = vpack.c.b16 %v829, %v827
  %v1228 = vpack.c.b16 %v832, %v830
  %v1229 = vpack.c.b16 %v833, %v831
  %v1230 = vpack.c.b16 %v836, %v834
  %v1231 = vpack.c.b16 %v837, %v835
  %v1232 = vpack.c.b16 %v840, %v838
  %v1233 = vpack.c.b16 %v841, %v839
  %v1234 = vpack.c.b16 %v844, %v842
  %v1235 = vpack.c.b16 %v845, %v843
  %v1236 = vpack.c.b16 %v848, %v846
  %v1237 = vpack.c.b16 %v849, %v847
  %v1238 = vpack.c.b16 %v852, %v850
  %v1239 = vpack.c.b16 %v853, %v851
  %v1240 = vpack.c.b16 %v856, %v854
  %v1241 = vpack.c.b16 %v857, %v855
  %v1242 = vpack.c.b16 %v860, %v858
  %v1243 = vpack.c.b16 %v861, %v859
  %v1244 = vpack.c.b16 %v864, %v862
  %v1245 = vpack.c.b16 %v865, %v863
  %v1246 = vpack.c.b16 %v868, %v866
  %v1247 = vpack.c.b16 %v869, %v867
  %v1248 = vpack.c.b16 %v872, %v870
  %v1249 = vpack.c.b16 %v873, %v871
  %v1250 = vpack.c.b16 %v876, %v874
  %v1251 = vpack.c.b16 %v877, %v875
  %v1252 = vpack.c.b16 %v880, %v878
  %v1253 = vpack.c.b16 %v881, %v879
  %v1254 = vpack.c.b16 %v884, %v882
  %v1255 = vpack.c.b16 %v885, %v883
  %v1256 = vpack.c.b16 %v888, %v886
  %v1257 = vpack.c.b16 %v889, %v887
  %v1258 = vpack.c.b16 %v892, %v890
  %v1259 = vpack.c.b16 %v893, %v891
  %v1260 = vpack.c.b16 %v896, %v894
  %v1261 = vpack.c.b16 %v897, %v895
  %v1262 = vpack.c.b16 %v900, %v898
  %v1263 = vpack.c.b16 %v901, %v899
  %v1264 = vpack.c.b16 %v904, %v902
  %v1265 = vpack.c.b16 %v905, %v903
  %v1266 = vpack.c.b16 %v908, %v906
  %v1267 = vpack.c.b16 %v909, %v907
  %v1268 = vpack.c.b16 %v912, %v910
  %v1269 = vpack.c.b16 %v913, %v911
  %v1270 = vpack.c.b16 %v916, %v914
  %v1271 = vpack.c.b16 %v917, %v915
  %v1272 = vpack.c.b16 %v920, %v918
  %v1273 = vpack.c.b16 %v921, %v919
  %v1274 = vpack.c.b16 %v924, %v922
  %v1275 = vpack.c.b16 %v925, %v923
  %v1276 = vpack.c.b16 %v928, %v926
  %v1277 = vpack.c.b16 %v929, %v927
  %v1278 = vpack.c.b16 %v932, %v930
  %v1279 = vpack.c.b16 %v933, %v931
  %v1280 = vpack.c.b16 %v936, %v934
  %v1281 = vpack.c.b16 %v937, %v935
  %v1282 = vpack.c.b16 %v940, %v938
  %v1283 = vpack.c.b16 %v941, %v939
  %v1284 = vpack.c.b16 %v944, %v942
  %v1285 = vpack.c.b16 %v945, %v943
  %v1286 = vpack.c.b16 %v948, %v946
  %v1287 = vpack.c.b16 %v949, %v947
  %v1288 = vpack.c.b16 %v952, %v950
  %v1289 = vpack.c.b16 %v953, %v951
  %v1290 = vpack.c.b16 %v956, %v954
  %v1291 = vpack.c.b16 %v957, %v955
  %v1292 = vpack.c.b16 %v960, %v958
  %v1293 = vpack.c.b16 %v961, %v959
  %v1294 = vpack.c.b16 %v964, %v962
  %v1295 = vpack.c.b16 %v965, %v963
  %v1296 = vpack.c.b16 %v968, %v966
  %v1297 = vpack.c.b16 %v969, %v967
  %v1298 = vpack.c.b16 %v972, %v970
  %v1299 = vpack.c.b16 %v973, %v971
  %v1300 = vpack.c.b16 %v976, %v974
  %v1301 = vpack.c.b16 %v977, %v975
  %v1302 = vpack.c.b16 %v980, %v978
  %v1303 = vpack.c.b16 %v981, %v979
  %v1304 = vpack.c.b16 %v984, %v982
  %v1305 = vpack.c.b16 %v985, %v983
  %v1306 = vpack.c.b16 %v988, %v986
  %v1307 = vpack.c.b16 %v989, %v987
  %v1308 = vpack.c.b16 %v992, %v990
  %v1309 = vpack.c.b16 %v993, %v991
  %v1310 = vpack.c.b16 %v996, %v994
  %v1311 = vpack.c.b16 %v997, %v995
  %v1312 = vpack.c.b16 %v1000, %v998
  %v1313 = vpack.c.b16 %v1001, %v999
  %v1314 = vpack.c.b16 %v1004, %v1002
  %v1315 = vpack.c.b16 %v1005, %v1003
  %v1316 = vpack.c.b16 %v1008, %v1006
  %v1317 = vpack.c.b16 %v1009, %v1007
  %v1318 = vpack.c.b16 %v1012, %v1010
  %v1319 = vpack.c.b16 %v1013, %v1011
  %v1320 = vpack.c.b16 %v1016, %v1014
  %v1321 = vpack.c.b16 %v1017, %v1015
  %v1322 = vpack.c.b16 %v1020, %v1018
  %v1323 = vpack.c.b16 %v1021, %v1019
  %v1324 = vpack.c.b16 %v1024, %v1022
  %v1325 = vpack.c.b16 %v1025, %v1023
  %v1326 = vpack.c.b16 %v1028, %v1026
  %v1327 = vpack.c.b16 %v1029, %v1027
  %v1328 = vpack.c.b16 %v1032, %v1030
  %v1329 = vpack.c.b16 %v1033, %v1031
  %v1330 = vpack.c.b16 %v1036, %v1034
  %v1331 = vpack.c.b16 %v1037, %v1035
  %v1332 = vpack.c.b16 %v1040, %v1038
  %v1333 = vpack.c.b16 %v1041, %v1039
  %v1334 = vpack.c.b16 %v1044, %v1042
  %v1335 = vpack.c.b16 %v1045, %v1043
  %v1336 = vpack.c.b16 %v1048, %v1046
  %v1337 = vpack.c.b16 %v1049, %v1047
  %v1338 = vpack.c.b16 %v1052, %v1050
  %v1339 = vpack.c.b16 %v1053, %v1051
  %v1340 = vpack.c.b16 %v1056, %v1054
  %v1341 = vpack.c.b16 %v1057, %v1055
  %v1342 = vpack.c.b16 %v1060, %v1058
  %v1343 = vpack.c.b16 %v1061, %v1059
  %v1344 = vpack.c.b16 %v1064, %v1062
  %v1345 = vpack.c.b16 %v1065, %v1063
  %v1346 = vpack.c.b16 %v1068, %v1066
  %v1347 = vpack.c.b16 %v1069, %v1067
  %v1348 = vpack.c.b16 %v1072, %v1070
  %v1349 = vpack.c.b16 %v1073, %v1071
  %v1350 = vpack.c.b16 %v1076, %v1074
  %v1351 = vpack.c.b16 %v1077, %v1075
  %v1352 = vpack.c.b16 %v1080, %v1078
  %v1353 = vpack.c.b16 %v1081, %v1079
  %v1354 = vpack.c.b16 %v1084, %v1082
  %v1355 = vpack.c.b16 %v1085, %v1083
  %v1356 = vpack.c.b16 %v1088, %v1086
  %v1357 = vpack.c.b16 %v1089, %v1087
  %v1358 = vpack.c.b16 %v1092, %v1090
  %v1359 = vpack.c.b16 %v1093, %v1091
  %v1360 = vpack.c.b16 %v1096, %v1094
  %v1361 = vpack.c.b16 %v1097, %v1095
  %v1362 = vpack.c.b16 %v1100, %v1098
  %v1363 = vpack.c.b16 %v1101, %v1099
  %v1364 = vpack.c.b16 %v1104, %v1102
  %v1365 = vpack.c.b16 %v1105, %v1103
  %v1366 = vpack.c.b16 %v1108, %v1106
  %v1367 = vpack.c.b16 %v1109, %v1107
  %v1368 = vpack.c.b16 %v1112, %v1110
  %v1369 = vpack.c.b16 %v1113, %v1111
  %1626 = vmatprep.subr.bf16.mxu0 %v1115
  %1627 = vmatpush1.bf16.msra.mxu0 %v1114
  %1628 = vmatprep.subr.bf16.mxu0 %v1117
  %1629 = vmatpush1.bf16.msra.mxu0 %v1116
  %1630 = vmatprep.subr.bf16.mxu0 %v1119
  %1631 = vmatpush1.bf16.msra.mxu0 %v1118
  %1632 = vmatprep.subr.bf16.mxu0 %v1121
  %1633 = vmatpush1.bf16.msra.mxu0 %v1120
  %1634 = vmatprep.subr.bf16.mxu0 %v1123
  %1635 = vmatpush1.bf16.msra.mxu0 %v1122
  %1636 = vmatprep.subr.bf16.mxu0 %v1125
  %1637 = vmatpush1.bf16.msra.mxu0 %v1124
  %1638 = vmatprep.subr.bf16.mxu0 %v1127
  %1639 = vmatpush1.bf16.msra.mxu0 %v1126
  %1640 = vmatprep.subr.bf16.mxu0 %v1129
  %1641 = vmatpush1.bf16.msra.mxu0 %v1128
  %1642 = vmatprep.subr.bf16.mxu0 %v1131
  %1643 = vmatpush1.bf16.msra.mxu0 %v1130
  %1644 = vmatprep.subr.bf16.mxu0 %v1133
  %1645 = vmatpush1.bf16.msra.mxu0 %v1132
  %1646 = vmatprep.subr.bf16.mxu0 %v1135
  %1647 = vmatpush1.bf16.msra.mxu0 %v1134
  %1648 = vmatprep.subr.bf16.mxu0 %v1137
  %1649 = vmatpush1.bf16.msra.mxu0 %v1136
  %1650 = vmatprep.subr.bf16.mxu0 %v1139
  %1651 = vmatpush1.bf16.msra.mxu0 %v1138
  %1652 = vmatprep.subr.bf16.mxu0 %v1141
  %1653 = vmatpush1.bf16.msra.mxu0 %v1140
  %1654 = vmatprep.subr.bf16.mxu0 %v1143
  %1655 = vmatpush1.bf16.msra.mxu0 %v1142
  %1656 = vmatprep.subr.bf16.mxu0 %v1145
  %1657 = vmatpush1.bf16.msra.mxu0 %v1144
  %1658 = vmatprep.mubr.bf16.mxu0 %v315
  %1659 = vmatmul.mubr.bf16.gmra.mrb[0].mxu0 %v314
  %v1660 = vpop.f32.mrb[0].mxu0
  %v1661 = vadd.f32 %v283, %v1660
  %v1662 = vpop.f32.mrb[0].mxu0
  %v1663 = vadd.f32 %v287, %v1662
  %v1664 = vpop.f32.mrb[0].mxu0
  %v1665 = vpop.f32.mrb[0].mxu0
  %1666 = vdwg.mxu0
  %1667 = vmatprep.subr.bf16.mxu0 %v1147
  %1668 = vmatpush1.bf16.msra.mxu0 %v1146
  %1669 = vmatprep.subr.bf16.mxu0 %v1149
  %1670 = vmatpush1.bf16.msra.mxu0 %v1148
  %1671 = vmatprep.subr.bf16.mxu0 %v1151
  %1672 = vmatpush1.bf16.msra.mxu0 %v1150
  %1673 = vmatprep.subr.bf16.mxu0 %v1153
  %1674 = vmatpush1.bf16.msra.mxu0 %v1152
  %1675 = vmatprep.subr.bf16.mxu0 %v1155
  %1676 = vmatpush1.bf16.msra.mxu0 %v1154
  %1677 = vmatprep.subr.bf16.mxu0 %v1157
  %1678 = vmatpush1.bf16.msra.mxu0 %v1156
  %1679 = vmatprep.subr.bf16.mxu0 %v1159
  %1680 = vmatpush1.bf16.msra.mxu0 %v1158
  %1681 = vmatprep.subr.bf16.mxu0 %v1161
  %1682 = vmatpush1.bf16.msra.mxu0 %v1160
  %1683 = vmatprep.subr.bf16.mxu0 %v1163
  %1684 = vmatpush1.bf16.msra.mxu0 %v1162
  %1685 = vmatprep.subr.bf16.mxu0 %v1165
  %1686 = vmatpush1.bf16.msra.mxu0 %v1164
  %1687 = vmatprep.subr.bf16.mxu0 %v1167
  %1688 = vmatpush1.bf16.msra.mxu0 %v1166
  %1689 = vmatprep.subr.bf16.mxu0 %v1169
  %1690 = vmatpush1.bf16.msra.mxu0 %v1168
  %1691 = vmatprep.subr.bf16.mxu0 %v1171
  %1692 = vmatpush1.bf16.msra.mxu0 %v1170
  %1693 = vmatprep.subr.bf16.mxu0 %v1173
  %1694 = vmatpush1.bf16.msra.mxu0 %v1172
  %1695 = vmatprep.subr.bf16.mxu0 %v1175
  %1696 = vmatpush1.bf16.msra.mxu0 %v1174
  %1697 = vmatprep.subr.bf16.mxu0 %v1177
  %1698 = vmatpush1.bf16.msra.mxu0 %v1176
  %1699 = vmatprep.mubr.bf16.mxu0 %v317
  %1700 = vmatmul.mubr.bf16.gmra.mrb[0].mxu0 %v316
  %v1701 = vpop.f32.mrb[0].mxu0
  %v1702 = vadd.f32 %v1661, %v1701
  %v1703 = vpop.f32.mrb[0].mxu0
  %v1704 = vadd.f32 %v1663, %v1703
  %v1705 = vpop.f32.mrb[0].mxu0
  %v1706 = vpop.f32.mrb[0].mxu0
  %1707 = vdwg.mxu0
  %1708 = vmatprep.subr.bf16.mxu0 %v1179
  %1709 = vmatpush1.bf16.msra.mxu0 %v1178
  %1710 = vmatprep.subr.bf16.mxu0 %v1181
  %1711 = vmatpush1.bf16.msra.mxu0 %v1180
  %1712 = vmatprep.subr.bf16.mxu0 %v1183
  %1713 = vmatpush1.bf16.msra.mxu0 %v1182
  %1714 = vmatprep.subr.bf16.mxu0 %v1185
  %1715 = vmatpush1.bf16.msra.mxu0 %v1184
  %1716 = vmatprep.subr.bf16.mxu0 %v1187
  %1717 = vmatpush1.bf16.msra.mxu0 %v1186
  %1718 = vmatprep.subr.bf16.mxu0 %v1189
  %1719 = vmatpush1.bf16.msra.mxu0 %v1188
  %1720 = vmatprep.subr.bf16.mxu0 %v1191
  %1721 = vmatpush1.bf16.msra.mxu0 %v1190
  %1722 = vmatprep.subr.bf16.mxu0 %v1193
  %1723 = vmatpush1.bf16.msra.mxu0 %v1192
  %1724 = vmatprep.subr.bf16.mxu0 %v1195
  %1725 = vmatpush1.bf16.msra.mxu0 %v1194
  %1726 = vmatprep.subr.bf16.mxu0 %v1197
  %1727 = vmatpush1.bf16.msra.mxu0 %v1196
  %1728 = vmatprep.subr.bf16.mxu0 %v1199
  %1729 = vmatpush1.bf16.msra.mxu0 %v1198
  %1730 = vmatprep.subr.bf16.mxu0 %v1201
  %1731 = vmatpush1.bf16.msra.mxu0 %v1200
  %1732 = vmatprep.subr.bf16.mxu0 %v1203
  %1733 = vmatpush1.bf16.msra.mxu0 %v1202
  %1734 = vmatprep.subr.bf16.mxu0 %v1205
  %1735 = vmatpush1.bf16.msra.mxu0 %v1204
  %1736 = vmatprep.subr.bf16.mxu0 %v1207
  %1737 = vmatpush1.bf16.msra.mxu0 %v1206
  %1738 = vmatprep.subr.bf16.mxu0 %v1209
  %1739 = vmatpush1.bf16.msra.mxu0 %v1208
  %1740 = vmatprep.mubr.bf16.mxu0 %v319
  %1741 = vmatmul.mubr.bf16.gmra.mrb[0].mxu0 %v318
  %v1742 = vpop.f32.mrb[0].mxu0
  %v1743 = vadd.f32 %v1702, %v1742
  %v1744 = vpop.f32.mrb[0].mxu0
  %v1745 = vadd.f32 %v1704, %v1744
  %v1746 = vpop.f32.mrb[0].mxu0
  %v1747 = vpop.f32.mrb[0].mxu0
  %1748 = vdwg.mxu0
  %1749 = vmatprep.subr.bf16.mxu0 %v1211
  %1750 = vmatpush1.bf16.msra.mxu0 %v1210
  %1751 = vmatprep.subr.bf16.mxu0 %v1213
  %1752 = vmatpush1.bf16.msra.mxu0 %v1212
  %1753 = vmatprep.subr.bf16.mxu0 %v1215
  %1754 = vmatpush1.bf16.msra.mxu0 %v1214
  %1755 = vmatprep.subr.bf16.mxu0 %v1217
  %1756 = vmatpush1.bf16.msra.mxu0 %v1216
  %1757 = vmatprep.subr.bf16.mxu0 %v1219
  %1758 = vmatpush1.bf16.msra.mxu0 %v1218
  %1759 = vmatprep.subr.bf16.mxu0 %v1221
  %1760 = vmatpush1.bf16.msra.mxu0 %v1220
  %1761 = vmatprep.subr.bf16.mxu0 %v1223
  %1762 = vmatpush1.bf16.msra.mxu0 %v1222
  %1763 = vmatprep.subr.bf16.mxu0 %v1225
  %1764 = vmatpush1.bf16.msra.mxu0 %v1224
  %1765 = vmatprep.subr.bf16.mxu0 %v1227
  %1766 = vmatpush1.bf16.msra.mxu0 %v1226
  %1767 = vmatprep.subr.bf16.mxu0 %v1229
  %1768 = vmatpush1.bf16.msra.mxu0 %v1228
  %1769 = vmatprep.subr.bf16.mxu0 %v1231
  %1770 = vmatpush1.bf16.msra.mxu0 %v1230
  %1771 = vmatprep.subr.bf16.mxu0 %v1233
  %1772 = vmatpush1.bf16.msra.mxu0 %v1232
  %1773 = vmatprep.subr.bf16.mxu0 %v1235
  %1774 = vmatpush1.bf16.msra.mxu0 %v1234
  %1775 = vmatprep.subr.bf16.mxu0 %v1237
  %1776 = vmatpush1.bf16.msra.mxu0 %v1236
  %1777 = vmatprep.subr.bf16.mxu0 %v1239
  %1778 = vmatpush1.bf16.msra.mxu0 %v1238
  %1779 = vmatprep.subr.bf16.mxu0 %v1241
  %1780 = vmatpush1.bf16.msra.mxu0 %v1240
  %1781 = vmatprep.mubr.bf16.mxu0 %v321
  %1782 = vmatmul.mubr.bf16.gmra.mrb[0].mxu0 %v320
  %v1783 = vpop.f32.mrb[0].mxu0
  %v1784 = vadd.f32 %v1743, %v1783
  %v1785 = vpop.f32.mrb[0].mxu0
  %v1786 = vadd.f32 %v1745, %v1785
  %v1787 = vpop.f32.mrb[0].mxu0
  %v1788 = vpop.f32.mrb[0].mxu0
  %1789 = vdwg.mxu0
  %1790 = vmatprep.subr.bf16.mxu0 %v1243
  %1791 = vmatpush1.bf16.msra.mxu0 %v1242
  %1792 = vmatprep.subr.bf16.mxu0 %v1245
  %1793 = vmatpush1.bf16.msra.mxu0 %v1244
  %1794 = vmatprep.subr.bf16.mxu0 %v1247
  %1795 = vmatpush1.bf16.msra.mxu0 %v1246
  %1796 = vmatprep.subr.bf16.mxu0 %v1249
  %1797 = vmatpush1.bf16.msra.mxu0 %v1248
  %1798 = vmatprep.subr.bf16.mxu0 %v1251
  %1799 = vmatpush1.bf16.msra.mxu0 %v1250
  %1800 = vmatprep.subr.bf16.mxu0 %v1253
  %1801 = vmatpush1.bf16.msra.mxu0 %v1252
  %1802 = vmatprep.subr.bf16.mxu0 %v1255
  %1803 = vmatpush1.bf16.msra.mxu0 %v1254
  %1804 = vmatprep.subr.bf16.mxu0 %v1257
  %1805 = vmatpush1.bf16.msra.mxu0 %v1256
  %1806 = vmatprep.subr.bf16.mxu0 %v1259
  %1807 = vmatpush1.bf16.msra.mxu0 %v1258
  %1808 = vmatprep.subr.bf16.mxu0 %v1261
  %1809 = vmatpush1.bf16.msra.mxu0 %v1260
  %1810 = vmatprep.subr.bf16.mxu0 %v1263
  %1811 = vmatpush1.bf16.msra.mxu0 %v1262
  %1812 = vmatprep.subr.bf16.mxu0 %v1265
  %1813 = vmatpush1.bf16.msra.mxu0 %v1264
  %1814 = vmatprep.subr.bf16.mxu0 %v1267
  %1815 = vmatpush1.bf16.msra.mxu0 %v1266
  %1816 = vmatprep.subr.bf16.mxu0 %v1269
  %1817 = vmatpush1.bf16.msra.mxu0 %v1268
  %1818 = vmatprep.subr.bf16.mxu0 %v1271
  %1819 = vmatpush1.bf16.msra.mxu0 %v1270
  %1820 = vmatprep.subr.bf16.mxu0 %v1273
  %1821 = vmatpush1.bf16.msra.mxu0 %v1272
  %1822 = vmatprep.mubr.bf16.mxu0 %v323
  %1823 = vmatmul.mubr.bf16.gmra.mrb[0].mxu0 %v322
  %v1824 = vpop.f32.mrb[0].mxu0
  %v1825 = vadd.f32 %v1784, %v1824
  %v1826 = vpop.f32.mrb[0].mxu0
  %v1827 = vadd.f32 %v1786, %v1826
  %v1828 = vpop.f32.mrb[0].mxu0
  %v1829 = vpop.f32.mrb[0].mxu0
  %1830 = vdwg.mxu0
  %1831 = vmatprep.subr.bf16.mxu0 %v1275
  %1832 = vmatpush1.bf16.msra.mxu0 %v1274
  %1833 = vmatprep.subr.bf16.mxu0 %v1277
  %1834 = vmatpush1.bf16.msra.mxu0 %v1276
  %1835 = vmatprep.subr.bf16.mxu0 %v1279
  %1836 = vmatpush1.bf16.msra.mxu0 %v1278
  %1837 = vmatprep.subr.bf16.mxu0 %v1281
  %1838 = vmatpush1.bf16.msra.mxu0 %v1280
  %1839 = vmatprep.subr.bf16.mxu0 %v1283
  %1840 = vmatpush1.bf16.msra.mxu0 %v1282
  %1841 = vmatprep.subr.bf16.mxu0 %v1285
  %1842 = vmatpush1.bf16.msra.mxu0 %v1284
  %1843 = vmatprep.subr.bf16.mxu0 %v1287
  %1844 = vmatpush1.bf16.msra.mxu0 %v1286
  %1845 = vmatprep.subr.bf16.mxu0 %v1289
  %1846 = vmatpush1.bf16.msra.mxu0 %v1288
  %1847 = vmatprep.subr.bf16.mxu0 %v1291
  %1848 = vmatpush1.bf16.msra.mxu0 %v1290
  %1849 = vmatprep.subr.bf16.mxu0 %v1293
  %1850 = vmatpush1.bf16.msra.mxu0 %v1292
  %1851 = vmatprep.subr.bf16.mxu0 %v1295
  %1852 = vmatpush1.bf16.msra.mxu0 %v1294
  %1853 = vmatprep.subr.bf16.mxu0 %v1297
  %1854 = vmatpush1.bf16.msra.mxu0 %v1296
  %1855 = vmatprep.subr.bf16.mxu0 %v1299
  %1856 = vmatpush1.bf16.msra.mxu0 %v1298
  %1857 = vmatprep.subr.bf16.mxu0 %v1301
  %1858 = vmatpush1.bf16.msra.mxu0 %v1300
  %1859 = vmatprep.subr.bf16.mxu0 %v1303
  %1860 = vmatpush1.bf16.msra.mxu0 %v1302
  %1861 = vmatprep.subr.bf16.mxu0 %v1305
  %1862 = vmatpush1.bf16.msra.mxu0 %v1304
  %1863 = vmatprep.mubr.bf16.mxu0 %v325
  %1864 = vmatmul.mubr.bf16.gmra.mrb[0].mxu0 %v324
  %v1865 = vpop.f32.mrb[0].mxu0
  %v1866 = vadd.f32 %v1825, %v1865
  %v1867 = vpop.f32.mrb[0].mxu0
  %v1868 = vadd.f32 %v1827, %v1867
  %v1869 = vpop.f32.mrb[0].mxu0
  %v1870 = vpop.f32.mrb[0].mxu0
  %1871 = vdwg.mxu0
  %1872 = vmatprep.subr.bf16.mxu0 %v1307
  %1873 = vmatpush1.bf16.msra.mxu0 %v1306
  %1874 = vmatprep.subr.bf16.mxu0 %v1309
  %1875 = vmatpush1.bf16.msra.mxu0 %v1308
  %1876 = vmatprep.subr.bf16.mxu0 %v1311
  %1877 = vmatpush1.bf16.msra.mxu0 %v1310
  %1878 = vmatprep.subr.bf16.mxu0 %v1313
  %1879 = vmatpush1.bf16.msra.mxu0 %v1312
  %1880 = vmatprep.subr.bf16.mxu0 %v1315
  %1881 = vmatpush1.bf16.msra.mxu0 %v1314
  %1882 = vmatprep.subr.bf16.mxu0 %v1317
  %1883 = vmatpush1.bf16.msra.mxu0 %v1316
  %1884 = vmatprep.subr.bf16.mxu0 %v1319
  %1885 = vmatpush1.bf16.msra.mxu0 %v1318
  %1886 = vmatprep.subr.bf16.mxu0 %v1321
  %1887 = vmatpush1.bf16.msra.mxu0 %v1320
  %1888 = vmatprep.subr.bf16.mxu0 %v1323
  %1889 = vmatpush1.bf16.msra.mxu0 %v1322
  %1890 = vmatprep.subr.bf16.mxu0 %v1325
  %1891 = vmatpush1.bf16.msra.mxu0 %v1324
  %1892 = vmatprep.subr.bf16.mxu0 %v1327
  %1893 = vmatpush1.bf16.msra.mxu0 %v1326
  %1894 = vmatprep.subr.bf16.mxu0 %v1329
  %1895 = vmatpush1.bf16.msra.mxu0 %v1328
  %1896 = vmatprep.subr.bf16.mxu0 %v1331
  %1897 = vmatpush1.bf16.msra.mxu0 %v1330
  %1898 = vmatprep.subr.bf16.mxu0 %v1333
  %1899 = vmatpush1.bf16.msra.mxu0 %v1332
  %1900 = vmatprep.subr.bf16.mxu0 %v1335
  %1901 = vmatpush1.bf16.msra.mxu0 %v1334
  %1902 = vmatprep.subr.bf16.mxu0 %v1337
  %1903 = vmatpush1.bf16.msra.mxu0 %v1336
  %1904 = vmatprep.mubr.bf16.mxu0 %v327
  %1905 = vmatmul.mubr.bf16.gmra.mrb[0].mxu0 %v326
  %v1906 = vpop.f32.mrb[0].mxu0
  %v1907 = vadd.f32 %v1866, %v1906
  %v1908 = vpop.f32.mrb[0].mxu0
  %v1909 = vadd.f32 %v1868, %v1908
  %v1910 = vpop.f32.mrb[0].mxu0
  %v1911 = vpop.f32.mrb[0].mxu0
  %1912 = vdwg.mxu0
  %1913 = vmatprep.subr.bf16.mxu0 %v1339
  %1914 = vmatpush1.bf16.msra.mxu0 %v1338
  %1915 = vmatprep.subr.bf16.mxu0 %v1341
  %1916 = vmatpush1.bf16.msra.mxu0 %v1340
  %1917 = vmatprep.subr.bf16.mxu0 %v1343
  %1918 = vmatpush1.bf16.msra.mxu0 %v1342
  %1919 = vmatprep.subr.bf16.mxu0 %v1345
  %1920 = vmatpush1.bf16.msra.mxu0 %v1344
  %1921 = vmatprep.subr.bf16.mxu0 %v1347
  %1922 = vmatpush1.bf16.msra.mxu0 %v1346
  %1923 = vmatprep.subr.bf16.mxu0 %v1349
  %1924 = vmatpush1.bf16.msra.mxu0 %v1348
  %1925 = vmatprep.subr.bf16.mxu0 %v1351
  %1926 = vmatpush1.bf16.msra.mxu0 %v1350
  %1927 = vmatprep.subr.bf16.mxu0 %v1353
  %1928 = vmatpush1.bf16.msra.mxu0 %v1352
  %1929 = vmatprep.subr.bf16.mxu0 %v1355
  %1930 = vmatpush1.bf16.msra.mxu0 %v1354
  %1931 = vmatprep.subr.bf16.mxu0 %v1357
  %1932 = vmatpush1.bf16.msra.mxu0 %v1356
  %1933 = vmatprep.subr.bf16.mxu0 %v1359
  %1934 = vmatpush1.bf16.msra.mxu0 %v1358
  %1935 = vmatprep.subr.bf16.mxu0 %v1361
  %1936 = vmatpush1.bf16.msra.mxu0 %v1360
  %1937 = vmatprep.subr.bf16.mxu0 %v1363
  %1938 = vmatpush1.bf16.msra.mxu0 %v1362
  %1939 = vmatprep.subr.bf16.mxu0 %v1365
  %1940 = vmatpush1.bf16.msra.mxu0 %v1364
  %1941 = vmatprep.subr.bf16.mxu0 %v1367
  %1942 = vmatpush1.bf16.msra.mxu0 %v1366
  %1943 = vmatprep.subr.bf16.mxu0 %v1369
  %1944 = vmatpush1.bf16.msra.mxu0 %v1368
  %1945 = vmatprep.mubr.bf16.mxu0 %v329
  %1946 = vmatmul.mubr.bf16.gmra.mrb[0].mxu0 %v328
  %v1947 = vpop.f32.mrb[0].mxu0
  %v1948 = vadd.f32 %v1907, %v1947
  %v1949 = vpop.f32.mrb[0].mxu0
  %v1950 = vadd.f32 %v1909, %v1949
  %v1951 = vpop.f32.mrb[0].mxu0
  %v1952 = vpop.f32.mrb[0].mxu0
  %1953 = vdwg.mxu0
  %v1954 = vmax.f32 %v1948, 0.0
  %v1955 = vmax.f32 %v1950, 0.0
  %v1956 = vpack.c.bf16 %v1954, %v1954
  %v1957 = vpack.c.bf16 %v1955, %v1955
  %v1960 = vunpack.c.l.b16 %v1956
  %v1961 = vunpack.c.l.b16 %v1957
  %v1962 = vpack.c.b16 %v1961, %v1960
  %1964 = vst [vmem:[%s3] sm:$0xff] %v1962
  // Predicated region
  $region14: #{encoder_forward.8} parent=0 // pred_check
    _
  $region15: #{encoder_forward.8} parent=0 // pred_check_branch
    %1966 = sbr.rel (0) target = $region17
  $region16: #{encoder_forward.8} parent=0 // pred_region
    _
  $region17: #{encoder_forward.8} parent=0 // pred_fallthru
    _
  // Predicated region
  $region18: #{encoder_forward.8} parent=0 // pred_check
    _
  $region19: #{encoder_forward.8} parent=0 // pred_check_branch
    %1968 = sbr.rel (0) target = $region21
  $region20: #{encoder_forward.8} parent=0 // pred_region
    _
  $region21: #{encoder_forward.8} parent=0 // pred_fallthru
    _

</llo_original>
